<compile_context>
chip_gen: v7x
topology: tpu7x:2x2x1
jax: 0.10.0
libtpu: 0.0.40
codegen_flags: <defaults>
</compile_context>

<pallas_src>
import jax
import jax.numpy as jnp
from jax.experimental import pallas as pl
from jax.experimental.pallas import tpu as pltpu

ACTION_N = 4     # Action_N of the PPO module
TN_MAX = 2048    # lanes (pixels) per grid step; sweep 2048-4096 for large N
TSUB = 512       # lanes per in-kernel sub-chunk (MXU/VPU interleave)


# ---------------------------------------------------------------------------
# Pallas kernel: conv1 (VPU) + trunk 1x1 convs + fused policy/value heads (MXU)
# ---------------------------------------------------------------------------
def _make_ppo_head_kernel(tsub):
    def kernel(xp_ref, w1_ref, b1_ref, wm_ref, bm_ref,
               w4pv_ref, b4pv_ref, w5pv_ref, b5pv_ref,
               w6_ref, b6_ref, out_ref):
        f32, bf16 = jnp.float32, jnp.bfloat16

        # Invariant weights: load once per grid step (hoisted out of the
        # sub-chunk loop so broadcasts are not re-materialised per chunk).
        w1 = w1_ref[...]                                    # [64, 4]   bf16
        b1 = b1_ref[...]                                    # [64, 1]   bf16
        w2, w3, w4 = wm_ref[0], wm_ref[1], wm_ref[2]        # [64, 64]  bf16
        b2, b3, b4 = bm_ref[0], bm_ref[1], bm_ref[2]        # [64, 1]   bf16
        w4pv, b4pv = w4pv_ref[...], b4pv_ref[...]           # [128,64],[128,1]
        w5pv, b5pv = w5pv_ref[...], b5pv_ref[...]           # [128,128],[128,1]
        w6, b6 = w6_ref[...], b6_ref[...]                   # [8,128] bf16, [8,1] f32

        def lin(w, b, a):
            # relu (bf16, VPU) -> MXU matmul (bf16 operands, f32 accumulate)
            # -> single cast to bf16 + bf16 bias add (VPU).
            acc = jnp.dot(w, jnp.maximum(a, 0), preferred_element_type=f32)
            return acc.astype(bf16) + b

        n_sub = out_ref.shape[-1] // tsub
        # Static unroll over lane sub-chunks: the per-chunk matmul chains are
        # independent, so the LLO scheduler interleaves MXU work of chunk j
        # with the VPU relu/bias/cast work of neighbouring chunks.
        for j in range(n_sub):
            sl = slice(j * tsub, (j + 1) * tsub)
            x = xp_ref[:, sl]                               # [4, tsub] bf16
            # conv1 (2x2, 1->64, K=4): 4 broadcast FMAs on the VPU (bf16).
            h = (b1
                 + w1[:, 0:1] * x[0:1, :]
                 + w1[:, 1:2] * x[1:2, :]
                 + w1[:, 2:3] * x[2:3, :]
                 + w1[:, 3:4] * x[3:4, :])                  # [64, tsub] bf16
            h = lin(w2, b2, h)                              # conv2
            h = lin(w3, b3, h)                              # conv3
            h = lin(w4, b4, h)                              # conv4
            pv = lin(w4pv, b4pv, h)                         # conv4p || conv4v
            pv = lin(w5pv, b5pv, pv)                        # conv5p / conv5v (blkdiag)
            # conv6p / conv6v fused; no relu on the output, f32 logits.
            out = jnp.dot(w6, jnp.maximum(pv, 0),
                          preferred_element_type=f32) + b6
            out_ref[:, sl] = out.astype(out_ref.dtype)
    return kernel


def ppo_heads_pallas(patches_t, params, tn_max=TN_MAX, tsub=TSUB):
    """patches_t: [4, N] float -> (policy [A, N] f32, value [1, N] f32)."""
    Cp, N = patches_t.shape
    A = params['action_n']
    A1p = params['w6'].shape[0]                 # A+1 padded to a multiple of 8

    # Lane tile: power-of-two multiple of 128.  Shrink for small N so the grid
    # keeps >= 2 steps, then round the grid up to an even count so v7x's two
    # TensorCores stay balanced (v5e/v6e just see at worst one cheap pad tile).
    tn = tn_max
    while tn > 128 and pl.cdiv(N, tn) < 2:
        tn //= 2
    tsub = min(tsub, tn)
    grid = pl.cdiv(N, tn)
    grid = max(2, grid + (grid % 2))
    Np = grid * tn

    patches_t = patches_t.astype(jnp.bfloat16)
    if Np != N:
        # Padded tail columns flow through the net as zeros and are sliced off;
        # safe because nothing reduces over the lane axis inside the kernel.
        # TODO(synk): fold this pad into the im2col producer to avoid the extra
        # HBM copy when N is not already a multiple of the tile size.
        patches_t = jnp.pad(patches_t, ((0, 0), (0, Np - N)))

    full = lambda *shape: pl.BlockSpec(shape, lambda i: (0,) * len(shape))
    # TODO(synk): invariant weight specs could use pipeline_mode=pl.Buffered(1)
    # to drop their double buffer (~100 KB VMEM); left at default for safety.
    out = pl.pallas_call(
        _make_ppo_head_kernel(tsub),
        out_shape=jax.ShapeDtypeStruct((A1p, Np), jnp.float32),
        grid=(grid,),
        in_specs=[
            pl.BlockSpec((Cp, tn), lambda i: (0, i)),   # patches (pixels on lanes)
            full(64, 4), full(64, 1),                   # conv1 (VPU path)
            full(3, 64, 64), full(3, 64, 1),            # conv2..conv4
            full(128, 64), full(128, 1),                # conv4p || conv4v
            full(128, 128), full(128, 1),               # conv5p / conv5v block-diag
            full(A1p, 128), full(A1p, 1),               # conv6p / conv6v fused
        ],
        out_specs=pl.BlockSpec((A1p, tn), lambda i: (0, i)),
        compiler_params=pltpu.CompilerParams(
            dimension_semantics=("parallel",),
            vmem_limit_bytes=32 * 1024 * 1024),
    )(patches_t, params['w1'], params['b1'], params['wm'], params['bm'],
      params['w4pv'], params['b4pv'], params['w5pv'], params['b5pv'],
      params['w6'], params['b6'])

    out = out[:, :N]
    return out[:A], out[A:A + 1]


# Pure-JAX mirror of the exact kernel math (same dtypes / fused weights).
def ppo_heads_ref(patches_t, params):
    f32, bf16 = jnp.float32, jnp.bfloat16
    A = params['action_n']
    x = patches_t.astype(bf16)
    w1, b1 = params['w1'], params['b1']
    h = (b1
         + w1[:, 0:1] * x[0:1, :]
         + w1[:, 1:2] * x[1:2, :]
         + w1[:, 2:3] * x[2:3, :]
         + w1[:, 3:4] * x[3:4, :])

    def lin(w, b, a):
        acc = jnp.dot(w, jnp.maximum(a, 0), preferred_element_type=f32)
        return acc.astype(bf16) + b

    h = lin(params['wm'][0], params['bm'][0], h)
    h = lin(params['wm'][1], params['bm'][1], h)
    h = lin(params['wm'][2], params['bm'][2], h)
    pv = lin(params['w4pv'], params['b4pv'], h)
    pv = lin(params['w5pv'], params['b5pv'], pv)
    out = jnp.dot(params['w6'], jnp.maximum(pv, 0),
                  preferred_element_type=f32) + params['b6']
    return out[:A], out[A:A + 1]


# ---------------------------------------------------------------------------
# Full PPO.forward (rotations, reflect pad, im2col, un-rotate, average, softmax)
# ---------------------------------------------------------------------------
def ppo_forward(x, params, heads_fn=ppo_heads_pallas):
    # x: [B, C, H, W] f32 (NCHW, as in PyTorch); only channel 0 is used; H == W.
    B, C, H, W = x.shape
    rots = (1, 2, 3, 0)   # matches (x1, x2, x3, x4) in the PyTorch forward
    all_patches = []
    for k in rots:
        ch0 = jnp.rot90(x[:, 0, :, :], k, axes=(1, 2))                 # [B, H, W]
        ch0 = jnp.pad(ch0, ((0, 0), (0, 1), (0, 1)), mode='reflect')   # [B,H+1,W+1]
        p00 = ch0[:, :H, :W]
        p01 = ch0[:, :H, 1:W + 1]
        p10 = ch0[:, 1:H + 1, :W]
        p11 = ch0[:, 1:H + 1, 1:W + 1]
        all_patches.append(jnp.stack([p00, p01, p10, p11], axis=0))    # [4,B,H,W]
    # channels-first im2col: [4 patch-ch, 4_rot*B*H*W]  (pixel axis lane-dense)
    patches_t = jnp.concatenate(all_patches, axis=1).reshape(4, 4 * B * H * W)

    pol_t, val_t = heads_fn(patches_t, params)            # [A, N], [1, N]
    A = pol_t.shape[0]
    pol = pol_t.reshape(A, 4, B, H, W).transpose(1, 2, 0, 3, 4)   # [4,B,A,H,W]
    val = val_t.reshape(1, 4, B, H, W).transpose(1, 2, 0, 3, 4)   # [4,B,1,H,W]

    pol_sum = jnp.zeros((B, A, H, W), jnp.float32)
    val_sum = jnp.zeros((B, 1, H, W), jnp.float32)
    for idx, k in enumerate(rots):
        pol_sum = pol_sum + jnp.rot90(pol[idx], (4 - k) % 4, axes=(2, 3))
        val_sum = val_sum + jnp.rot90(val[idx], (4 - k) % 4, axes=(2, 3))

    policy = jax.nn.softmax(pol_sum / 4.0, axis=1)
    value = val_sum / 4.0
    return policy, value


# Independent structural reference: direct port of the PyTorch forward with the
# UNFUSED f32 weights (validates reflect pad, rot90 handling, head fusion).
def ppo_forward_unfused_f32(x, raw):
    def conv1x1(w, b, a):                       # w: [O, I], a: [B, I, H, W]
        return jnp.einsum('oi,bihw->bohw', w, a) + b[None, :, None, None]

    def pi_and_v(xp):                           # xp: [B, 1, H+1, W+1]
        h = jax.lax.conv_general_dilated(
            xp, raw['w1'], window_strides=(1, 1), padding='VALID',
            dimension_numbers=('NCHW', 'OIHW', 'NCHW'))
        h = h + raw['b1'][None, :, None, None]
        h = conv1x1(raw['w2'], raw['b2'], jax.nn.relu(h))
        h = conv1x1(raw['w3'], raw['b3'], jax.nn.relu(h))
        h = conv1x1(raw['w4'], raw['b4'], jax.nn.relu(h))
        p = conv1x1(raw['w4p'], raw['b4p'], jax.nn.relu(h))
        p = conv1x1(raw['w5p'], raw['b5p'], jax.nn.relu(p))
        policy = conv1x1(raw['w6p'], raw['b6p'], jax.nn.relu(p))
        v = conv1x1(raw['w4v'], raw['b4v'], jax.nn.relu(h))
        v = conv1x1(raw['w5v'], raw['b5v'], jax.nn.relu(v))
        value = conv1x1(raw['w6v'], raw['b6v'], jax.nn.relu(v))
        return policy, value

    pol_sum, val_sum = None, None
    for k in (1, 2, 3, 0):
        x0 = jnp.rot90(x[:, 0:1, :, :], k, axes=(2, 3))
        xp = jnp.pad(x0, ((0, 0), (0, 0), (0, 1), (0, 1)), mode='reflect')
        p, v = pi_and_v(xp)
        p = jnp.rot90(p, (4 - k) % 4, axes=(2, 3))
        v = jnp.rot90(v, (4 - k) % 4, axes=(2, 3))
        pol_sum = p if pol_sum is None else pol_sum + p
        val_sum = v if val_sum is None else val_sum + v
    return jax.nn.softmax(pol_sum / 4.0, axis=1), val_sum / 4.0


# ---------------------------------------------------------------------------
# Parameter init (kaiming_normal weights, zero biases) + fused kernel layouts
# ---------------------------------------------------------------------------
def fuse_params(raw, action_n):
    f32, bf16 = jnp.float32, jnp.bfloat16
    A1 = action_n + 1
    A1p = ((A1 + 7) // 8) * 8          # pad fused output rows -> unmasked vst

    # conv1: [64,1,2,2] -> [64,4]; row order (kh,kw)=(0,0),(0,1),(1,0),(1,1)
    # matches the im2col patch order in ppo_forward.
    w1 = raw['w1'].reshape(64, 4).astype(bf16)
    b1 = raw['b1'].reshape(64, 1).astype(bf16)

    wm = jnp.stack([raw['w2'], raw['w3'], raw['w4']], 0).astype(bf16)     # [3,64,64]
    bm = jnp.stack([raw['b2'], raw['b3'], raw['b4']], 0).reshape(3, 64, 1).astype(bf16)

    w4pv = jnp.concatenate([raw['w4p'], raw['w4v']], axis=0).astype(bf16)           # [128,64]
    b4pv = jnp.concatenate([raw['b4p'], raw['b4v']]).reshape(128, 1).astype(bf16)

    z64 = jnp.zeros((64, 64), f32)
    w5pv = jnp.concatenate(
        [jnp.concatenate([raw['w5p'], z64], axis=1),
         jnp.concatenate([z64, raw['w5v']], axis=1)], axis=0).astype(bf16)          # [128,128]
    b5pv = jnp.concatenate([raw['b5p'], raw['b5v']]).reshape(128, 1).astype(bf16)

    w6 = jnp.zeros((A1p, 128), f32)
    w6 = w6.at[:action_n, :64].set(raw['w6p'])
    w6 = w6.at[action_n, 64:].set(raw['w6v'][0])
    w6 = w6.astype(bf16)                                                             # [A1p,128]
    b6 = jnp.zeros((A1p, 1), f32)
    b6 = b6.at[:action_n, 0].set(raw['b6p'])
    b6 = b6.at[action_n, 0].set(raw['b6v'][0])

    return dict(action_n=action_n, w1=w1, b1=b1, wm=wm, bm=bm,
                w4pv=w4pv, b4pv=b4pv, w5pv=w5pv, b5pv=b5pv, w6=w6, b6=b6)


def init_params(key, action_n):
    ks = jax.random.split(key, 10)
    f32 = jnp.float32

    def kaiming(k, shape):
        fan_in = shape[1] * shape[2] * shape[3]
        return jax.random.normal(k, shape, f32) * jnp.sqrt(2.0 / fan_in)

    raw = dict(
        w1=kaiming(ks[0], (64, 1, 2, 2)), b1=jnp.zeros((64,), f32),
        w2=kaiming(ks[1], (64, 64, 1, 1)).reshape(64, 64), b2=jnp.zeros((64,), f32),
        w3=kaiming(ks[2], (64, 64, 1, 1)).reshape(64, 64), b3=jnp.zeros((64,), f32),
        w4=kaiming(ks[3], (64, 64, 1, 1)).reshape(64, 64), b4=jnp.zeros((64,), f32),
        w4p=kaiming(ks[4], (64, 64, 1, 1)).reshape(64, 64), b4p=jnp.zeros((64,), f32),
        w5p=kaiming(ks[5], (64, 64, 1, 1)).reshape(64, 64), b5p=jnp.zeros((64,), f32),
        w6p=kaiming(ks[6], (action_n, 64, 1, 1)).reshape(action_n, 64),
        b6p=jnp.zeros((action_n,), f32),
        w4v=kaiming(ks[7], (64, 64, 1, 1)).reshape(64, 64), b4v=jnp.zeros((64,), f32),
        w5v=kaiming(ks[8], (64, 64, 1, 1)).reshape(64, 64), b5v=jnp.zeros((64,), f32),
        w6v=kaiming(ks[9], (1, 64, 1, 1)).reshape(1, 64), b6v=jnp.zeros((1,), f32),
    )
    return raw, fuse_params(raw, action_n)


if __name__ == "__main__":
    key = jax.random.PRNGKey(0)
    kx, kp = jax.random.split(key)
    B, C, H, W = 2, 4, 16, 16
    x = jax.random.normal(kx, (B, C, H, W), jnp.float32)
    raw, fused = init_params(kp, ACTION_N)

    fwd = jax.jit(lambda x: ppo_forward(x, fused, heads_fn=ppo_heads_pallas))
    policy, value = fwd(x)
    jax.block_until_ready((policy, value))
    assert policy.shape == (B, ACTION_N, H, W)
    assert value.shape == (B, 1, H, W)

    # (1) Pallas kernel vs. plain-JAX mirror of the exact fused/bf16 math.
    pol_a, val_a = jax.jit(
        lambda x: ppo_forward(x, fused, heads_fn=ppo_heads_ref))(x)
    assert jnp.allclose(policy, pol_a, rtol=2e-2, atol=2e-2)
    assert jnp.allclose(value, val_a, rtol=2e-2, atol=2e-2)

    # (2) Structural check vs. an unfused, f32, PyTorch-shaped reference
    #     (validates reflect pad / rot90 conventions / block-diagonal fusion;
    #      tolerance budgets the bf16 drift over the 8-layer chain).
    pol_b, val_b = jax.jit(lambda x: ppo_forward_unfused_f32(x, raw))(x)
    assert jnp.allclose(policy, pol_b, atol=5e-2)
    assert jnp.allclose(value, val_b, rtol=5e-2, atol=1e-1)

    print("KERNEL_OK")
</pallas_src>

<mosaic_0001>
module attributes {stable_mosaic.version = 11 : i64} {
  func.func @kernel(%arg0: i32, %arg1: memref<4x1024xbf16, #tpu.memory_space<vmem>>, %arg2: memref<64x4xbf16, #tpu.memory_space<vmem>>, %arg3: memref<64x1xbf16, #tpu.memory_space<vmem>>, %arg4: memref<3x64x64xbf16, #tpu.memory_space<vmem>>, %arg5: memref<3x64x1xbf16, #tpu.memory_space<vmem>>, %arg6: memref<128x64xbf16, #tpu.memory_space<vmem>>, %arg7: memref<128x1xbf16, #tpu.memory_space<vmem>>, %arg8: memref<128x128xbf16, #tpu.memory_space<vmem>>, %arg9: memref<128x1xbf16, #tpu.memory_space<vmem>>, %arg10: memref<8x128xbf16, #tpu.memory_space<vmem>>, %arg11: memref<8x1xf32, #tpu.memory_space<vmem>>, %arg12: memref<8x1024xf32, #tpu.memory_space<vmem>>) attributes {dimension_semantics = [#tpu.dimension_semantics<parallel>], iteration_bounds = array<i64: 2>, scalar_prefetch = 0 : i64, scratch_operands = 0 : i64, tpu.core_type = #tpu.core_type<tc>, window_params = [{transform_indices = @transform_0, window_bounds = array<i64: 4, 1024>}, {pipeline_mode = #tpu.pipeline_mode<synchronous>, transform_indices = @transform_1, window_bounds = array<i64: 64, 4>}, {pipeline_mode = #tpu.pipeline_mode<synchronous>, transform_indices = @transform_2, window_bounds = array<i64: 64, 1>}, {pipeline_mode = #tpu.pipeline_mode<synchronous>, transform_indices = @transform_3, window_bounds = array<i64: 3, 64, 64>}, {pipeline_mode = #tpu.pipeline_mode<synchronous>, transform_indices = @transform_4, window_bounds = array<i64: 3, 64, 1>}, {pipeline_mode = #tpu.pipeline_mode<synchronous>, transform_indices = @transform_5, window_bounds = array<i64: 128, 64>}, {pipeline_mode = #tpu.pipeline_mode<synchronous>, transform_indices = @transform_6, window_bounds = array<i64: 128, 1>}, {pipeline_mode = #tpu.pipeline_mode<synchronous>, transform_indices = @transform_7, window_bounds = array<i64: 128, 128>}, {pipeline_mode = #tpu.pipeline_mode<synchronous>, transform_indices = @transform_8, window_bounds = array<i64: 128, 1>}, {pipeline_mode = #tpu.pipeline_mode<synchronous>, transform_indices = @transform_9, window_bounds = array<i64: 8, 128>}, {pipeline_mode = #tpu.pipeline_mode<synchronous>, transform_indices = @transform_10, window_bounds = array<i64: 8, 1>}, {transform_indices = @transform_11, window_bounds = array<i64: 8, 1024>}]} {
    %c0 = arith.constant 0 : index
    %c0_0 = arith.constant 0 : index
    %0 = vector.load %arg2[%c0, %c0_0] : memref<64x4xbf16, #tpu.memory_space<vmem>>, vector<64x4xbf16>
    %c0_1 = arith.constant 0 : index
    %c0_2 = arith.constant 0 : index
    %1 = vector.load %arg3[%c0_1, %c0_2] : memref<64x1xbf16, #tpu.memory_space<vmem>>, vector<64x1xbf16>
    %c0_3 = arith.constant 0 : index
    %c0_4 = arith.constant 0 : index
    %c0_5 = arith.constant 0 : index
    %2 = vector.load %arg4[%c0_3, %c0_4, %c0_5] : memref<3x64x64xbf16, #tpu.memory_space<vmem>>, vector<1x64x64xbf16>
    %3 = vector.shape_cast %2 : vector<1x64x64xbf16> to vector<64x64xbf16>
    %c1 = arith.constant 1 : index
    %c0_6 = arith.constant 0 : index
    %c0_7 = arith.constant 0 : index
    %4 = vector.load %arg4[%c1, %c0_6, %c0_7] : memref<3x64x64xbf16, #tpu.memory_space<vmem>>, vector<1x64x64xbf16>
    %5 = vector.shape_cast %4 : vector<1x64x64xbf16> to vector<64x64xbf16>
    %c2 = arith.constant 2 : index
    %c0_8 = arith.constant 0 : index
    %c0_9 = arith.constant 0 : index
    %6 = vector.load %arg4[%c2, %c0_8, %c0_9] : memref<3x64x64xbf16, #tpu.memory_space<vmem>>, vector<1x64x64xbf16>
    %7 = vector.shape_cast %6 : vector<1x64x64xbf16> to vector<64x64xbf16>
    %c0_10 = arith.constant 0 : index
    %c0_11 = arith.constant 0 : index
    %c0_12 = arith.constant 0 : index
    %8 = vector.load %arg5[%c0_10, %c0_11, %c0_12] : memref<3x64x1xbf16, #tpu.memory_space<vmem>>, vector<1x64x1xbf16>
    %9 = vector.shape_cast %8 : vector<1x64x1xbf16> to vector<64x1xbf16>
    %c1_13 = arith.constant 1 : index
    %c0_14 = arith.constant 0 : index
    %c0_15 = arith.constant 0 : index
    %10 = vector.load %arg5[%c1_13, %c0_14, %c0_15] : memref<3x64x1xbf16, #tpu.memory_space<vmem>>, vector<1x64x1xbf16>
    %11 = vector.shape_cast %10 : vector<1x64x1xbf16> to vector<64x1xbf16>
    %c2_16 = arith.constant 2 : index
    %c0_17 = arith.constant 0 : index
    %c0_18 = arith.constant 0 : index
    %12 = vector.load %arg5[%c2_16, %c0_17, %c0_18] : memref<3x64x1xbf16, #tpu.memory_space<vmem>>, vector<1x64x1xbf16>
    %13 = vector.shape_cast %12 : vector<1x64x1xbf16> to vector<64x1xbf16>
    %c0_19 = arith.constant 0 : index
    %c0_20 = arith.constant 0 : index
    %14 = vector.load %arg6[%c0_19, %c0_20] : memref<128x64xbf16, #tpu.memory_space<vmem>>, vector<128x64xbf16>
    %c0_21 = arith.constant 0 : index
    %c0_22 = arith.constant 0 : index
    %15 = vector.load %arg7[%c0_21, %c0_22] : memref<128x1xbf16, #tpu.memory_space<vmem>>, vector<128x1xbf16>
    %c0_23 = arith.constant 0 : index
    %c0_24 = arith.constant 0 : index
    %16 = vector.load %arg8[%c0_23, %c0_24] : memref<128x128xbf16, #tpu.memory_space<vmem>>, vector<128x128xbf16>
    %c0_25 = arith.constant 0 : index
    %c0_26 = arith.constant 0 : index
    %17 = vector.load %arg9[%c0_25, %c0_26] : memref<128x1xbf16, #tpu.memory_space<vmem>>, vector<128x1xbf16>
    %c0_27 = arith.constant 0 : index
    %c0_28 = arith.constant 0 : index
    %18 = vector.load %arg10[%c0_27, %c0_28] : memref<8x128xbf16, #tpu.memory_space<vmem>>, vector<8x128xbf16>
    %c0_29 = arith.constant 0 : index
    %c0_30 = arith.constant 0 : index
    %19 = vector.load %arg11[%c0_29, %c0_30] : memref<8x1xf32, #tpu.memory_space<vmem>>, vector<8x1xf32>
    %c0_31 = arith.constant 0 : index
    %c0_32 = arith.constant 0 : index
    %20 = vector.load %arg1[%c0_31, %c0_32] : memref<4x1024xbf16, #tpu.memory_space<vmem>>, vector<4x512xbf16>
    %21 = vector.extract_strided_slice %0 {offsets = [0, 0], sizes = [64, 1], strides = [1, 1]} : vector<64x4xbf16> to vector<64x1xbf16>
    %22 = vector.extract_strided_slice %20 {offsets = [0, 0], sizes = [1, 512], strides = [1, 1]} : vector<4x512xbf16> to vector<1x512xbf16>
    %23 = vector.broadcast %21 : vector<64x1xbf16> to vector<64x512xbf16>
    %24 = vector.broadcast %22 : vector<1x512xbf16> to vector<64x512xbf16>
    %25 = arith.mulf %23, %24 : vector<64x512xbf16>
    %26 = vector.broadcast %1 : vector<64x1xbf16> to vector<64x512xbf16>
    %27 = arith.addf %26, %25 : vector<64x512xbf16>
    %28 = vector.extract_strided_slice %0 {offsets = [0, 1], sizes = [64, 1], strides = [1, 1]} : vector<64x4xbf16> to vector<64x1xbf16>
    %29 = vector.extract_strided_slice %20 {offsets = [1, 0], sizes = [1, 512], strides = [1, 1]} : vector<4x512xbf16> to vector<1x512xbf16>
    %30 = vector.broadcast %28 : vector<64x1xbf16> to vector<64x512xbf16>
    %31 = vector.broadcast %29 : vector<1x512xbf16> to vector<64x512xbf16>
    %32 = arith.mulf %30, %31 : vector<64x512xbf16>
    %33 = arith.addf %27, %32 : vector<64x512xbf16>
    %34 = vector.extract_strided_slice %0 {offsets = [0, 2], sizes = [64, 1], strides = [1, 1]} : vector<64x4xbf16> to vector<64x1xbf16>
    %35 = vector.extract_strided_slice %20 {offsets = [2, 0], sizes = [1, 512], strides = [1, 1]} : vector<4x512xbf16> to vector<1x512xbf16>
    %36 = vector.broadcast %34 : vector<64x1xbf16> to vector<64x512xbf16>
    %37 = vector.broadcast %35 : vector<1x512xbf16> to vector<64x512xbf16>
    %38 = arith.mulf %36, %37 : vector<64x512xbf16>
    %39 = arith.addf %33, %38 : vector<64x512xbf16>
    %40 = vector.extract_strided_slice %0 {offsets = [0, 3], sizes = [64, 1], strides = [1, 1]} : vector<64x4xbf16> to vector<64x1xbf16>
    %41 = vector.extract_strided_slice %20 {offsets = [3, 0], sizes = [1, 512], strides = [1, 1]} : vector<4x512xbf16> to vector<1x512xbf16>
    %42 = vector.broadcast %40 : vector<64x1xbf16> to vector<64x512xbf16>
    %43 = vector.broadcast %41 : vector<1x512xbf16> to vector<64x512xbf16>
    %44 = arith.mulf %42, %43 : vector<64x512xbf16>
    %45 = arith.addf %39, %44 : vector<64x512xbf16>
    %cst = arith.constant 0.000000e+00 : bf16
    %46 = vector.broadcast %cst : bf16 to vector<64x512xbf16>
    %47 = arith.maximumf %45, %46 : vector<64x512xbf16>
    %cst_33 = arith.constant dense<0.000000e+00> : vector<64x512xf32>
    %48 = tpu.matmul %3, %47, %cst_33 {dimension_numbers = #tpu.dot_dimension_numbers<[1], [0], [0], [1], [0, 0, 1, 1], [], []>} : vector<64x64xbf16>, vector<64x512xbf16>, vector<64x512xf32> -> vector<64x512xf32>
    %49 = arith.truncf %48 : vector<64x512xf32> to vector<64x512xbf16>
    %50 = vector.broadcast %9 : vector<64x1xbf16> to vector<64x512xbf16>
    %51 = arith.addf %49, %50 : vector<64x512xbf16>
    %cst_34 = arith.constant 0.000000e+00 : bf16
    %52 = vector.broadcast %cst_34 : bf16 to vector<64x512xbf16>
    %53 = arith.maximumf %51, %52 : vector<64x512xbf16>
    %cst_35 = arith.constant dense<0.000000e+00> : vector<64x512xf32>
    %54 = tpu.matmul %5, %53, %cst_35 {dimension_numbers = #tpu.dot_dimension_numbers<[1], [0], [0], [1], [0, 0, 1, 1], [], []>} : vector<64x64xbf16>, vector<64x512xbf16>, vector<64x512xf32> -> vector<64x512xf32>
    %55 = arith.truncf %54 : vector<64x512xf32> to vector<64x512xbf16>
    %56 = vector.broadcast %11 : vector<64x1xbf16> to vector<64x512xbf16>
    %57 = arith.addf %55, %56 : vector<64x512xbf16>
    %cst_36 = arith.constant 0.000000e+00 : bf16
    %58 = vector.broadcast %cst_36 : bf16 to vector<64x512xbf16>
    %59 = arith.maximumf %57, %58 : vector<64x512xbf16>
    %cst_37 = arith.constant dense<0.000000e+00> : vector<64x512xf32>
    %60 = tpu.matmul %7, %59, %cst_37 {dimension_numbers = #tpu.dot_dimension_numbers<[1], [0], [0], [1], [0, 0, 1, 1], [], []>} : vector<64x64xbf16>, vector<64x512xbf16>, vector<64x512xf32> -> vector<64x512xf32>
    %61 = arith.truncf %60 : vector<64x512xf32> to vector<64x512xbf16>
    %62 = vector.broadcast %13 : vector<64x1xbf16> to vector<64x512xbf16>
    %63 = arith.addf %61, %62 : vector<64x512xbf16>
    %cst_38 = arith.constant 0.000000e+00 : bf16
    %64 = vector.broadcast %cst_38 : bf16 to vector<64x512xbf16>
    %65 = arith.maximumf %63, %64 : vector<64x512xbf16>
    %cst_39 = arith.constant dense<0.000000e+00> : vector<128x512xf32>
    %66 = tpu.matmul %14, %65, %cst_39 {dimension_numbers = #tpu.dot_dimension_numbers<[1], [0], [0], [1], [0, 0, 1, 1], [], []>} : vector<128x64xbf16>, vector<64x512xbf16>, vector<128x512xf32> -> vector<128x512xf32>
    %67 = arith.truncf %66 : vector<128x512xf32> to vector<128x512xbf16>
    %68 = vector.broadcast %15 : vector<128x1xbf16> to vector<128x512xbf16>
    %69 = arith.addf %67, %68 : vector<128x512xbf16>
    %cst_40 = arith.constant 0.000000e+00 : bf16
    %70 = vector.broadcast %cst_40 : bf16 to vector<128x512xbf16>
    %71 = arith.maximumf %69, %70 : vector<128x512xbf16>
    %cst_41 = arith.constant dense<0.000000e+00> : vector<128x512xf32>
    %72 = tpu.matmul %16, %71, %cst_41 {dimension_numbers = #tpu.dot_dimension_numbers<[1], [0], [0], [1], [0, 0, 1, 1], [], []>} : vector<128x128xbf16>, vector<128x512xbf16>, vector<128x512xf32> -> vector<128x512xf32>
    %73 = arith.truncf %72 : vector<128x512xf32> to vector<128x512xbf16>
    %74 = vector.broadcast %17 : vector<128x1xbf16> to vector<128x512xbf16>
    %75 = arith.addf %73, %74 : vector<128x512xbf16>
    %cst_42 = arith.constant 0.000000e+00 : bf16
    %76 = vector.broadcast %cst_42 : bf16 to vector<128x512xbf16>
    %77 = arith.maximumf %75, %76 : vector<128x512xbf16>
    %cst_43 = arith.constant dense<0.000000e+00> : vector<8x512xf32>
    %78 = tpu.matmul %18, %77, %cst_43 {dimension_numbers = #tpu.dot_dimension_numbers<[1], [0], [0], [1], [0, 0, 1, 1], [], []>} : vector<8x128xbf16>, vector<128x512xbf16>, vector<8x512xf32> -> vector<8x512xf32>
    %79 = vector.broadcast %19 : vector<8x1xf32> to vector<8x512xf32>
    %80 = arith.addf %78, %79 : vector<8x512xf32>
    %c0_44 = arith.constant 0 : index
    %c0_45 = arith.constant 0 : index
    %81 = vector.load %arg12[%c0_44, %c0_45] : memref<8x1024xf32, #tpu.memory_space<vmem>>, vector<8x512xf32>
    tpu.vector_store %arg12[%c0_44, %c0_45], %80 {strides = array<i32>} : memref<8x1024xf32, #tpu.memory_space<vmem>>, vector<8x512xf32>,
    %c0_46 = arith.constant 0 : index
    %c512 = arith.constant 512 : index
    %82 = vector.load %arg1[%c0_46, %c512] : memref<4x1024xbf16, #tpu.memory_space<vmem>>, vector<4x512xbf16>
    %83 = vector.extract_strided_slice %0 {offsets = [0, 0], sizes = [64, 1], strides = [1, 1]} : vector<64x4xbf16> to vector<64x1xbf16>
    %84 = vector.extract_strided_slice %82 {offsets = [0, 0], sizes = [1, 512], strides = [1, 1]} : vector<4x512xbf16> to vector<1x512xbf16>
    %85 = vector.broadcast %83 : vector<64x1xbf16> to vector<64x512xbf16>
    %86 = vector.broadcast %84 : vector<1x512xbf16> to vector<64x512xbf16>
    %87 = arith.mulf %85, %86 : vector<64x512xbf16>
    %88 = vector.broadcast %1 : vector<64x1xbf16> to vector<64x512xbf16>
    %89 = arith.addf %88, %87 : vector<64x512xbf16>
    %90 = vector.extract_strided_slice %0 {offsets = [0, 1], sizes = [64, 1], strides = [1, 1]} : vector<64x4xbf16> to vector<64x1xbf16>
    %91 = vector.extract_strided_slice %82 {offsets = [1, 0], sizes = [1, 512], strides = [1, 1]} : vector<4x512xbf16> to vector<1x512xbf16>
    %92 = vector.broadcast %90 : vector<64x1xbf16> to vector<64x512xbf16>
    %93 = vector.broadcast %91 : vector<1x512xbf16> to vector<64x512xbf16>
    %94 = arith.mulf %92, %93 : vector<64x512xbf16>
    %95 = arith.addf %89, %94 : vector<64x512xbf16>
    %96 = vector.extract_strided_slice %0 {offsets = [0, 2], sizes = [64, 1], strides = [1, 1]} : vector<64x4xbf16> to vector<64x1xbf16>
    %97 = vector.extract_strided_slice %82 {offsets = [2, 0], sizes = [1, 512], strides = [1, 1]} : vector<4x512xbf16> to vector<1x512xbf16>
    %98 = vector.broadcast %96 : vector<64x1xbf16> to vector<64x512xbf16>
    %99 = vector.broadcast %97 : vector<1x512xbf16> to vector<64x512xbf16>
    %100 = arith.mulf %98, %99 : vector<64x512xbf16>
    %101 = arith.addf %95, %100 : vector<64x512xbf16>
    %102 = vector.extract_strided_slice %0 {offsets = [0, 3], sizes = [64, 1], strides = [1, 1]} : vector<64x4xbf16> to vector<64x1xbf16>
    %103 = vector.extract_strided_slice %82 {offsets = [3, 0], sizes = [1, 512], strides = [1, 1]} : vector<4x512xbf16> to vector<1x512xbf16>
    %104 = vector.broadcast %102 : vector<64x1xbf16> to vector<64x512xbf16>
    %105 = vector.broadcast %103 : vector<1x512xbf16> to vector<64x512xbf16>
    %106 = arith.mulf %104, %105 : vector<64x512xbf16>
    %107 = arith.addf %101, %106 : vector<64x512xbf16>
    %cst_47 = arith.constant 0.000000e+00 : bf16
    %108 = vector.broadcast %cst_47 : bf16 to vector<64x512xbf16>
    %109 = arith.maximumf %107, %108 : vector<64x512xbf16>
    %cst_48 = arith.constant dense<0.000000e+00> : vector<64x512xf32>
    %110 = tpu.matmul %3, %109, %cst_48 {dimension_numbers = #tpu.dot_dimension_numbers<[1], [0], [0], [1], [0, 0, 1, 1], [], []>} : vector<64x64xbf16>, vector<64x512xbf16>, vector<64x512xf32> -> vector<64x512xf32>
    %111 = arith.truncf %110 : vector<64x512xf32> to vector<64x512xbf16>
    %112 = vector.broadcast %9 : vector<64x1xbf16> to vector<64x512xbf16>
    %113 = arith.addf %111, %112 : vector<64x512xbf16>
    %cst_49 = arith.constant 0.000000e+00 : bf16
    %114 = vector.broadcast %cst_49 : bf16 to vector<64x512xbf16>
    %115 = arith.maximumf %113, %114 : vector<64x512xbf16>
    %cst_50 = arith.constant dense<0.000000e+00> : vector<64x512xf32>
    %116 = tpu.matmul %5, %115, %cst_50 {dimension_numbers = #tpu.dot_dimension_numbers<[1], [0], [0], [1], [0, 0, 1, 1], [], []>} : vector<64x64xbf16>, vector<64x512xbf16>, vector<64x512xf32> -> vector<64x512xf32>
    %117 = arith.truncf %116 : vector<64x512xf32> to vector<64x512xbf16>
    %118 = vector.broadcast %11 : vector<64x1xbf16> to vector<64x512xbf16>
    %119 = arith.addf %117, %118 : vector<64x512xbf16>
    %cst_51 = arith.constant 0.000000e+00 : bf16
    %120 = vector.broadcast %cst_51 : bf16 to vector<64x512xbf16>
    %121 = arith.maximumf %119, %120 : vector<64x512xbf16>
    %cst_52 = arith.constant dense<0.000000e+00> : vector<64x512xf32>
    %122 = tpu.matmul %7, %121, %cst_52 {dimension_numbers = #tpu.dot_dimension_numbers<[1], [0], [0], [1], [0, 0, 1, 1], [], []>} : vector<64x64xbf16>, vector<64x512xbf16>, vector<64x512xf32> -> vector<64x512xf32>
    %123 = arith.truncf %122 : vector<64x512xf32> to vector<64x512xbf16>
    %124 = vector.broadcast %13 : vector<64x1xbf16> to vector<64x512xbf16>
    %125 = arith.addf %123, %124 : vector<64x512xbf16>
    %cst_53 = arith.constant 0.000000e+00 : bf16
    %126 = vector.broadcast %cst_53 : bf16 to vector<64x512xbf16>
    %127 = arith.maximumf %125, %126 : vector<64x512xbf16>
    %cst_54 = arith.constant dense<0.000000e+00> : vector<128x512xf32>
    %128 = tpu.matmul %14, %127, %cst_54 {dimension_numbers = #tpu.dot_dimension_numbers<[1], [0], [0], [1], [0, 0, 1, 1], [], []>} : vector<128x64xbf16>, vector<64x512xbf16>, vector<128x512xf32> -> vector<128x512xf32>
    %129 = arith.truncf %128 : vector<128x512xf32> to vector<128x512xbf16>
    %130 = vector.broadcast %15 : vector<128x1xbf16> to vector<128x512xbf16>
    %131 = arith.addf %129, %130 : vector<128x512xbf16>
    %cst_55 = arith.constant 0.000000e+00 : bf16
    %132 = vector.broadcast %cst_55 : bf16 to vector<128x512xbf16>
    %133 = arith.maximumf %131, %132 : vector<128x512xbf16>
    %cst_56 = arith.constant dense<0.000000e+00> : vector<128x512xf32>
    %134 = tpu.matmul %16, %133, %cst_56 {dimension_numbers = #tpu.dot_dimension_numbers<[1], [0], [0], [1], [0, 0, 1, 1], [], []>} : vector<128x128xbf16>, vector<128x512xbf16>, vector<128x512xf32> -> vector<128x512xf32>
    %135 = arith.truncf %134 : vector<128x512xf32> to vector<128x512xbf16>
    %136 = vector.broadcast %17 : vector<128x1xbf16> to vector<128x512xbf16>
    %137 = arith.addf %135, %136 : vector<128x512xbf16>
    %cst_57 = arith.constant 0.000000e+00 : bf16
    %138 = vector.broadcast %cst_57 : bf16 to vector<128x512xbf16>
    %139 = arith.maximumf %137, %138 : vector<128x512xbf16>
    %cst_58 = arith.constant dense<0.000000e+00> : vector<8x512xf32>
    %140 = tpu.matmul %18, %139, %cst_58 {dimension_numbers = #tpu.dot_dimension_numbers<[1], [0], [0], [1], [0, 0, 1, 1], [], []>} : vector<8x128xbf16>, vector<128x512xbf16>, vector<8x512xf32> -> vector<8x512xf32>
    %141 = vector.broadcast %19 : vector<8x1xf32> to vector<8x512xf32>
    %142 = arith.addf %140, %141 : vector<8x512xf32>
    %c0_59 = arith.constant 0 : index
    %c512_60 = arith.constant 512 : index
    %143 = vector.load %arg12[%c0_59, %c512_60] : memref<8x1024xf32, #tpu.memory_space<vmem>>, vector<8x512xf32>
    tpu.vector_store %arg12[%c0_59, %c512_60], %142 {strides = array<i32>} : memref<8x1024xf32, #tpu.memory_space<vmem>>, vector<8x512xf32>,
    return
  }
  func.func @transform_0(%arg0: i32) -> (i32, i32) {
    %c0_i32 = arith.constant 0 : i32
    %c0_i32_0 = arith.constant 0 : i32
    return %c0_i32, %arg0 : i32, i32
  }
  func.func @transform_1(%arg0: i32) -> (i32, i32) {
    %c0_i32 = arith.constant 0 : i32
    %c0_i32_0 = arith.constant 0 : i32
    %c0_i32_1 = arith.constant 0 : i32
    return %c0_i32, %c0_i32_0 : i32, i32
  }
  func.func @transform_2(%arg0: i32) -> (i32, i32) {
    %c0_i32 = arith.constant 0 : i32
    %c0_i32_0 = arith.constant 0 : i32
    %c0_i32_1 = arith.constant 0 : i32
    return %c0_i32, %c0_i32_0 : i32, i32
  }
  func.func @transform_3(%arg0: i32) -> (i32, i32, i32) {
    %c0_i32 = arith.constant 0 : i32
    %c0_i32_0 = arith.constant 0 : i32
    %c0_i32_1 = arith.constant 0 : i32
    %c0_i32_2 = arith.constant 0 : i32
    return %c0_i32, %c0_i32_0, %c0_i32_1 : i32, i32, i32
  }
  func.func @transform_4(%arg0: i32) -> (i32, i32, i32) {
    %c0_i32 = arith.constant 0 : i32
    %c0_i32_0 = arith.constant 0 : i32
    %c0_i32_1 = arith.constant 0 : i32
    %c0_i32_2 = arith.constant 0 : i32
    return %c0_i32, %c0_i32_0, %c0_i32_1 : i32, i32, i32
  }
  func.func @transform_5(%arg0: i32) -> (i32, i32) {
    %c0_i32 = arith.constant 0 : i32
    %c0_i32_0 = arith.constant 0 : i32
    %c0_i32_1 = arith.constant 0 : i32
    return %c0_i32, %c0_i32_0 : i32, i32
  }
  func.func @transform_6(%arg0: i32) -> (i32, i32) {
    %c0_i32 = arith.constant 0 : i32
    %c0_i32_0 = arith.constant 0 : i32
    %c0_i32_1 = arith.constant 0 : i32
    return %c0_i32, %c0_i32_0 : i32, i32
  }
  func.func @transform_7(%arg0: i32) -> (i32, i32) {
    %c0_i32 = arith.constant 0 : i32
    %c0_i32_0 = arith.constant 0 : i32
    %c0_i32_1 = arith.constant 0 : i32
    return %c0_i32, %c0_i32_0 : i32, i32
  }
  func.func @transform_8(%arg0: i32) -> (i32, i32) {
    %c0_i32 = arith.constant 0 : i32
    %c0_i32_0 = arith.constant 0 : i32
    %c0_i32_1 = arith.constant 0 : i32
    return %c0_i32, %c0_i32_0 : i32, i32
  }
  func.func @transform_9(%arg0: i32) -> (i32, i32) {
    %c0_i32 = arith.constant 0 : i32
    %c0_i32_0 = arith.constant 0 : i32
    %c0_i32_1 = arith.constant 0 : i32
    return %c0_i32, %c0_i32_0 : i32, i32
  }
  func.func @transform_10(%arg0: i32) -> (i32, i32) {
    %c0_i32 = arith.constant 0 : i32
    %c0_i32_0 = arith.constant 0 : i32
    %c0_i32_1 = arith.constant 0 : i32
    return %c0_i32, %c0_i32_0 : i32, i32
  }
  func.func @transform_11(%arg0: i32) -> (i32, i32) {
    %c0_i32 = arith.constant 0 : i32
    %c0_i32_0 = arith.constant 0 : i32
    return %c0_i32, %arg0 : i32, i32
  }
}

</mosaic_0001>

<llo_original>
// kernel: reverse.1
$region0: #{reverse.1}
  %s0 = inlined_call_operand.vmem [shape: bf16[2,1,16], index: 0, kind: input, shape index: {}]
  %s1 = inlined_call_operand.vmem [shape: bf16[2,1,16], index: 1, kind: output, shape index: {}]
  %v2 = vlaneseq
  %v3 = vsub.s32 15, %v2
  %4 = vset.pattern.permute.xlu0 %v3
  $region1: #{reverse.1} parent=0
    #allocation0 [shape = 'u8[16384]{0}', space=vmem, size = 0x4000, scoped, tag = 'operand span for operand 0']
    #allocation1 [shape = 'u8[2048]{0}', space=vmem, size = 0x800, scoped, tag = 'packed  for operand 0']
    #allocation2 [shape = 'u8[8192]{0}', space=vmem, size = 0x2000, scoped, tag = 'operand span for operand 1']
    #allocation3 [shape = 'u8[1024]{0}', space=vmem, size = 0x400, scoped, tag = 'packed  for operand 1']
    %s5 = scalar_lea.vmem [#allocation1], 1
    // Predicated region
    $region2: #{reverse.1} parent=1 // pred_check
      _
    $region3: #{reverse.1} parent=1 // pred_check_branch
      %7 = sbr.rel (0) target = $region5
    $region4: #{reverse.1} parent=1 // pred_region
      // Predicated region
      $region6: #{reverse.1} parent=4 // pred_check
        _
      $region7: #{reverse.1} parent=4 // pred_check_branch
        %9 = sbr.rel target = $region9
      $region8: #{reverse.1} parent=4 // pred_region
        // Predicated region
        $region21: #{reverse.1} parent=8 // pred_check
          _
        $region22: #{reverse.1} parent=8 // pred_check_branch
          %26 = sbr.rel (0) target = $region24
        $region23: #{reverse.1} parent=8 // pred_region
          loop: start=0, step=1, limit=1
          $region25: #{reverse.1} parent=23 // loop_pre_header
            _
          $region26: #{reverse.1} parent=23 // loop_header
            %s29 = sphi 0, %s33
            %p30 = scmp.ge.s32.totalorder %s29, 1
            %s34 = sphi %s0, %s0
            %s35 = sphi %s5, %s5
          $region27: #{reverse.1} parent=23 // loop_header_branch
            %32 = sbr.rel (%p30) target = $region31
          $region28: #{reverse.1} parent=23 // loop_body
            %v36 = vld [vmem:[%s34] sm:$0x1]
            %37 = vst [vmem:[%s35] sm:$0x1] %v36
            %v38 = vld [vmem:[%s34 + $0x1] sm:$0x1]
            %39 = vst [vmem:[%s35 + $0x2] sm:$0x1] %v38
          $region29: #{reverse.1} parent=23 // loop_footer
            %s33 = sadd.s32 1, %s29
          $region30: #{reverse.1} parent=23 // loop_footer_branch
            %28 = sbr.rel target = $region26
          $region31: #{reverse.1} parent=23 // loop_exit
            _
        $region24: #{reverse.1} parent=8 // pred_fallthru
          _
      $region9: #{reverse.1} parent=4 // pred_fallthru
        _
      // Predicated region
      $region10: #{reverse.1} parent=4 // pred_check
        _
      $region11: #{reverse.1} parent=4 // pred_check_branch
        %11 = sbr.rel (0) target = $region13
      $region12: #{reverse.1} parent=4 // pred_region
        loop: start=0, step=1, limit=1
        $region14: #{reverse.1} parent=12 // loop_pre_header
          _
        $region15: #{reverse.1} parent=12 // loop_header
          %s14 = sphi 0, %s18
          %p15 = scmp.ge.s32.totalorder %s14, 1
          %s19 = sphi %s0, %s0
          %s20 = sphi %s5, %s5
        $region16: #{reverse.1} parent=12 // loop_header_branch
          %17 = sbr.rel (%p15) target = $region20
        $region17: #{reverse.1} parent=12 // loop_body
          %v21 = vld [vmem:[%s19] sm:$0x1]
          %22 = vst [vmem:[%s20] sm:$0x1] %v21
          %v23 = vld [vmem:[%s19 + $0x1] sm:$0x1]
          %24 = vst [vmem:[%s20 + $0x2] sm:$0x1] %v23
        $region18: #{reverse.1} parent=12 // loop_footer
          %s18 = sadd.s32 1, %s14
        $region19: #{reverse.1} parent=12 // loop_footer_branch
          %13 = sbr.rel target = $region15
        $region20: #{reverse.1} parent=12 // loop_exit
          _
      $region13: #{reverse.1} parent=4 // pred_fallthru
        _
    $region5: #{reverse.1} parent=1 // pred_fallthru
      _
    %40 = vnop
    %s42 = smul.u32 1, 2
    %s43 = sshllo.u32 0, %s42
    %s44 = smul.addr 1, 3
    %s45 = scalar_lea.vmem [#allocation1], %s44
    %s46 = sshrl.u32 %s43, 1
    %s47 = sor.u32 %s43, %s46
    %s48 = sand.u32 %s47, 85
    %s49 = sshrl.u32 %s48, 1
    %s50 = sor.u32 %s48, %s49
    %s51 = sand.u32 51, %s50
    %s52 = sshrl.u32 %s51, 2
    %s53 = sor.u32 %s51, %s52
    %s54 = sand.u32 15, %s53
    %v55 = vld [vmem:[%s45] sm:%s54]
    %v56 = vunpack.c.l.bf16 %v55
    %v57 = vunpack.c.h.bf16 %v55
    %s58 = scalar_lea.vmem [#allocation0], 24
    %59 = vst [vmem:[%s58] sm:%s43] %v56
    %s60 = smul.addr 1, 2
    %s61 = scalar_lea.vmem [#allocation1], %s60
    %s62 = sshrl.u32 %s43, 1
    %s63 = sor.u32 %s43, %s62
    %s64 = sand.u32 %s63, 85
    %s65 = sshrl.u32 %s64, 1
    %s66 = sor.u32 %s64, %s65
    %s67 = sand.u32 51, %s66
    %s68 = sshrl.u32 %s67, 2
    %s69 = sor.u32 %s67, %s68
    %s70 = sand.u32 15, %s69
    %v71 = vld [vmem:[%s61] sm:%s70]
    %v72 = vunpack.c.l.bf16 %v71
    %v73 = vunpack.c.h.bf16 %v71
    %s74 = scalar_lea.vmem [#allocation0], 16
    %75 = vst [vmem:[%s74] sm:%s43] %v72
    %s76 = scalar_lea.vmem [#allocation1], 1
    %s77 = sshrl.u32 %s43, 1
    %s78 = sor.u32 %s43, %s77
    %s79 = sand.u32 %s78, 85
    %s80 = sshrl.u32 %s79, 1
    %s81 = sor.u32 %s79, %s80
    %s82 = sand.u32 51, %s81
    %s83 = sshrl.u32 %s82, 2
    %s84 = sor.u32 %s82, %s83
    %s85 = sand.u32 15, %s84
    %v86 = vld [vmem:[%s76] sm:%s85]
    %v87 = vunpack.c.l.bf16 %v86
    %v88 = vunpack.c.h.bf16 %v86
    %s89 = scalar_lea.vmem [#allocation0], 8
    %90 = vst [vmem:[%s89] sm:%s43] %v87
    %s91 = sshrl.u32 %s43, 1
    %s92 = sor.u32 %s43, %s91
    %s93 = sand.u32 %s92, 85
    %s94 = sshrl.u32 %s93, 1
    %s95 = sor.u32 %s93, %s94
    %s96 = sand.u32 51, %s95
    %s97 = sshrl.u32 %s96, 2
    %s98 = sor.u32 %s96, %s97
    %s99 = sand.u32 15, %s98
    %v100 = vld [vmem:[#allocation1] sm:%s99]
    %v101 = vunpack.c.l.bf16 %v100
    %v102 = vunpack.c.h.bf16 %v100
    %103 = vst [vmem:[#allocation0] sm:%s43] %v101
    %s104 = scalar_lea.vmem [#allocation0], 7
    %v105 = vld [vmem:[%s104] ss:$-1 sm:$0xff]
    %v106 = vrot.slane %v105, 7
    %107 = vperm.xlu0 %4, %v106
    %v108 = vpop.permute.xlu0 %107
    %109 = vst [vmem:[#allocation2] sm:$0xff] %v108
    %s110 = scalar_lea.vmem [#allocation0], 8
    %s111 = scalar_lea.vmem %s110, 7 [#allocation0]
    %v112 = vld [vmem:[%s111] ss:$-1 sm:$0xff]
    %v113 = vrot.slane %v112, 7
    %114 = vperm.xlu0 %4, %v113
    %v115 = vpop.permute.xlu0 %114
    %v116 = vlaneseq
    %v117 = vshrl.u32 %v116, 7
    %vm118 = vcmp.lt.s32.totalorder %v117, 1
    %119 = vst.msk [vmem:[#allocation2] sm:$0xff] %vm118, %v115
    %s120 = scalar_lea.vmem [#allocation2], 8
    %s121 = scalar_lea.vmem [#allocation0], 16
    %s122 = scalar_lea.vmem %s121, 7 [#allocation0]
    %v123 = vld [vmem:[%s122] ss:$-1 sm:$0xff]
    %v124 = vrot.slane %v123, 7
    %125 = vperm.xlu0 %4, %v124
    %v126 = vpop.permute.xlu0 %125
    %127 = vst [vmem:[%s120] sm:$0xff] %v126
    %s128 = scalar_lea.vmem %s121, 8 [#allocation0]
    %s129 = scalar_lea.vmem %s128, 7 [#allocation0]
    %v130 = vld [vmem:[%s129] ss:$-1 sm:$0xff]
    %v131 = vrot.slane %v130, 7
    %132 = vperm.xlu0 %4, %v131
    %v133 = vpop.permute.xlu0 %132
    %v134 = vlaneseq
    %v135 = vshrl.u32 %v134, 7
    %vm136 = vcmp.lt.s32.totalorder %v135, 1
    %137 = vst.msk [vmem:[%s120] sm:$0xff] %vm136, %v133
    %s139 = smul.u32 1, 2
    %s140 = sshllo.u32 0, %s139
    %s141 = sshrl.u32 %s139, 1
    %v142 = vld [vmem:[#allocation2] sm:%s140]
    %v143 = vpack.c.bf16 0.0, %v142
    %s144 = sshllo.u32 0, %s141
    %145 = vst [vmem:[#allocation3] sm:%s144] %v143
    %s146 = scalar_lea.vmem [#allocation2], 8
    %v147 = vld [vmem:[%s146] sm:%s140]
    %v148 = vpack.c.bf16 0.0, %v147
    %s149 = sshllo.u32 0, %s141
    %s150 = scalar_lea.vmem [#allocation3], 1
    %151 = vst [vmem:[%s150] sm:%s149] %v148
    // Predicated region
    $region32: #{reverse.1} parent=1 // pred_check
      _
    $region33: #{reverse.1} parent=1 // pred_check_branch
      %153 = sbr.rel (0) target = $region35
    $region34: #{reverse.1} parent=1 // pred_region
      // Predicated region
      $region36: #{reverse.1} parent=34 // pred_check
        _
      $region37: #{reverse.1} parent=34 // pred_check_branch
        %155 = sbr.rel target = $region39
      $region38: #{reverse.1} parent=34 // pred_region
        // Predicated region
        $region51: #{reverse.1} parent=38 // pred_check
          _
        $region52: #{reverse.1} parent=38 // pred_check_branch
          %170 = sbr.rel (0) target = $region54
        $region53: #{reverse.1} parent=38 // pred_region
          loop: start=0, step=1, limit=1
          $region55: #{reverse.1} parent=53 // loop_pre_header
            _
          $region56: #{reverse.1} parent=53 // loop_header
            %s173 = sphi 0, %s177
            %p174 = scmp.ge.s32.totalorder %s173, 1
            %s178 = sphi [#allocation3], [#allocation3]
            %s179 = sphi %s1, %s1
          $region57: #{reverse.1} parent=53 // loop_header_branch
            %176 = sbr.rel (%p174) target = $region61
          $region58: #{reverse.1} parent=53 // loop_body
            %v180 = vld [vmem:[%s178] sm:$0x3]
            %181 = vst [vmem:[%s179] sm:$0x3] %v180
          $region59: #{reverse.1} parent=53 // loop_footer
            %s177 = sadd.s32 1, %s173
          $region60: #{reverse.1} parent=53 // loop_footer_branch
            %172 = sbr.rel target = $region56
          $region61: #{reverse.1} parent=53 // loop_exit
            _
        $region54: #{reverse.1} parent=38 // pred_fallthru
          _
      $region39: #{reverse.1} parent=34 // pred_fallthru
        _
      // Predicated region
      $region40: #{reverse.1} parent=34 // pred_check
        _
      $region41: #{reverse.1} parent=34 // pred_check_branch
        %157 = sbr.rel (0) target = $region43
      $region42: #{reverse.1} parent=34 // pred_region
        loop: start=0, step=1, limit=1
        $region44: #{reverse.1} parent=42 // loop_pre_header
          _
        $region45: #{reverse.1} parent=42 // loop_header
          %s160 = sphi 0, %s164
          %p161 = scmp.ge.s32.totalorder %s160, 1
          %s165 = sphi [#allocation3], [#allocation3]
          %s166 = sphi %s1, %s1
        $region46: #{reverse.1} parent=42 // loop_header_branch
          %163 = sbr.rel (%p161) target = $region50
        $region47: #{reverse.1} parent=42 // loop_body
          %v167 = vld [vmem:[%s165] sm:$0x3]
          %168 = vst [vmem:[%s166] sm:$0x3] %v167
        $region48: #{reverse.1} parent=42 // loop_footer
          %s164 = sadd.s32 1, %s160
        $region49: #{reverse.1} parent=42 // loop_footer_branch
          %159 = sbr.rel target = $region45
        $region50: #{reverse.1} parent=42 // loop_exit
          _
      $region43: #{reverse.1} parent=34 // pred_fallthru
        _
    $region35: #{reverse.1} parent=1 // pred_fallthru
      _
    %182 = vnop

// kernel: reverse.2
$region0: #{reverse.2}
  %s0 = inlined_call_operand.vmem [shape: bf16[2,1,16], index: 0, kind: input, shape index: {}]
  %s1 = inlined_call_operand.vmem [shape: bf16[2,1,16], index: 1, kind: output, shape index: {}]
  %v2 = vlaneseq
  %v3 = vsub.s32 15, %v2
  %4 = vset.pattern.permute.xlu0 %v3
  $region1: #{reverse.2} parent=0
    #allocation0 [shape = 'u8[8192]{0}', space=vmem, size = 0x2000, scoped, tag = 'operand span for operand 0']
    #allocation1 [shape = 'u8[1024]{0}', space=vmem, size = 0x400, scoped, tag = 'packed  for operand 0']
    #allocation2 [shape = 'u8[8192]{0}', space=vmem, size = 0x2000, scoped, tag = 'operand span for operand 1']
    #allocation3 [shape = 'u8[1024]{0}', space=vmem, size = 0x400, scoped, tag = 'packed  for operand 1']
    // Predicated region
    $region2: #{reverse.2} parent=1 // pred_check
      _
    $region3: #{reverse.2} parent=1 // pred_check_branch
      %6 = sbr.rel (0) target = $region5
    $region4: #{reverse.2} parent=1 // pred_region
      // Predicated region
      $region6: #{reverse.2} parent=4 // pred_check
        _
      $region7: #{reverse.2} parent=4 // pred_check_branch
        %8 = sbr.rel target = $region9
      $region8: #{reverse.2} parent=4 // pred_region
        // Predicated region
        $region21: #{reverse.2} parent=8 // pred_check
          _
        $region22: #{reverse.2} parent=8 // pred_check_branch
          %23 = sbr.rel (0) target = $region24
        $region23: #{reverse.2} parent=8 // pred_region
          loop: start=0, step=1, limit=1
          $region25: #{reverse.2} parent=23 // loop_pre_header
            _
          $region26: #{reverse.2} parent=23 // loop_header
            %s26 = sphi 0, %s30
            %p27 = scmp.ge.s32.totalorder %s26, 1
            %s31 = sphi %s0, %s0
            %s32 = sphi [#allocation1], [#allocation1]
          $region27: #{reverse.2} parent=23 // loop_header_branch
            %29 = sbr.rel (%p27) target = $region31
          $region28: #{reverse.2} parent=23 // loop_body
            %v33 = vld [vmem:[%s31] sm:$0x3]
            %34 = vst [vmem:[%s32] sm:$0x3] %v33
          $region29: #{reverse.2} parent=23 // loop_footer
            %s30 = sadd.s32 1, %s26
          $region30: #{reverse.2} parent=23 // loop_footer_branch
            %25 = sbr.rel target = $region26
          $region31: #{reverse.2} parent=23 // loop_exit
            _
        $region24: #{reverse.2} parent=8 // pred_fallthru
          _
      $region9: #{reverse.2} parent=4 // pred_fallthru
        _
      // Predicated region
      $region10: #{reverse.2} parent=4 // pred_check
        _
      $region11: #{reverse.2} parent=4 // pred_check_branch
        %10 = sbr.rel (0) target = $region13
      $region12: #{reverse.2} parent=4 // pred_region
        loop: start=0, step=1, limit=1
        $region14: #{reverse.2} parent=12 // loop_pre_header
          _
        $region15: #{reverse.2} parent=12 // loop_header
          %s13 = sphi 0, %s17
          %p14 = scmp.ge.s32.totalorder %s13, 1
          %s18 = sphi %s0, %s0
          %s19 = sphi [#allocation1], [#allocation1]
        $region16: #{reverse.2} parent=12 // loop_header_branch
          %16 = sbr.rel (%p14) target = $region20
        $region17: #{reverse.2} parent=12 // loop_body
          %v20 = vld [vmem:[%s18] sm:$0x3]
          %21 = vst [vmem:[%s19] sm:$0x3] %v20
        $region18: #{reverse.2} parent=12 // loop_footer
          %s17 = sadd.s32 1, %s13
        $region19: #{reverse.2} parent=12 // loop_footer_branch
          %12 = sbr.rel target = $region15
        $region20: #{reverse.2} parent=12 // loop_exit
          _
      $region13: #{reverse.2} parent=4 // pred_fallthru
        _
    $region5: #{reverse.2} parent=1 // pred_fallthru
      _
    %35 = vnop
    %s37 = smul.u32 1, 2
    %s38 = sshllo.u32 0, %s37
    %s39 = scalar_lea.vmem [#allocation1], 1
    %s40 = sshrl.u32 %s38, 1
    %s41 = sor.u32 %s38, %s40
    %s42 = sand.u32 %s41, 85
    %s43 = sshrl.u32 %s42, 1
    %s44 = sor.u32 %s42, %s43
    %s45 = sand.u32 51, %s44
    %s46 = sshrl.u32 %s45, 2
    %s47 = sor.u32 %s45, %s46
    %s48 = sand.u32 15, %s47
    %v49 = vld [vmem:[%s39] sm:%s48]
    %v50 = vunpack.c.l.bf16 %v49
    %v51 = vunpack.c.h.bf16 %v49
    %s52 = scalar_lea.vmem [#allocation0], 8
    %53 = vst [vmem:[%s52] sm:%s38] %v50
    %s54 = sshrl.u32 %s38, 1
    %s55 = sor.u32 %s38, %s54
    %s56 = sand.u32 %s55, 85
    %s57 = sshrl.u32 %s56, 1
    %s58 = sor.u32 %s56, %s57
    %s59 = sand.u32 51, %s58
    %s60 = sshrl.u32 %s59, 2
    %s61 = sor.u32 %s59, %s60
    %s62 = sand.u32 15, %s61
    %v63 = vld [vmem:[#allocation1] sm:%s62]
    %v64 = vunpack.c.l.bf16 %v63
    %v65 = vunpack.c.h.bf16 %v63
    %66 = vst [vmem:[#allocation0] sm:%s38] %v64
    %v67 = vld [vmem:[#allocation0] sm:$0xff]
    %68 = vperm.xlu0 %4, %v67
    %v69 = vpop.permute.xlu0 %68
    %70 = vst [vmem:[#allocation2] sm:$0xff] %v69
    %s71 = scalar_lea.vmem [#allocation2], 8
    %s72 = scalar_lea.vmem [#allocation0], 8
    %v73 = vld [vmem:[%s72] sm:$0xff]
    %74 = vperm.xlu0 %4, %v73
    %v75 = vpop.permute.xlu0 %74
    %76 = vst [vmem:[%s71] sm:$0xff] %v75
    %s78 = smul.u32 1, 2
    %s79 = sshllo.u32 0, %s78
    %s80 = sshrl.u32 %s78, 1
    %v81 = vld [vmem:[#allocation2] sm:%s79]
    %v82 = vpack.c.bf16 0.0, %v81
    %s83 = sshllo.u32 0, %s80
    %84 = vst [vmem:[#allocation3] sm:%s83] %v82
    %s85 = scalar_lea.vmem [#allocation2], 8
    %v86 = vld [vmem:[%s85] sm:%s79]
    %v87 = vpack.c.bf16 0.0, %v86
    %s88 = sshllo.u32 0, %s80
    %s89 = scalar_lea.vmem [#allocation3], 1
    %90 = vst [vmem:[%s89] sm:%s88] %v87
    // Predicated region
    $region32: #{reverse.2} parent=1 // pred_check
      _
    $region33: #{reverse.2} parent=1 // pred_check_branch
      %92 = sbr.rel (0) target = $region35
    $region34: #{reverse.2} parent=1 // pred_region
      // Predicated region
      $region36: #{reverse.2} parent=34 // pred_check
        _
      $region37: #{reverse.2} parent=34 // pred_check_branch
        %94 = sbr.rel target = $region39
      $region38: #{reverse.2} parent=34 // pred_region
        // Predicated region
        $region51: #{reverse.2} parent=38 // pred_check
          _
        $region52: #{reverse.2} parent=38 // pred_check_branch
          %109 = sbr.rel (0) target = $region54
        $region53: #{reverse.2} parent=38 // pred_region
          loop: start=0, step=1, limit=1
          $region55: #{reverse.2} parent=53 // loop_pre_header
            _
          $region56: #{reverse.2} parent=53 // loop_header
            %s112 = sphi 0, %s116
            %p113 = scmp.ge.s32.totalorder %s112, 1
            %s117 = sphi [#allocation3], [#allocation3]
            %s118 = sphi %s1, %s1
          $region57: #{reverse.2} parent=53 // loop_header_branch
            %115 = sbr.rel (%p113) target = $region61
          $region58: #{reverse.2} parent=53 // loop_body
            %v119 = vld [vmem:[%s117] sm:$0x3]
            %120 = vst [vmem:[%s118] sm:$0x3] %v119
          $region59: #{reverse.2} parent=53 // loop_footer
            %s116 = sadd.s32 1, %s112
          $region60: #{reverse.2} parent=53 // loop_footer_branch
            %111 = sbr.rel target = $region56
          $region61: #{reverse.2} parent=53 // loop_exit
            _
        $region54: #{reverse.2} parent=38 // pred_fallthru
          _
      $region39: #{reverse.2} parent=34 // pred_fallthru
        _
      // Predicated region
      $region40: #{reverse.2} parent=34 // pred_check
        _
      $region41: #{reverse.2} parent=34 // pred_check_branch
        %96 = sbr.rel (0) target = $region43
      $region42: #{reverse.2} parent=34 // pred_region
        loop: start=0, step=1, limit=1
        $region44: #{reverse.2} parent=42 // loop_pre_header
          _
        $region45: #{reverse.2} parent=42 // loop_header
          %s99 = sphi 0, %s103
          %p100 = scmp.ge.s32.totalorder %s99, 1
          %s104 = sphi [#allocation3], [#allocation3]
          %s105 = sphi %s1, %s1
        $region46: #{reverse.2} parent=42 // loop_header_branch
          %102 = sbr.rel (%p100) target = $region50
        $region47: #{reverse.2} parent=42 // loop_body
          %v106 = vld [vmem:[%s104] sm:$0x3]
          %107 = vst [vmem:[%s105] sm:$0x3] %v106
        $region48: #{reverse.2} parent=42 // loop_footer
          %s103 = sadd.s32 1, %s99
        $region49: #{reverse.2} parent=42 // loop_footer_branch
          %98 = sbr.rel target = $region45
        $region50: #{reverse.2} parent=42 // loop_exit
          _
      $region43: #{reverse.2} parent=34 // pred_fallthru
        _
    $region35: #{reverse.2} parent=1 // pred_fallthru
      _
    %121 = vnop

// kernel: squeeze.17
$region0: #{squeeze.17}
  %s0 = inlined_call_operand.vmem [shape: f32[512], index: 0, kind: input, shape index: {}]
  %s1 = inlined_call_operand.vmem [shape: f32[2,1,16,16], index: 1, kind: output, shape index: {}]
  $region1: #{squeeze.17} parent=0
    #allocation0 [shape = 'u8[4096]{0}', space=vmem, size = 0x1000, scoped, tag = 'scoped mem for input reshape']
    %s3 = sshllo.u32 0, 4
    %v4 = vld [vmem:[%s0] sm:%s3]
    %5 = vst [vmem:[#allocation0] sm:%s3] %v4
    %v6 = vld [vmem:[#allocation0] sm:$0xf]
    %vm7 = vcmask 130048
    %8 = vst.msk [vmem:[%s1] ss:$8 sm:$0xf] %vm7, %v6
    %v9 = vld [vmem:[#allocation0] sm:$0xf]
    %10 = vrot.lane.b32.xlu0 %v9, 112
    %v11 = vpop.permute.xlu0 %10
    %vm12 = vcmask 130048
    %s13 = scalar_lea.vmem %s1, 1
    %14 = vst.msk [vmem:[%s13] ss:$8 sm:$0xf] %vm12, %v11
    %v15 = vld [vmem:[#allocation0] sm:$0xf]
    %16 = vrot.lane.b32.xlu0 %v15, 96
    %v17 = vpop.permute.xlu0 %16
    %vm18 = vcmask 130048
    %s19 = scalar_lea.vmem %s1, 2
    %20 = vst.msk [vmem:[%s19] ss:$8 sm:$0xf] %vm18, %v17
    %v21 = vld [vmem:[#allocation0] sm:$0xf]
    %22 = vrot.lane.b32.xlu0 %v21, 80
    %v23 = vpop.permute.xlu0 %22
    %vm24 = vcmask 130048
    %s25 = scalar_lea.vmem %s1, 3
    %26 = vst.msk [vmem:[%s25] ss:$8 sm:$0xf] %vm24, %v23
    %v27 = vld [vmem:[#allocation0] sm:$0xf]
    %28 = vrot.lane.b32.xlu0 %v27, 64
    %v29 = vpop.permute.xlu0 %28
    %vm30 = vcmask 130048
    %s31 = scalar_lea.vmem %s1, 4
    %32 = vst.msk [vmem:[%s31] ss:$8 sm:$0xf] %vm30, %v29
    %v33 = vld [vmem:[#allocation0] sm:$0xf]
    %34 = vrot.lane.b32.xlu0 %v33, 48
    %v35 = vpop.permute.xlu0 %34
    %vm36 = vcmask 130048
    %s37 = scalar_lea.vmem %s1, 5
    %38 = vst.msk [vmem:[%s37] ss:$8 sm:$0xf] %vm36, %v35
    %v39 = vld [vmem:[#allocation0] sm:$0xf]
    %40 = vrot.lane.b32.xlu0 %v39, 32
    %v41 = vpop.permute.xlu0 %40
    %vm42 = vcmask 130048
    %s43 = scalar_lea.vmem %s1, 6
    %44 = vst.msk [vmem:[%s43] ss:$8 sm:$0xf] %vm42, %v41
    %v45 = vld [vmem:[#allocation0] sm:$0xf]
    %46 = vrot.lane.b32.xlu0 %v45, 16
    %v47 = vpop.permute.xlu0 %46
    %vm48 = vcmask 130048
    %s49 = scalar_lea.vmem %s1, 7
    %50 = vst.msk [vmem:[%s49] ss:$8 sm:$0xf] %vm48, %v47

// kernel: _lambda_.1
$region0: #{_lambda_.1}
  #allocation0 [shape = 'u32[]', space=smem, size = 0x4, offset = 0x4, fixed_abs, tag = 'smem constant byte address 0x4 - core index']
  #allocation1 [shape = 'u32[144,128]{1,0:T(1,128)}', space=vmem, size = 0x12000, scoped, tag = 'internal scratch']
  %s0 = inlined_call_operand.vmem [shape: bf16[4,2048], index: 0, kind: input, shape index: {}]
  %s1 = inlined_call_operand.vmem [shape: bf16[64,4], index: 1, kind: input, shape index: {}]
  %s2 = inlined_call_operand.vmem [shape: bf16[64,1], index: 2, kind: input, shape index: {}]
  %s3 = inlined_call_operand.vmem [shape: bf16[3,64,64], index: 3, kind: input, shape index: {}]
  %s4 = inlined_call_operand.vmem [shape: bf16[3,64,1], index: 4, kind: input, shape index: {}]
  %s5 = inlined_call_operand.vmem [shape: bf16[128,64], index: 5, kind: input, shape index: {}]
  %s6 = inlined_call_operand.vmem [shape: bf16[128,1], index: 6, kind: input, shape index: {}, may-alias: {6,8}]
  %s7 = inlined_call_operand.vmem [shape: bf16[128,128], index: 7, kind: input, shape index: {}]
  %s8 = inlined_call_operand.vmem [shape: bf16[128,1], index: 8, kind: input, shape index: {}, may-alias: {6,8}]
  %s9 = inlined_call_operand.vmem [shape: bf16[8,128], index: 9, kind: input, shape index: {}]
  %s10 = inlined_call_operand.vmem [shape: f32[8,1], index: 10, kind: input, shape index: {}]
  %s11 = inlined_call_operand.vmem [shape: f32[8,2048], index: 11, kind: output, shape index: {}]
  %s12 = sld [smem:[#allocation0]]
  $region77: #{_lambda_.1} parent=0
    _
  %s14 = ssub.s32 1, %s12
  %s15 = scalar_select 0, %s14, %s12
  loop: start=0, step=1, limit=4
  $region2: #{_lambda_.1} parent=0 // loop_pre_header
    _
  $region3: #{_lambda_.1} parent=0 // loop_header
    %s17 = sphi 0, %s21
    %p18 = scmp.ge.s32.totalorder %s17, 4
    %s27 = sphi 0, %s29
    %s30 = sphi 0, %s27
    %s31 = sphi 0, %s30
    %s47 = sphi 0, %s31
    %s51 = sphi 0, %s51
    %s53 = sphi 0, %s51
    %s54 = sphi 0, %s53
    %s68 = sphi 0, %s54
    %s72 = sphi 0, %s72
    %s74 = sphi 0, %s72
    %s75 = sphi 0, %s74
    %s89 = sphi 0, %s75
    %s93 = sphi 0, %s93
    %s95 = sphi 0, %s93
    %s96 = sphi 0, %s95
    %s110 = sphi 0, %s96
    %s114 = sphi 0, %s114
    %s116 = sphi 0, %s114
    %s117 = sphi 0, %s116
    %s131 = sphi 0, %s117
    %s135 = sphi 0, %s135
    %s137 = sphi 0, %s135
    %s138 = sphi 0, %s137
    %s152 = sphi 0, %s138
    %s156 = sphi 0, %s156
    %s158 = sphi 0, %s156
    %s159 = sphi 0, %s158
    %s173 = sphi 0, %s159
    %s177 = sphi 0, %s177
    %s179 = sphi 0, %s177
    %s180 = sphi 0, %s179
    %s194 = sphi 0, %s180
    %s198 = sphi 0, %s198
    %s200 = sphi 0, %s198
    %s201 = sphi 0, %s200
    %s215 = sphi 0, %s201
    %s219 = sphi 0, %s219
    %s221 = sphi 0, %s219
    %s222 = sphi 0, %s221
    %s236 = sphi 0, %s222
    %s240 = sphi 0, %s240
    %s242 = sphi 0, %s240
    %s243 = sphi 0, %s242
    %s257 = sphi 0, %s243
    %s263 = sphi 0, %s265
    %s266 = sphi 0, %s263
    %s267 = sphi 0, %s266
    %s283 = sphi 0, %s267
  $region4: #{_lambda_.1} parent=0 // loop_header_branch
    %20 = sbr.rel (%p18) target = $region8
  $region5: #{_lambda_.1} parent=0 // loop_body
    %s22 = ssub.s32 %s17, 1
    %s23 = ssub.s32 %s17, 2
    %s24 = sadd.s32 %s17, 1
    %s25 = ssub.s32 %s17, %s24
    %p26 = scmp.eq.s32.totalorder %s25, 0
    %s28 = sadd.s32 %s27, 1
    %s29 = scalar_select %p26, %s27, %s28
    %p32 = pneg %p26
    %p33 = scmp.eq.s32.totalorder %s17, 1
    %p34 = por %p32, %p33
    %p35 = scmp.ne.s32.totalorder %s27, %s30
    %p36 = scmp.eq.s32.totalorder %s17, 0
    %p37 = por %p35, %p36
    %p38 = scmp.ne.s32.totalorder %s27, %s30
    %p39 = scmp.eq.s32.totalorder %s22, 1
    %p40 = por %p38, %p39
    %p41 = scmp.ne.s32.totalorder %s30, %s31
    %p42 = scmp.eq.s32.totalorder %s22, 0
    %p43 = por %p41, %p42
    %p44 = scmp.ne.s32.totalorder %s30, %s31
    %p45 = scmp.eq.s32.totalorder %s23, 1
    %p46 = por %p44, %p45
    %p48 = scmp.ne.s32.totalorder %s31, %s47
    %p49 = scmp.eq.s32.totalorder %s23, 0
    %p50 = por %p48, %p49
    %s52 = sadd.s32 %s51, 1
    %p55 = scmp.eq.s32.totalorder %s17, 1
    %p56 = scmp.ne.s32.totalorder %s51, %s53
    %p57 = scmp.eq.s32.totalorder %s17, 0
    %p58 = por %p56, %p57
    %p59 = scmp.ne.s32.totalorder %s51, %s53
    %p60 = scmp.eq.s32.totalorder %s22, 1
    %p61 = por %p59, %p60
    %p62 = scmp.ne.s32.totalorder %s53, %s54
    %p63 = scmp.eq.s32.totalorder %s22, 0
    %p64 = por %p62, %p63
    %p65 = scmp.ne.s32.totalorder %s53, %s54
    %p66 = scmp.eq.s32.totalorder %s23, 1
    %p67 = por %p65, %p66
    %p69 = scmp.ne.s32.totalorder %s54, %s68
    %p70 = scmp.eq.s32.totalorder %s23, 0
    %p71 = por %p69, %p70
    %s73 = sadd.s32 %s72, 1
    %p76 = scmp.eq.s32.totalorder %s17, 1
    %p77 = scmp.ne.s32.totalorder %s72, %s74
    %p78 = scmp.eq.s32.totalorder %s17, 0
    %p79 = por %p77, %p78
    %p80 = scmp.ne.s32.totalorder %s72, %s74
    %p81 = scmp.eq.s32.totalorder %s22, 1
    %p82 = por %p80, %p81
    %p83 = scmp.ne.s32.totalorder %s74, %s75
    %p84 = scmp.eq.s32.totalorder %s22, 0
    %p85 = por %p83, %p84
    %p86 = scmp.ne.s32.totalorder %s74, %s75
    %p87 = scmp.eq.s32.totalorder %s23, 1
    %p88 = por %p86, %p87
    %p90 = scmp.ne.s32.totalorder %s75, %s89
    %p91 = scmp.eq.s32.totalorder %s23, 0
    %p92 = por %p90, %p91
    %s94 = sadd.s32 %s93, 1
    %p97 = scmp.eq.s32.totalorder %s17, 1
    %p98 = scmp.ne.s32.totalorder %s93, %s95
    %p99 = scmp.eq.s32.totalorder %s17, 0
    %p100 = por %p98, %p99
    %p101 = scmp.ne.s32.totalorder %s93, %s95
    %p102 = scmp.eq.s32.totalorder %s22, 1
    %p103 = por %p101, %p102
    %p104 = scmp.ne.s32.totalorder %s95, %s96
    %p105 = scmp.eq.s32.totalorder %s22, 0
    %p106 = por %p104, %p105
    %p107 = scmp.ne.s32.totalorder %s95, %s96
    %p108 = scmp.eq.s32.totalorder %s23, 1
    %p109 = por %p107, %p108
    %p111 = scmp.ne.s32.totalorder %s96, %s110
    %p112 = scmp.eq.s32.totalorder %s23, 0
    %p113 = por %p111, %p112
    %s115 = sadd.s32 %s114, 1
    %p118 = scmp.eq.s32.totalorder %s17, 1
    %p119 = scmp.ne.s32.totalorder %s114, %s116
    %p120 = scmp.eq.s32.totalorder %s17, 0
    %p121 = por %p119, %p120
    %p122 = scmp.ne.s32.totalorder %s114, %s116
    %p123 = scmp.eq.s32.totalorder %s22, 1
    %p124 = por %p122, %p123
    %p125 = scmp.ne.s32.totalorder %s116, %s117
    %p126 = scmp.eq.s32.totalorder %s22, 0
    %p127 = por %p125, %p126
    %p128 = scmp.ne.s32.totalorder %s116, %s117
    %p129 = scmp.eq.s32.totalorder %s23, 1
    %p130 = por %p128, %p129
    %p132 = scmp.ne.s32.totalorder %s117, %s131
    %p133 = scmp.eq.s32.totalorder %s23, 0
    %p134 = por %p132, %p133
    %s136 = sadd.s32 %s135, 1
    %p139 = scmp.eq.s32.totalorder %s17, 1
    %p140 = scmp.ne.s32.totalorder %s135, %s137
    %p141 = scmp.eq.s32.totalorder %s17, 0
    %p142 = por %p140, %p141
    %p143 = scmp.ne.s32.totalorder %s135, %s137
    %p144 = scmp.eq.s32.totalorder %s22, 1
    %p145 = por %p143, %p144
    %p146 = scmp.ne.s32.totalorder %s137, %s138
    %p147 = scmp.eq.s32.totalorder %s22, 0
    %p148 = por %p146, %p147
    %p149 = scmp.ne.s32.totalorder %s137, %s138
    %p150 = scmp.eq.s32.totalorder %s23, 1
    %p151 = por %p149, %p150
    %p153 = scmp.ne.s32.totalorder %s138, %s152
    %p154 = scmp.eq.s32.totalorder %s23, 0
    %p155 = por %p153, %p154
    %s157 = sadd.s32 %s156, 1
    %p160 = scmp.eq.s32.totalorder %s17, 1
    %p161 = scmp.ne.s32.totalorder %s156, %s158
    %p162 = scmp.eq.s32.totalorder %s17, 0
    %p163 = por %p161, %p162
    %p164 = scmp.ne.s32.totalorder %s156, %s158
    %p165 = scmp.eq.s32.totalorder %s22, 1
    %p166 = por %p164, %p165
    %p167 = scmp.ne.s32.totalorder %s158, %s159
    %p168 = scmp.eq.s32.totalorder %s22, 0
    %p169 = por %p167, %p168
    %p170 = scmp.ne.s32.totalorder %s158, %s159
    %p171 = scmp.eq.s32.totalorder %s23, 1
    %p172 = por %p170, %p171
    %p174 = scmp.ne.s32.totalorder %s159, %s173
    %p175 = scmp.eq.s32.totalorder %s23, 0
    %p176 = por %p174, %p175
    %s178 = sadd.s32 %s177, 1
    %p181 = scmp.eq.s32.totalorder %s17, 1
    %p182 = scmp.ne.s32.totalorder %s177, %s179
    %p183 = scmp.eq.s32.totalorder %s17, 0
    %p184 = por %p182, %p183
    %p185 = scmp.ne.s32.totalorder %s177, %s179
    %p186 = scmp.eq.s32.totalorder %s22, 1
    %p187 = por %p185, %p186
    %p188 = scmp.ne.s32.totalorder %s179, %s180
    %p189 = scmp.eq.s32.totalorder %s22, 0
    %p190 = por %p188, %p189
    %p191 = scmp.ne.s32.totalorder %s179, %s180
    %p192 = scmp.eq.s32.totalorder %s23, 1
    %p193 = por %p191, %p192
    %p195 = scmp.ne.s32.totalorder %s180, %s194
    %p196 = scmp.eq.s32.totalorder %s23, 0
    %p197 = por %p195, %p196
    %s199 = sadd.s32 %s198, 1
    %p202 = scmp.eq.s32.totalorder %s17, 1
    %p203 = scmp.ne.s32.totalorder %s198, %s200
    %p204 = scmp.eq.s32.totalorder %s17, 0
    %p205 = por %p203, %p204
    %p206 = scmp.ne.s32.totalorder %s198, %s200
    %p207 = scmp.eq.s32.totalorder %s22, 1
    %p208 = por %p206, %p207
    %p209 = scmp.ne.s32.totalorder %s200, %s201
    %p210 = scmp.eq.s32.totalorder %s22, 0
    %p211 = por %p209, %p210
    %p212 = scmp.ne.s32.totalorder %s200, %s201
    %p213 = scmp.eq.s32.totalorder %s23, 1
    %p214 = por %p212, %p213
    %p216 = scmp.ne.s32.totalorder %s201, %s215
    %p217 = scmp.eq.s32.totalorder %s23, 0
    %p218 = por %p216, %p217
    %s220 = sadd.s32 %s219, 1
    %p223 = scmp.eq.s32.totalorder %s17, 1
    %p224 = scmp.ne.s32.totalorder %s219, %s221
    %p225 = scmp.eq.s32.totalorder %s17, 0
    %p226 = por %p224, %p225
    %p227 = scmp.ne.s32.totalorder %s219, %s221
    %p228 = scmp.eq.s32.totalorder %s22, 1
    %p229 = por %p227, %p228
    %p230 = scmp.ne.s32.totalorder %s221, %s222
    %p231 = scmp.eq.s32.totalorder %s22, 0
    %p232 = por %p230, %p231
    %p233 = scmp.ne.s32.totalorder %s221, %s222
    %p234 = scmp.eq.s32.totalorder %s23, 1
    %p235 = por %p233, %p234
    %p237 = scmp.ne.s32.totalorder %s222, %s236
    %p238 = scmp.eq.s32.totalorder %s23, 0
    %p239 = por %p237, %p238
    %s241 = sadd.s32 %s240, 1
    %p244 = scmp.eq.s32.totalorder %s17, 1
    %p245 = scmp.ne.s32.totalorder %s240, %s242
    %p246 = scmp.eq.s32.totalorder %s17, 0
    %p247 = por %p245, %p246
    %p248 = scmp.ne.s32.totalorder %s240, %s242
    %p249 = scmp.eq.s32.totalorder %s22, 1
    %p250 = por %p248, %p249
    %p251 = scmp.ne.s32.totalorder %s242, %s243
    %p252 = scmp.eq.s32.totalorder %s22, 0
    %p253 = por %p251, %p252
    %p254 = scmp.ne.s32.totalorder %s242, %s243
    %p255 = scmp.eq.s32.totalorder %s23, 1
    %p256 = por %p254, %p255
    %p258 = scmp.ne.s32.totalorder %s243, %s257
    %p259 = scmp.eq.s32.totalorder %s23, 0
    %p260 = por %p258, %p259
    %s261 = ssub.s32 %s17, %s24
    %p262 = scmp.eq.s32.totalorder %s261, 0
    %s264 = sadd.s32 %s263, 1
    %s265 = scalar_select %p262, %s263, %s264
    %p268 = pneg %p262
    %p269 = scmp.eq.s32.totalorder %s17, 1
    %p270 = por %p268, %p269
    %p271 = scmp.ne.s32.totalorder %s263, %s266
    %p272 = scmp.eq.s32.totalorder %s17, 0
    %p273 = por %p271, %p272
    %p274 = scmp.ne.s32.totalorder %s263, %s266
    %p275 = scmp.eq.s32.totalorder %s22, 1
    %p276 = por %p274, %p275
    %p277 = scmp.ne.s32.totalorder %s266, %s267
    %p278 = scmp.eq.s32.totalorder %s22, 0
    %p279 = por %p277, %p278
    %p280 = scmp.ne.s32.totalorder %s266, %s267
    %p281 = scmp.eq.s32.totalorder %s23, 1
    %p282 = por %p280, %p281
    %p284 = scmp.ne.s32.totalorder %s267, %s283
    %p285 = scmp.eq.s32.totalorder %s23, 0
    %p286 = por %p284, %p285
    %p287 = scmp.le.s32.totalorder 1, %s17
    %p288 = scmp.lt.s32.totalorder %s17, 3
    %p289 = pnand %p287, %p288
    %p290 = pneg %p289
    // Predicated region
    $region9: #{_lambda_.1} parent=5 // pred_check
      _
    $region10: #{_lambda_.1} parent=5 // pred_check_branch
      %292 = sbr.rel (%p289) target = $region12
    $region11: #{_lambda_.1} parent=5 // pred_region
      %s293 = ssub.s32 %s17, 1
      // Predicated region
      $region13: #{_lambda_.1} parent=11 // pred_check
        %p294 = pneg %p64
      $region14: #{_lambda_.1} parent=11 // pred_check_branch
        %296 = sbr.rel (%p294) target = $region16
      $region15: #{_lambda_.1} parent=11 // pred_region
        _
      $region16: #{_lambda_.1} parent=11 // pred_fallthru
        _
      // Predicated region
      $region17: #{_lambda_.1} parent=11 // pred_check
        %p297 = pneg %p85
      $region18: #{_lambda_.1} parent=11 // pred_check_branch
        %299 = sbr.rel (%p297) target = $region20
      $region19: #{_lambda_.1} parent=11 // pred_region
        _
      $region20: #{_lambda_.1} parent=11 // pred_fallthru
        _
      // Predicated region
      $region21: #{_lambda_.1} parent=11 // pred_check
        %p300 = pneg %p106
      $region22: #{_lambda_.1} parent=11 // pred_check_branch
        %302 = sbr.rel (%p300) target = $region24
      $region23: #{_lambda_.1} parent=11 // pred_region
        _
      $region24: #{_lambda_.1} parent=11 // pred_fallthru
        _
      // Predicated region
      $region25: #{_lambda_.1} parent=11 // pred_check
        %p303 = pneg %p127
      $region26: #{_lambda_.1} parent=11 // pred_check_branch
        %305 = sbr.rel (%p303) target = $region28
      $region27: #{_lambda_.1} parent=11 // pred_region
        _
      $region28: #{_lambda_.1} parent=11 // pred_fallthru
        _
      // Predicated region
      $region29: #{_lambda_.1} parent=11 // pred_check
        %p306 = pneg %p148
      $region30: #{_lambda_.1} parent=11 // pred_check_branch
        %308 = sbr.rel (%p306) target = $region32
      $region31: #{_lambda_.1} parent=11 // pred_region
        _
      $region32: #{_lambda_.1} parent=11 // pred_fallthru
        _
      // Predicated region
      $region33: #{_lambda_.1} parent=11 // pred_check
        %p309 = pneg %p169
      $region34: #{_lambda_.1} parent=11 // pred_check_branch
        %311 = sbr.rel (%p309) target = $region36
      $region35: #{_lambda_.1} parent=11 // pred_region
        _
      $region36: #{_lambda_.1} parent=11 // pred_fallthru
        _
      // Predicated region
      $region37: #{_lambda_.1} parent=11 // pred_check
        %p312 = pneg %p190
      $region38: #{_lambda_.1} parent=11 // pred_check_branch
        %314 = sbr.rel (%p312) target = $region40
      $region39: #{_lambda_.1} parent=11 // pred_region
        _
      $region40: #{_lambda_.1} parent=11 // pred_fallthru
        _
      // Predicated region
      $region41: #{_lambda_.1} parent=11 // pred_check
        %p315 = pneg %p211
      $region42: #{_lambda_.1} parent=11 // pred_check_branch
        %317 = sbr.rel (%p315) target = $region44
      $region43: #{_lambda_.1} parent=11 // pred_region
        _
      $region44: #{_lambda_.1} parent=11 // pred_fallthru
        _
      // Predicated region
      $region45: #{_lambda_.1} parent=11 // pred_check
        %p318 = pneg %p232
      $region46: #{_lambda_.1} parent=11 // pred_check_branch
        %320 = sbr.rel (%p318) target = $region48
      $region47: #{_lambda_.1} parent=11 // pred_region
        _
      $region48: #{_lambda_.1} parent=11 // pred_fallthru
        _
      // Predicated region
      $region49: #{_lambda_.1} parent=11 // pred_check
        %p321 = pneg %p253
      $region50: #{_lambda_.1} parent=11 // pred_check_branch
        %323 = sbr.rel (%p321) target = $region52
      $region51: #{_lambda_.1} parent=11 // pred_region
        _
      $region52: #{_lambda_.1} parent=11 // pred_fallthru
        _
    $region12: #{_lambda_.1} parent=5 // pred_fallthru
      _
    %p324 = scmp.lt.s32.totalorder %s17, 2
    // Predicated region
    $region53: #{_lambda_.1} parent=5 // pred_check
      %p325 = pneg %p324
    $region54: #{_lambda_.1} parent=5 // pred_check_branch
      %327 = sbr.rel (%p325) target = $region56
    $region55: #{_lambda_.1} parent=5 // pred_region
      // Predicated region
      $region57: #{_lambda_.1} parent=55 // pred_check
        %p328 = pneg %p37
      $region58: #{_lambda_.1} parent=55 // pred_check_branch
        %330 = sbr.rel (%p328) target = $region60
      $region59: #{_lambda_.1} parent=55 // pred_region
        %s331 = smul.u32 8, %s17
        %p332 = scmp.lt.s32.totalorder %s331, 15
        %s333 = scalar_select %p332, %s331, 15
        %s334 = smul.addr %s333, 2
        %s335 = scalar_lea.vmem %s0, %s334
        %s336 = smul.u32 8, %s17
      $region60: #{_lambda_.1} parent=55 // pred_fallthru
        _
    $region56: #{_lambda_.1} parent=5 // pred_fallthru
      _
    %p337 = scmp.le.s32.totalorder 1, %s17
    %p338 = scmp.lt.s32.totalorder %s17, 3
    %p339 = pnand %p337, %p338
    %p340 = pneg %p339
    // Predicated region
    $region61: #{_lambda_.1} parent=5 // pred_check
      _
    $region62: #{_lambda_.1} parent=5 // pred_check_branch
      %342 = sbr.rel (%p339) target = $region64
    $region63: #{_lambda_.1} parent=5 // pred_region
      %s343 = ssub.s32 %s17, 1
      %s344 = smul.u32 8, %s22
      %p345 = scmp.lt.s32.totalorder %s344, 15
      %s346 = scalar_select %p345, %s344, 15
      %s347 = smul.addr %s346, 2
      %s348 = scalar_lea.vmem %s0, %s347
      %p349 = pneg %p43
      %p350 = pneg %p40
      %p351 = pneg %p64
      %p352 = pneg %p61
      %p353 = pneg %p85
      %p354 = pneg %p82
      %p355 = pneg %p106
      %p356 = pneg %p103
      %p357 = pneg %p127
      %p358 = pneg %p124
      %p359 = pneg %p148
      %p360 = pneg %p145
      %p361 = pneg %p169
      %p362 = pneg %p166
      %p363 = pneg %p190
      %p364 = pneg %p187
      %p365 = pneg %p211
      %p366 = pneg %p208
      %p367 = pneg %p232
      %p368 = pneg %p229
      %p369 = pneg %p253
      %p370 = pneg %p250
      %p371 = pneg %p279
      %p372 = pneg %p276
      %s373 = smul.u32 8, %s22
      %p374 = scmp.lt.s32.totalorder %s373, 15
      %s375 = scalar_select %p374, %s373, 15
      %s376 = smul.addr %s375, 8
      %s377 = scalar_lea.vmem %s11, %s376
      %s378 = smul.u32 8, %s22
      %p379 = scmp.lt.s32.totalorder %s378, 15
      %s380 = scalar_select %p379, %s378, 15
      %s381 = smul.addr %s380, 2
      %s382 = scalar_lea.vmem %s0, %s381
      %s383 = smul.u32 8, %s22
      %s384 = smul.u32 8, %s22
      %p385 = scmp.lt.s32.totalorder %s384, 15
      %s386 = scalar_select %p385, %s384, 15
      %s387 = smul.addr %s386, 8
      %s388 = scalar_lea.vmem %s11, %s387
      %s389 = smul.u32 8, %s22
      %v391 = vld [vmem:[%s1] sm:$0xf]
      %v392 = vld [vmem:[%s1 + $0x4] sm:$0xf]
      %v393 = vld [vmem:[%s1 + $0x8] sm:$0xf]
      %v394 = vld [vmem:[%s1 + $0xc] sm:$0xf]
      %v395 = vld [vmem:[%s1 + $0x10] sm:$0xf]
      %v396 = vld [vmem:[%s1 + $0x14] sm:$0xf]
      %v397 = vld [vmem:[%s1 + $0x18] sm:$0xf]
      %v398 = vld [vmem:[%s1 + $0x1c] sm:$0xf]
      %v399 = vld [vmem:[%s2] sm:$0xf]
      %v400 = vld [vmem:[%s2 + $0x4] sm:$0xf]
      %v401 = vld [vmem:[%s2 + $0x8] sm:$0xf]
      %v402 = vld [vmem:[%s2 + $0xc] sm:$0xf]
      %v403 = vld [vmem:[%s2 + $0x10] sm:$0xf]
      %v404 = vld [vmem:[%s2 + $0x14] sm:$0xf]
      %v405 = vld [vmem:[%s2 + $0x18] sm:$0xf]
      %v406 = vld [vmem:[%s2 + $0x1c] sm:$0xf]
      %v407 = vld [vmem:[%s3] sm:$0xf]
      %v408 = vld [vmem:[%s3 + $0x4] sm:$0xf]
      %v409 = vld [vmem:[%s3 + $0x8] sm:$0xf]
      %v410 = vld [vmem:[%s3 + $0xc] sm:$0xf]
      %v411 = vld [vmem:[%s3 + $0x10] sm:$0xf]
      %v412 = vld [vmem:[%s3 + $0x14] sm:$0xf]
      %v413 = vld [vmem:[%s3 + $0x18] sm:$0xf]
      %v414 = vld [vmem:[%s3 + $0x1c] sm:$0xf]
      %s415 = scalar_lea.vmem %s3, 32
      %v416 = vld [vmem:[%s415] sm:$0xf]
      %v417 = vld [vmem:[%s415 + $0x4] sm:$0xf]
      %v418 = vld [vmem:[%s415 + $0x8] sm:$0xf]
      %v419 = vld [vmem:[%s415 + $0xc] sm:$0xf]
      %v420 = vld [vmem:[%s415 + $0x10] sm:$0xf]
      %v421 = vld [vmem:[%s415 + $0x14] sm:$0xf]
      %v422 = vld [vmem:[%s415 + $0x18] sm:$0xf]
      %v423 = vld [vmem:[%s415 + $0x1c] sm:$0xf]
      %s424 = scalar_lea.vmem %s3, 64
      %v425 = vld [vmem:[%s424] sm:$0xf]
      %v426 = vld [vmem:[%s424 + $0x4] sm:$0xf]
      %v427 = vld [vmem:[%s424 + $0x8] sm:$0xf]
      %v428 = vld [vmem:[%s424 + $0xc] sm:$0xf]
      %v429 = vld [vmem:[%s424 + $0x10] sm:$0xf]
      %v430 = vld [vmem:[%s424 + $0x14] sm:$0xf]
      %v431 = vld [vmem:[%s424 + $0x18] sm:$0xf]
      %v432 = vld [vmem:[%s424 + $0x1c] sm:$0xf]
      %v433 = vld [vmem:[%s4] sm:$0xf]
      %v434 = vld [vmem:[%s4 + $0x4] sm:$0xf]
      %v435 = vld [vmem:[%s4 + $0x8] sm:$0xf]
      %v436 = vld [vmem:[%s4 + $0xc] sm:$0xf]
      %v437 = vld [vmem:[%s4 + $0x10] sm:$0xf]
      %v438 = vld [vmem:[%s4 + $0x14] sm:$0xf]
      %v439 = vld [vmem:[%s4 + $0x18] sm:$0xf]
      %v440 = vld [vmem:[%s4 + $0x1c] sm:$0xf]
      %s441 = scalar_lea.vmem %s4, 32
      %v442 = vld [vmem:[%s441] sm:$0xf]
      %v443 = vld [vmem:[%s441 + $0x4] sm:$0xf]
      %v444 = vld [vmem:[%s441 + $0x8] sm:$0xf]
      %v445 = vld [vmem:[%s441 + $0xc] sm:$0xf]
      %v446 = vld [vmem:[%s441 + $0x10] sm:$0xf]
      %v447 = vld [vmem:[%s441 + $0x14] sm:$0xf]
      %v448 = vld [vmem:[%s441 + $0x18] sm:$0xf]
      %v449 = vld [vmem:[%s441 + $0x1c] sm:$0xf]
      %s450 = scalar_lea.vmem %s4, 64
      %v451 = vld [vmem:[%s450] sm:$0xf]
      %v452 = vld [vmem:[%s450 + $0x4] sm:$0xf]
      %v453 = vld [vmem:[%s450 + $0x8] sm:$0xf]
      %v454 = vld [vmem:[%s450 + $0xc] sm:$0xf]
      %v455 = vld [vmem:[%s450 + $0x10] sm:$0xf]
      %v456 = vld [vmem:[%s450 + $0x14] sm:$0xf]
      %v457 = vld [vmem:[%s450 + $0x18] sm:$0xf]
      %v458 = vld [vmem:[%s450 + $0x1c] sm:$0xf]
      %v459 = vld [vmem:[%s5] sm:$0xf]
      %v460 = vld [vmem:[%s5 + $0x4] sm:$0xf]
      %v461 = vld [vmem:[%s5 + $0x8] sm:$0xf]
      %v462 = vld [vmem:[%s5 + $0xc] sm:$0xf]
      %v463 = vld [vmem:[%s5 + $0x10] sm:$0xf]
      %v464 = vld [vmem:[%s5 + $0x14] sm:$0xf]
      %v465 = vld [vmem:[%s5 + $0x18] sm:$0xf]
      %v466 = vld [vmem:[%s5 + $0x1c] sm:$0xf]
      %v467 = vld [vmem:[%s5 + $0x20] sm:$0xf]
      %v468 = vld [vmem:[%s5 + $0x24] sm:$0xf]
      %v469 = vld [vmem:[%s5 + $0x28] sm:$0xf]
      %v470 = vld [vmem:[%s5 + $0x2c] sm:$0xf]
      %v471 = vld [vmem:[%s5 + $0x30] sm:$0xf]
      %v472 = vld [vmem:[%s5 + $0x34] sm:$0xf]
      %v473 = vld [vmem:[%s5 + $0x38] sm:$0xf]
      %v474 = vld [vmem:[%s5 + $0x3c] sm:$0xf]
      %v475 = vld [vmem:[%s6] sm:$0xf]
      %v476 = vld [vmem:[%s6 + $0x4] sm:$0xf]
      %v477 = vld [vmem:[%s6 + $0x8] sm:$0xf]
      %v478 = vld [vmem:[%s6 + $0xc] sm:$0xf]
      %v479 = vld [vmem:[%s6 + $0x10] sm:$0xf]
      %v480 = vld [vmem:[%s6 + $0x14] sm:$0xf]
      %v481 = vld [vmem:[%s6 + $0x18] sm:$0xf]
      %v482 = vld [vmem:[%s6 + $0x1c] sm:$0xf]
      %v483 = vld [vmem:[%s6 + $0x20] sm:$0xf]
      %v484 = vld [vmem:[%s6 + $0x24] sm:$0xf]
      %v485 = vld [vmem:[%s6 + $0x28] sm:$0xf]
      %v486 = vld [vmem:[%s6 + $0x2c] sm:$0xf]
      %v487 = vld [vmem:[%s6 + $0x30] sm:$0xf]
      %v488 = vld [vmem:[%s6 + $0x34] sm:$0xf]
      %v489 = vld [vmem:[%s6 + $0x38] sm:$0xf]
      %v490 = vld [vmem:[%s6 + $0x3c] sm:$0xf]
      %v491 = vld [vmem:[%s7] sm:$0xf]
      %v492 = vld [vmem:[%s7 + $0x4] sm:$0xf]
      %v493 = vld [vmem:[%s7 + $0x8] sm:$0xf]
      %v494 = vld [vmem:[%s7 + $0xc] sm:$0xf]
      %v495 = vld [vmem:[%s7 + $0x10] sm:$0xf]
      %v496 = vld [vmem:[%s7 + $0x14] sm:$0xf]
      %v497 = vld [vmem:[%s7 + $0x18] sm:$0xf]
      %v498 = vld [vmem:[%s7 + $0x1c] sm:$0xf]
      %v499 = vld [vmem:[%s7 + $0x20] sm:$0xf]
      %v500 = vld [vmem:[%s7 + $0x24] sm:$0xf]
      %v501 = vld [vmem:[%s7 + $0x28] sm:$0xf]
      %v502 = vld [vmem:[%s7 + $0x2c] sm:$0xf]
      %v503 = vld [vmem:[%s7 + $0x30] sm:$0xf]
      %v504 = vld [vmem:[%s7 + $0x34] sm:$0xf]
      %v505 = vld [vmem:[%s7 + $0x38] sm:$0xf]
      %v506 = vld [vmem:[%s7 + $0x3c] sm:$0xf]
      %v507 = vld [vmem:[%s8] sm:$0xf]
      %v508 = vld [vmem:[%s8 + $0x4] sm:$0xf]
      %v509 = vld [vmem:[%s8 + $0x8] sm:$0xf]
      %v510 = vld [vmem:[%s8 + $0xc] sm:$0xf]
      %v511 = vld [vmem:[%s8 + $0x10] sm:$0xf]
      %v512 = vld [vmem:[%s8 + $0x14] sm:$0xf]
      %v513 = vld [vmem:[%s8 + $0x18] sm:$0xf]
      %v514 = vld [vmem:[%s8 + $0x1c] sm:$0xf]
      %v515 = vld [vmem:[%s8 + $0x20] sm:$0xf]
      %v516 = vld [vmem:[%s8 + $0x24] sm:$0xf]
      %v517 = vld [vmem:[%s8 + $0x28] sm:$0xf]
      %v518 = vld [vmem:[%s8 + $0x2c] sm:$0xf]
      %v519 = vld [vmem:[%s8 + $0x30] sm:$0xf]
      %v520 = vld [vmem:[%s8 + $0x34] sm:$0xf]
      %v521 = vld [vmem:[%s8 + $0x38] sm:$0xf]
      %v522 = vld [vmem:[%s8 + $0x3c] sm:$0xf]
      %v523 = vld [vmem:[%s9] sm:$0xf]
      %v524 = vld [vmem:[%s10] sm:$0xff]
      %v525 = vld [vmem:[%s382] sm:$0xff]
      %527 = vset.pattern.permute.xlu0 0
      %528 = vperm.xlu0 %527, %v391
      %v529 = vpop.permute.xlu0 %528
      %v532 = vunpack.c.l.s4 839922192
      %v533 = vunpack.c.0.s8 %v532
      %v534 = vlaneseq
      %v535 = vshrl.u32 %v534, 7
      %v536 = vsub.s32 %v533, %v535
      %v537 = vrot.slane %v529, %v536
      %539 = vset.pattern.permute.xlu0 0
      %540 = vperm.xlu0 %539, %v392
      %v541 = vpop.permute.xlu0 %540
      %v544 = vunpack.c.l.s4 839922192
      %v545 = vunpack.c.0.s8 %v544
      %v546 = vlaneseq
      %v547 = vshrl.u32 %v546, 7
      %v548 = vsub.s32 %v545, %v547
      %v549 = vrot.slane %v541, %v548
      %551 = vset.pattern.permute.xlu0 0
      %552 = vperm.xlu0 %551, %v393
      %v553 = vpop.permute.xlu0 %552
      %v556 = vunpack.c.l.s4 839922192
      %v557 = vunpack.c.0.s8 %v556
      %v558 = vlaneseq
      %v559 = vshrl.u32 %v558, 7
      %v560 = vsub.s32 %v557, %v559
      %v561 = vrot.slane %v553, %v560
      %563 = vset.pattern.permute.xlu0 0
      %564 = vperm.xlu0 %563, %v394
      %v565 = vpop.permute.xlu0 %564
      %v568 = vunpack.c.l.s4 839922192
      %v569 = vunpack.c.0.s8 %v568
      %v570 = vlaneseq
      %v571 = vshrl.u32 %v570, 7
      %v572 = vsub.s32 %v569, %v571
      %v573 = vrot.slane %v565, %v572
      %575 = vset.pattern.permute.xlu0 0
      %576 = vperm.xlu0 %575, %v395
      %v577 = vpop.permute.xlu0 %576
      %v580 = vunpack.c.l.s4 839922192
      %v581 = vunpack.c.0.s8 %v580
      %v582 = vlaneseq
      %v583 = vshrl.u32 %v582, 7
      %v584 = vsub.s32 %v581, %v583
      %v585 = vrot.slane %v577, %v584
      %587 = vset.pattern.permute.xlu0 0
      %588 = vperm.xlu0 %587, %v396
      %v589 = vpop.permute.xlu0 %588
      %v592 = vunpack.c.l.s4 839922192
      %v593 = vunpack.c.0.s8 %v592
      %v594 = vlaneseq
      %v595 = vshrl.u32 %v594, 7
      %v596 = vsub.s32 %v593, %v595
      %v597 = vrot.slane %v589, %v596
      %599 = vset.pattern.permute.xlu0 0
      %600 = vperm.xlu0 %599, %v397
      %v601 = vpop.permute.xlu0 %600
      %v604 = vunpack.c.l.s4 839922192
      %v605 = vunpack.c.0.s8 %v604
      %v606 = vlaneseq
      %v607 = vshrl.u32 %v606, 7
      %v608 = vsub.s32 %v605, %v607
      %v609 = vrot.slane %v601, %v608
      %611 = vset.pattern.permute.xlu0 0
      %612 = vperm.xlu0 %611, %v398
      %v613 = vpop.permute.xlu0 %612
      %v616 = vunpack.c.l.s4 839922192
      %v617 = vunpack.c.0.s8 %v616
      %v618 = vlaneseq
      %v619 = vshrl.u32 %v618, 7
      %v620 = vsub.s32 %v617, %v619
      %v621 = vrot.slane %v613, %v620
      %v623 = vcombine.high %v525, %v525
      %v625 = vunpack.c.l.s4 1983009808
      %v626 = vunpack.c.0.s8 %v625
      %v627 = vlaneseq
      %v628 = vshrl.u32 %v627, 7
      %v629 = vsub.s32 %v626, %v628
      %v630 = vrot.slane %v525, %v629
      %v632 = vunpack.c.l.s4 1983009808
      %v633 = vunpack.c.0.s8 %v632
      %v634 = vlaneseq
      %v635 = vshrl.u32 %v634, 7
      %v636 = vsub.s32 %v633, %v635
      %v637 = vrot.slane %v623, %v636
      %v638 = vcombine.high %v630, %v630
      %v639 = vcombine.high %v637, %v637
      %v641 = vpack.i.b16 %v630, %v630
      %v643 = vlaneseq
      %v644 = vshrl.u32 %v643, 7
      %v645 = vsub.s32 0, %v644
      %v646 = vrot.slane %v641, %v645
      %v648 = vpack.i.b16 %v638, %v638
      %v650 = vlaneseq
      %v651 = vshrl.u32 %v650, 7
      %v652 = vsub.s32 0, %v651
      %v653 = vrot.slane %v648, %v652
      %v655 = vpack.i.b16 %v637, %v637
      %v657 = vlaneseq
      %v658 = vshrl.u32 %v657, 7
      %v659 = vsub.s32 0, %v658
      %v660 = vrot.slane %v655, %v659
      %v662 = vpack.i.b16 %v639, %v639
      %v664 = vlaneseq
      %v665 = vshrl.u32 %v664, 7
      %v666 = vsub.s32 0, %v665
      %v667 = vrot.slane %v662, %v666
      %v672 = vunpack.c.l.b16 %v646
      %v673 = vunpack.c.l.b16 %v653
      %v674 = vunpack.c.l.b16 %v660
      %v675 = vunpack.c.l.b16 %v667
      %v676 = vpack.c.b16 %v673, %v672
      %v677 = vpack.c.b16 %v675, %v674
      %v680 = vmul.bf16 %v537, %v676
      %v681 = vmul.bf16 %v537, %v677
      %v682 = vmul.bf16 %v549, %v676
      %v683 = vmul.bf16 %v549, %v677
      %v684 = vmul.bf16 %v561, %v676
      %v685 = vmul.bf16 %v561, %v677
      %v686 = vmul.bf16 %v573, %v676
      %v687 = vmul.bf16 %v573, %v677
      %v688 = vmul.bf16 %v585, %v676
      %v689 = vmul.bf16 %v585, %v677
      %v690 = vmul.bf16 %v597, %v676
      %v691 = vmul.bf16 %v597, %v677
      %v692 = vmul.bf16 %v609, %v676
      %v693 = vmul.bf16 %v609, %v677
      %v694 = vmul.bf16 %v621, %v676
      %v695 = vmul.bf16 %v621, %v677
      %697 = vset.pattern.permute.xlu0 0
      %698 = vperm.xlu0 %697, %v399
      %v699 = vpop.permute.xlu0 %698
      %v702 = vunpack.c.l.s4 839922192
      %v703 = vunpack.c.0.s8 %v702
      %v704 = vlaneseq
      %v705 = vshrl.u32 %v704, 7
      %v706 = vsub.s32 %v703, %v705
      %v707 = vrot.slane %v699, %v706
      %709 = vset.pattern.permute.xlu0 0
      %710 = vperm.xlu0 %709, %v400
      %v711 = vpop.permute.xlu0 %710
      %v714 = vunpack.c.l.s4 839922192
      %v715 = vunpack.c.0.s8 %v714
      %v716 = vlaneseq
      %v717 = vshrl.u32 %v716, 7
      %v718 = vsub.s32 %v715, %v717
      %v719 = vrot.slane %v711, %v718
      %721 = vset.pattern.permute.xlu0 0
      %722 = vperm.xlu0 %721, %v401
      %v723 = vpop.permute.xlu0 %722
      %v726 = vunpack.c.l.s4 839922192
      %v727 = vunpack.c.0.s8 %v726
      %v728 = vlaneseq
      %v729 = vshrl.u32 %v728, 7
      %v730 = vsub.s32 %v727, %v729
      %v731 = vrot.slane %v723, %v730
      %733 = vset.pattern.permute.xlu0 0
      %734 = vperm.xlu0 %733, %v402
      %v735 = vpop.permute.xlu0 %734
      %v738 = vunpack.c.l.s4 839922192
      %v739 = vunpack.c.0.s8 %v738
      %v740 = vlaneseq
      %v741 = vshrl.u32 %v740, 7
      %v742 = vsub.s32 %v739, %v741
      %v743 = vrot.slane %v735, %v742
      %745 = vset.pattern.permute.xlu0 0
      %746 = vperm.xlu0 %745, %v403
      %v747 = vpop.permute.xlu0 %746
      %v750 = vunpack.c.l.s4 839922192
      %v751 = vunpack.c.0.s8 %v750
      %v752 = vlaneseq
      %v753 = vshrl.u32 %v752, 7
      %v754 = vsub.s32 %v751, %v753
      %v755 = vrot.slane %v747, %v754
      %757 = vset.pattern.permute.xlu0 0
      %758 = vperm.xlu0 %757, %v404
      %v759 = vpop.permute.xlu0 %758
      %v762 = vunpack.c.l.s4 839922192
      %v763 = vunpack.c.0.s8 %v762
      %v764 = vlaneseq
      %v765 = vshrl.u32 %v764, 7
      %v766 = vsub.s32 %v763, %v765
      %v767 = vrot.slane %v759, %v766
      %769 = vset.pattern.permute.xlu0 0
      %770 = vperm.xlu0 %769, %v405
      %v771 = vpop.permute.xlu0 %770
      %v774 = vunpack.c.l.s4 839922192
      %v775 = vunpack.c.0.s8 %v774
      %v776 = vlaneseq
      %v777 = vshrl.u32 %v776, 7
      %v778 = vsub.s32 %v775, %v777
      %v779 = vrot.slane %v771, %v778
      %781 = vset.pattern.permute.xlu0 0
      %782 = vperm.xlu0 %781, %v406
      %v783 = vpop.permute.xlu0 %782
      %v786 = vunpack.c.l.s4 839922192
      %v787 = vunpack.c.0.s8 %v786
      %v788 = vlaneseq
      %v789 = vshrl.u32 %v788, 7
      %v790 = vsub.s32 %v787, %v789
      %v791 = vrot.slane %v783, %v790
      %v792 = vadd.bf16 %v707, %v680
      %v793 = vadd.bf16 %v707, %v681
      %v794 = vadd.bf16 %v719, %v682
      %v795 = vadd.bf16 %v719, %v683
      %v796 = vadd.bf16 %v731, %v684
      %v797 = vadd.bf16 %v731, %v685
      %v798 = vadd.bf16 %v743, %v686
      %v799 = vadd.bf16 %v743, %v687
      %v800 = vadd.bf16 %v755, %v688
      %v801 = vadd.bf16 %v755, %v689
      %v802 = vadd.bf16 %v767, %v690
      %v803 = vadd.bf16 %v767, %v691
      %v804 = vadd.bf16 %v779, %v692
      %v805 = vadd.bf16 %v779, %v693
      %v806 = vadd.bf16 %v791, %v694
      %v807 = vadd.bf16 %v791, %v695
      %808 = vset.pattern.permute.xlu0 1
      %809 = vperm.xlu0 %808, %v391
      %v810 = vpop.permute.xlu0 %809
      %v813 = vunpack.c.l.s4 839922192
      %v814 = vunpack.c.0.s8 %v813
      %v815 = vlaneseq
      %v816 = vshrl.u32 %v815, 7
      %v817 = vsub.s32 %v814, %v816
      %v818 = vrot.slane %v810, %v817
      %819 = vset.pattern.permute.xlu0 1
      %820 = vperm.xlu0 %819, %v392
      %v821 = vpop.permute.xlu0 %820
      %v824 = vunpack.c.l.s4 839922192
      %v825 = vunpack.c.0.s8 %v824
      %v826 = vlaneseq
      %v827 = vshrl.u32 %v826, 7
      %v828 = vsub.s32 %v825, %v827
      %v829 = vrot.slane %v821, %v828
      %830 = vset.pattern.permute.xlu0 1
      %831 = vperm.xlu0 %830, %v393
      %v832 = vpop.permute.xlu0 %831
      %v835 = vunpack.c.l.s4 839922192
      %v836 = vunpack.c.0.s8 %v835
      %v837 = vlaneseq
      %v838 = vshrl.u32 %v837, 7
      %v839 = vsub.s32 %v836, %v838
      %v840 = vrot.slane %v832, %v839
      %841 = vset.pattern.permute.xlu0 1
      %842 = vperm.xlu0 %841, %v394
      %v843 = vpop.permute.xlu0 %842
      %v846 = vunpack.c.l.s4 839922192
      %v847 = vunpack.c.0.s8 %v846
      %v848 = vlaneseq
      %v849 = vshrl.u32 %v848, 7
      %v850 = vsub.s32 %v847, %v849
      %v851 = vrot.slane %v843, %v850
      %852 = vset.pattern.permute.xlu0 1
      %853 = vperm.xlu0 %852, %v395
      %v854 = vpop.permute.xlu0 %853
      %v857 = vunpack.c.l.s4 839922192
      %v858 = vunpack.c.0.s8 %v857
      %v859 = vlaneseq
      %v860 = vshrl.u32 %v859, 7
      %v861 = vsub.s32 %v858, %v860
      %v862 = vrot.slane %v854, %v861
      %863 = vset.pattern.permute.xlu0 1
      %864 = vperm.xlu0 %863, %v396
      %v865 = vpop.permute.xlu0 %864
      %v868 = vunpack.c.l.s4 839922192
      %v869 = vunpack.c.0.s8 %v868
      %v870 = vlaneseq
      %v871 = vshrl.u32 %v870, 7
      %v872 = vsub.s32 %v869, %v871
      %v873 = vrot.slane %v865, %v872
      %874 = vset.pattern.permute.xlu0 1
      %875 = vperm.xlu0 %874, %v397
      %v876 = vpop.permute.xlu0 %875
      %v879 = vunpack.c.l.s4 839922192
      %v880 = vunpack.c.0.s8 %v879
      %v881 = vlaneseq
      %v882 = vshrl.u32 %v881, 7
      %v883 = vsub.s32 %v880, %v882
      %v884 = vrot.slane %v876, %v883
      %885 = vset.pattern.permute.xlu0 1
      %886 = vperm.xlu0 %885, %v398
      %v887 = vpop.permute.xlu0 %886
      %v890 = vunpack.c.l.s4 839922192
      %v891 = vunpack.c.0.s8 %v890
      %v892 = vlaneseq
      %v893 = vshrl.u32 %v892, 7
      %v894 = vsub.s32 %v891, %v893
      %v895 = vrot.slane %v887, %v894
      %v896 = vshrl.u32 %v630, 16
      %v897 = vpack.i.b16 %v896, %v896
      %v899 = vlaneseq
      %v900 = vshrl.u32 %v899, 7
      %v901 = vsub.s32 0, %v900
      %v902 = vrot.slane %v897, %v901
      %v903 = vshrl.u32 %v638, 16
      %v904 = vpack.i.b16 %v903, %v903
      %v906 = vlaneseq
      %v907 = vshrl.u32 %v906, 7
      %v908 = vsub.s32 0, %v907
      %v909 = vrot.slane %v904, %v908
      %v910 = vshrl.u32 %v637, 16
      %v911 = vpack.i.b16 %v910, %v910
      %v913 = vlaneseq
      %v914 = vshrl.u32 %v913, 7
      %v915 = vsub.s32 0, %v914
      %v916 = vrot.slane %v911, %v915
      %v917 = vshrl.u32 %v639, 16
      %v918 = vpack.i.b16 %v917, %v917
      %v920 = vlaneseq
      %v921 = vshrl.u32 %v920, 7
      %v922 = vsub.s32 0, %v921
      %v923 = vrot.slane %v918, %v922
      %v928 = vunpack.c.l.b16 %v902
      %v929 = vunpack.c.l.b16 %v909
      %v930 = vunpack.c.l.b16 %v916
      %v931 = vunpack.c.l.b16 %v923
      %v932 = vpack.c.b16 %v929, %v928
      %v933 = vpack.c.b16 %v931, %v930
      %v936 = vmul.bf16 %v818, %v932
      %v937 = vmul.bf16 %v818, %v933
      %v938 = vmul.bf16 %v829, %v932
      %v939 = vmul.bf16 %v829, %v933
      %v940 = vmul.bf16 %v840, %v932
      %v941 = vmul.bf16 %v840, %v933
      %v942 = vmul.bf16 %v851, %v932
      %v943 = vmul.bf16 %v851, %v933
      %v944 = vmul.bf16 %v862, %v932
      %v945 = vmul.bf16 %v862, %v933
      %v946 = vmul.bf16 %v873, %v932
      %v947 = vmul.bf16 %v873, %v933
      %v948 = vmul.bf16 %v884, %v932
      %v949 = vmul.bf16 %v884, %v933
      %v950 = vmul.bf16 %v895, %v932
      %v951 = vmul.bf16 %v895, %v933
      %v952 = vadd.bf16 %v792, %v936
      %v953 = vadd.bf16 %v793, %v937
      %v954 = vadd.bf16 %v794, %v938
      %v955 = vadd.bf16 %v795, %v939
      %v956 = vadd.bf16 %v796, %v940
      %v957 = vadd.bf16 %v797, %v941
      %v958 = vadd.bf16 %v798, %v942
      %v959 = vadd.bf16 %v799, %v943
      %v960 = vadd.bf16 %v800, %v944
      %v961 = vadd.bf16 %v801, %v945
      %v962 = vadd.bf16 %v802, %v946
      %v963 = vadd.bf16 %v803, %v947
      %v964 = vadd.bf16 %v804, %v948
      %v965 = vadd.bf16 %v805, %v949
      %v966 = vadd.bf16 %v806, %v950
      %v967 = vadd.bf16 %v807, %v951
      %968 = vset.pattern.permute.xlu0 2
      %969 = vperm.xlu0 %968, %v391
      %v970 = vpop.permute.xlu0 %969
      %v973 = vunpack.c.l.s4 839922192
      %v974 = vunpack.c.0.s8 %v973
      %v975 = vlaneseq
      %v976 = vshrl.u32 %v975, 7
      %v977 = vsub.s32 %v974, %v976
      %v978 = vrot.slane %v970, %v977
      %979 = vset.pattern.permute.xlu0 2
      %980 = vperm.xlu0 %979, %v392
      %v981 = vpop.permute.xlu0 %980
      %v984 = vunpack.c.l.s4 839922192
      %v985 = vunpack.c.0.s8 %v984
      %v986 = vlaneseq
      %v987 = vshrl.u32 %v986, 7
      %v988 = vsub.s32 %v985, %v987
      %v989 = vrot.slane %v981, %v988
      %990 = vset.pattern.permute.xlu0 2
      %991 = vperm.xlu0 %990, %v393
      %v992 = vpop.permute.xlu0 %991
      %v995 = vunpack.c.l.s4 839922192
      %v996 = vunpack.c.0.s8 %v995
      %v997 = vlaneseq
      %v998 = vshrl.u32 %v997, 7
      %v999 = vsub.s32 %v996, %v998
      %v1000 = vrot.slane %v992, %v999
      %1001 = vset.pattern.permute.xlu0 2
      %1002 = vperm.xlu0 %1001, %v394
      %v1003 = vpop.permute.xlu0 %1002
      %v1006 = vunpack.c.l.s4 839922192
      %v1007 = vunpack.c.0.s8 %v1006
      %v1008 = vlaneseq
      %v1009 = vshrl.u32 %v1008, 7
      %v1010 = vsub.s32 %v1007, %v1009
      %v1011 = vrot.slane %v1003, %v1010
      %1012 = vset.pattern.permute.xlu0 2
      %1013 = vperm.xlu0 %1012, %v395
      %v1014 = vpop.permute.xlu0 %1013
      %v1017 = vunpack.c.l.s4 839922192
      %v1018 = vunpack.c.0.s8 %v1017
      %v1019 = vlaneseq
      %v1020 = vshrl.u32 %v1019, 7
      %v1021 = vsub.s32 %v1018, %v1020
      %v1022 = vrot.slane %v1014, %v1021
      %1023 = vset.pattern.permute.xlu0 2
      %1024 = vperm.xlu0 %1023, %v396
      %v1025 = vpop.permute.xlu0 %1024
      %v1028 = vunpack.c.l.s4 839922192
      %v1029 = vunpack.c.0.s8 %v1028
      %v1030 = vlaneseq
      %v1031 = vshrl.u32 %v1030, 7
      %v1032 = vsub.s32 %v1029, %v1031
      %v1033 = vrot.slane %v1025, %v1032
      %1034 = vset.pattern.permute.xlu0 2
      %1035 = vperm.xlu0 %1034, %v397
      %v1036 = vpop.permute.xlu0 %1035
      %v1039 = vunpack.c.l.s4 839922192
      %v1040 = vunpack.c.0.s8 %v1039
      %v1041 = vlaneseq
      %v1042 = vshrl.u32 %v1041, 7
      %v1043 = vsub.s32 %v1040, %v1042
      %v1044 = vrot.slane %v1036, %v1043
      %1045 = vset.pattern.permute.xlu0 2
      %1046 = vperm.xlu0 %1045, %v398
      %v1047 = vpop.permute.xlu0 %1046
      %v1050 = vunpack.c.l.s4 839922192
      %v1051 = vunpack.c.0.s8 %v1050
      %v1052 = vlaneseq
      %v1053 = vshrl.u32 %v1052, 7
      %v1054 = vsub.s32 %v1051, %v1053
      %v1055 = vrot.slane %v1047, %v1054
      %v1056 = vlaneseq
      %v1057 = vshrl.u32 %v1056, 7
      %v1058 = vsub.s32 1, %v1057
      %v1059 = vrot.slane %v641, %v1058
      %v1060 = vlaneseq
      %v1061 = vshrl.u32 %v1060, 7
      %v1062 = vsub.s32 1, %v1061
      %v1063 = vrot.slane %v648, %v1062
      %v1064 = vlaneseq
      %v1065 = vshrl.u32 %v1064, 7
      %v1066 = vsub.s32 1, %v1065
      %v1067 = vrot.slane %v655, %v1066
      %v1068 = vlaneseq
      %v1069 = vshrl.u32 %v1068, 7
      %v1070 = vsub.s32 1, %v1069
      %v1071 = vrot.slane %v662, %v1070
      %v1076 = vunpack.c.l.b16 %v1059
      %v1077 = vunpack.c.l.b16 %v1063
      %v1078 = vunpack.c.l.b16 %v1067
      %v1079 = vunpack.c.l.b16 %v1071
      %v1080 = vpack.c.b16 %v1077, %v1076
      %v1081 = vpack.c.b16 %v1079, %v1078
      %v1084 = vmul.bf16 %v978, %v1080
      %v1085 = vmul.bf16 %v978, %v1081
      %v1086 = vmul.bf16 %v989, %v1080
      %v1087 = vmul.bf16 %v989, %v1081
      %v1088 = vmul.bf16 %v1000, %v1080
      %v1089 = vmul.bf16 %v1000, %v1081
      %v1090 = vmul.bf16 %v1011, %v1080
      %v1091 = vmul.bf16 %v1011, %v1081
      %v1092 = vmul.bf16 %v1022, %v1080
      %v1093 = vmul.bf16 %v1022, %v1081
      %v1094 = vmul.bf16 %v1033, %v1080
      %v1095 = vmul.bf16 %v1033, %v1081
      %v1096 = vmul.bf16 %v1044, %v1080
      %v1097 = vmul.bf16 %v1044, %v1081
      %v1098 = vmul.bf16 %v1055, %v1080
      %v1099 = vmul.bf16 %v1055, %v1081
      %v1100 = vadd.bf16 %v952, %v1084
      %v1101 = vadd.bf16 %v953, %v1085
      %v1102 = vadd.bf16 %v954, %v1086
      %v1103 = vadd.bf16 %v955, %v1087
      %v1104 = vadd.bf16 %v956, %v1088
      %v1105 = vadd.bf16 %v957, %v1089
      %v1106 = vadd.bf16 %v958, %v1090
      %v1107 = vadd.bf16 %v959, %v1091
      %v1108 = vadd.bf16 %v960, %v1092
      %v1109 = vadd.bf16 %v961, %v1093
      %v1110 = vadd.bf16 %v962, %v1094
      %v1111 = vadd.bf16 %v963, %v1095
      %v1112 = vadd.bf16 %v964, %v1096
      %v1113 = vadd.bf16 %v965, %v1097
      %v1114 = vadd.bf16 %v966, %v1098
      %v1115 = vadd.bf16 %v967, %v1099
      %1116 = vset.pattern.permute.xlu0 3
      %1117 = vperm.xlu0 %1116, %v391
      %v1118 = vpop.permute.xlu0 %1117
      %v1121 = vunpack.c.l.s4 839922192
      %v1122 = vunpack.c.0.s8 %v1121
      %v1123 = vlaneseq
      %v1124 = vshrl.u32 %v1123, 7
      %v1125 = vsub.s32 %v1122, %v1124
      %v1126 = vrot.slane %v1118, %v1125
      %1127 = vset.pattern.permute.xlu0 3
      %1128 = vperm.xlu0 %1127, %v392
      %v1129 = vpop.permute.xlu0 %1128
      %v1132 = vunpack.c.l.s4 839922192
      %v1133 = vunpack.c.0.s8 %v1132
      %v1134 = vlaneseq
      %v1135 = vshrl.u32 %v1134, 7
      %v1136 = vsub.s32 %v1133, %v1135
      %v1137 = vrot.slane %v1129, %v1136
      %1138 = vset.pattern.permute.xlu0 3
      %1139 = vperm.xlu0 %1138, %v393
      %v1140 = vpop.permute.xlu0 %1139
      %v1143 = vunpack.c.l.s4 839922192
      %v1144 = vunpack.c.0.s8 %v1143
      %v1145 = vlaneseq
      %v1146 = vshrl.u32 %v1145, 7
      %v1147 = vsub.s32 %v1144, %v1146
      %v1148 = vrot.slane %v1140, %v1147
      %1149 = vset.pattern.permute.xlu0 3
      %1150 = vperm.xlu0 %1149, %v394
      %v1151 = vpop.permute.xlu0 %1150
      %v1154 = vunpack.c.l.s4 839922192
      %v1155 = vunpack.c.0.s8 %v1154
      %v1156 = vlaneseq
      %v1157 = vshrl.u32 %v1156, 7
      %v1158 = vsub.s32 %v1155, %v1157
      %v1159 = vrot.slane %v1151, %v1158
      %1160 = vset.pattern.permute.xlu0 3
      %1161 = vperm.xlu0 %1160, %v395
      %v1162 = vpop.permute.xlu0 %1161
      %v1165 = vunpack.c.l.s4 839922192
      %v1166 = vunpack.c.0.s8 %v1165
      %v1167 = vlaneseq
      %v1168 = vshrl.u32 %v1167, 7
      %v1169 = vsub.s32 %v1166, %v1168
      %v1170 = vrot.slane %v1162, %v1169
      %1171 = vset.pattern.permute.xlu0 3
      %1172 = vperm.xlu0 %1171, %v396
      %v1173 = vpop.permute.xlu0 %1172
      %v1176 = vunpack.c.l.s4 839922192
      %v1177 = vunpack.c.0.s8 %v1176
      %v1178 = vlaneseq
      %v1179 = vshrl.u32 %v1178, 7
      %v1180 = vsub.s32 %v1177, %v1179
      %v1181 = vrot.slane %v1173, %v1180
      %1182 = vset.pattern.permute.xlu0 3
      %1183 = vperm.xlu0 %1182, %v397
      %v1184 = vpop.permute.xlu0 %1183
      %v1187 = vunpack.c.l.s4 839922192
      %v1188 = vunpack.c.0.s8 %v1187
      %v1189 = vlaneseq
      %v1190 = vshrl.u32 %v1189, 7
      %v1191 = vsub.s32 %v1188, %v1190
      %v1192 = vrot.slane %v1184, %v1191
      %1193 = vset.pattern.permute.xlu0 3
      %1194 = vperm.xlu0 %1193, %v398
      %v1195 = vpop.permute.xlu0 %1194
      %v1198 = vunpack.c.l.s4 839922192
      %v1199 = vunpack.c.0.s8 %v1198
      %v1200 = vlaneseq
      %v1201 = vshrl.u32 %v1200, 7
      %v1202 = vsub.s32 %v1199, %v1201
      %v1203 = vrot.slane %v1195, %v1202
      %v1204 = vlaneseq
      %v1205 = vshrl.u32 %v1204, 7
      %v1206 = vsub.s32 1, %v1205
      %v1207 = vrot.slane %v897, %v1206
      %v1208 = vlaneseq
      %v1209 = vshrl.u32 %v1208, 7
      %v1210 = vsub.s32 1, %v1209
      %v1211 = vrot.slane %v904, %v1210
      %v1212 = vlaneseq
      %v1213 = vshrl.u32 %v1212, 7
      %v1214 = vsub.s32 1, %v1213
      %v1215 = vrot.slane %v911, %v1214
      %v1216 = vlaneseq
      %v1217 = vshrl.u32 %v1216, 7
      %v1218 = vsub.s32 1, %v1217
      %v1219 = vrot.slane %v918, %v1218
      %v1224 = vunpack.c.l.b16 %v1207
      %v1225 = vunpack.c.l.b16 %v1211
      %v1226 = vunpack.c.l.b16 %v1215
      %v1227 = vunpack.c.l.b16 %v1219
      %v1228 = vpack.c.b16 %v1225, %v1224
      %v1229 = vpack.c.b16 %v1227, %v1226
      %v1232 = vmul.bf16 %v1126, %v1228
      %v1233 = vmul.bf16 %v1126, %v1229
      %v1234 = vmul.bf16 %v1137, %v1228
      %v1235 = vmul.bf16 %v1137, %v1229
      %v1236 = vmul.bf16 %v1148, %v1228
      %v1237 = vmul.bf16 %v1148, %v1229
      %v1238 = vmul.bf16 %v1159, %v1228
      %v1239 = vmul.bf16 %v1159, %v1229
      %v1240 = vmul.bf16 %v1170, %v1228
      %v1241 = vmul.bf16 %v1170, %v1229
      %v1242 = vmul.bf16 %v1181, %v1228
      %v1243 = vmul.bf16 %v1181, %v1229
      %v1244 = vmul.bf16 %v1192, %v1228
      %v1245 = vmul.bf16 %v1192, %v1229
      %v1246 = vmul.bf16 %v1203, %v1228
      %v1247 = vmul.bf16 %v1203, %v1229
      %v1248 = vadd.bf16 %v1100, %v1232
      %v1249 = vadd.bf16 %v1101, %v1233
      %v1250 = vadd.bf16 %v1102, %v1234
      %v1251 = vadd.bf16 %v1103, %v1235
      %v1252 = vadd.bf16 %v1104, %v1236
      %v1253 = vadd.bf16 %v1105, %v1237
      %v1254 = vadd.bf16 %v1106, %v1238
      %v1255 = vadd.bf16 %v1107, %v1239
      %v1256 = vadd.bf16 %v1108, %v1240
      %v1257 = vadd.bf16 %v1109, %v1241
      %v1258 = vadd.bf16 %v1110, %v1242
      %v1259 = vadd.bf16 %v1111, %v1243
      %v1260 = vadd.bf16 %v1112, %v1244
      %v1261 = vadd.bf16 %v1113, %v1245
      %v1262 = vadd.bf16 %v1114, %v1246
      %v1263 = vadd.bf16 %v1115, %v1247
      %v1264 = vmax.bf16 %v1248, 0
      %v1265 = vmax.bf16 %v1249, 0
      %v1266 = vmax.bf16 %v1250, 0
      %v1267 = vmax.bf16 %v1251, 0
      %v1268 = vmax.bf16 %v1252, 0
      %v1269 = vmax.bf16 %v1253, 0
      %v1270 = vmax.bf16 %v1254, 0
      %v1271 = vmax.bf16 %v1255, 0
      %v1272 = vmax.bf16 %v1256, 0
      %v1273 = vmax.bf16 %v1257, 0
      %v1274 = vmax.bf16 %v1258, 0
      %v1275 = vmax.bf16 %v1259, 0
      %v1276 = vmax.bf16 %v1260, 0
      %v1277 = vmax.bf16 %v1261, 0
      %v1278 = vmax.bf16 %v1262, 0
      %v1279 = vmax.bf16 %v1263, 0
      %v1288 = vunpack.c.l.b16 %v407
      %v1289 = vunpack.c.l.b16 %v408
      %v1290 = vunpack.c.l.b16 %v409
      %v1291 = vunpack.c.l.b16 %v410
      %v1292 = vunpack.c.l.b16 %v411
      %v1293 = vunpack.c.l.b16 %v412
      %v1294 = vunpack.c.l.b16 %v413
      %v1295 = vunpack.c.l.b16 %v414
      %v1296 = vpack.c.b16 %v1289, %v1288
      %v1297 = vpack.c.b16 %v1291, %v1290
      %v1298 = vpack.c.b16 %v1293, %v1292
      %v1299 = vpack.c.b16 %v1295, %v1294
      %v1316 = vunpack.c.l.b16 %v1264
      %v1317 = vunpack.c.h.b16 %v1264
      %v1318 = vunpack.c.l.b16 %v1265
      %v1319 = vunpack.c.h.b16 %v1265
      %v1320 = vunpack.c.l.b16 %v1266
      %v1321 = vunpack.c.h.b16 %v1266
      %v1322 = vunpack.c.l.b16 %v1267
      %v1323 = vunpack.c.h.b16 %v1267
      %v1324 = vunpack.c.l.b16 %v1268
      %v1325 = vunpack.c.h.b16 %v1268
      %v1326 = vunpack.c.l.b16 %v1269
      %v1327 = vunpack.c.h.b16 %v1269
      %v1328 = vunpack.c.l.b16 %v1270
      %v1329 = vunpack.c.h.b16 %v1270
      %v1330 = vunpack.c.l.b16 %v1271
      %v1331 = vunpack.c.h.b16 %v1271
      %v1332 = vunpack.c.l.b16 %v1272
      %v1333 = vunpack.c.h.b16 %v1272
      %v1334 = vunpack.c.l.b16 %v1273
      %v1335 = vunpack.c.h.b16 %v1273
      %v1336 = vunpack.c.l.b16 %v1274
      %v1337 = vunpack.c.h.b16 %v1274
      %v1338 = vunpack.c.l.b16 %v1275
      %v1339 = vunpack.c.h.b16 %v1275
      %v1340 = vunpack.c.l.b16 %v1276
      %v1341 = vunpack.c.h.b16 %v1276
      %v1342 = vunpack.c.l.b16 %v1277
      %v1343 = vunpack.c.h.b16 %v1277
      %v1344 = vunpack.c.l.b16 %v1278
      %v1345 = vunpack.c.h.b16 %v1278
      %v1346 = vunpack.c.l.b16 %v1279
      %v1347 = vunpack.c.h.b16 %v1279
      %v1348 = vpack.c.b16 %v1320, %v1316
      %v1349 = vpack.c.b16 %v1321, %v1317
      %v1350 = vpack.c.b16 %v1322, %v1318
      %v1351 = vpack.c.b16 %v1323, %v1319
      %v1352 = vpack.c.b16 %v1328, %v1324
      %v1353 = vpack.c.b16 %v1329, %v1325
      %v1354 = vpack.c.b16 %v1330, %v1326
      %v1355 = vpack.c.b16 %v1331, %v1327
      %v1356 = vpack.c.b16 %v1336, %v1332
      %v1357 = vpack.c.b16 %v1337, %v1333
      %v1358 = vpack.c.b16 %v1338, %v1334
      %v1359 = vpack.c.b16 %v1339, %v1335
      %v1360 = vpack.c.b16 %v1344, %v1340
      %v1361 = vpack.c.b16 %v1345, %v1341
      %v1362 = vpack.c.b16 %v1346, %v1342
      %v1363 = vpack.c.b16 %v1347, %v1343
      %vm1380 = vcmask 523264
      %v1382 = vsel %vm1380, %v1296, 0
      %v1385 = vsel %vm1380, %v1297, 0
      %v1388 = vsel %vm1380, %v1298, 0
      %v1391 = vsel %vm1380, %v1299, 0
      %1393 = vmatprep.subr.bf16.mxu0 %v1349
      %1394 = vmatpush1.bf16.msra.mxu0 %v1348
      %1395 = vmatprep.subr.bf16.mxu0 %v1353
      %1396 = vmatpush1.bf16.msra.mxu0 %v1352
      %1397 = vmatprep.subr.bf16.mxu0 %v1357
      %1398 = vmatpush1.bf16.msra.mxu0 %v1356
      %1399 = vmatprep.subr.bf16.mxu0 %v1361
      %1400 = vmatpush1.bf16.msra.mxu0 %v1360
      %1401 = vmatprep.subr.bf16.mxu0 0
      %1402 = vmatpush1.bf16.msra.mxu0 0
      %1403 = vmatprep.subr.bf16.mxu0 0
      %1404 = vmatpush1.bf16.msra.mxu0 0
      %1405 = vmatprep.subr.bf16.mxu0 0
      %1406 = vmatpush1.bf16.msra.mxu0 0
      %1407 = vmatprep.subr.bf16.mxu0 0
      %1408 = vmatpush1.bf16.msra.mxu0 0
      %1409 = vmatprep.subr.bf16.mxu0 0
      %1410 = vmatpush1.bf16.msra.mxu0 0
      %1411 = vmatprep.subr.bf16.mxu0 0
      %1412 = vmatpush1.bf16.msra.mxu0 0
      %1413 = vmatprep.subr.bf16.mxu0 0
      %1414 = vmatpush1.bf16.msra.mxu0 0
      %1415 = vmatprep.subr.bf16.mxu0 0
      %1416 = vmatpush1.bf16.msra.mxu0 0
      %1417 = vmatprep.subr.bf16.mxu0 0
      %1418 = vmatpush1.bf16.msra.mxu0 0
      %1419 = vmatprep.subr.bf16.mxu0 0
      %1420 = vmatpush1.bf16.msra.mxu0 0
      %1421 = vmatprep.subr.bf16.mxu0 0
      %1422 = vmatpush1.bf16.msra.mxu0 0
      %1423 = vmatprep.subr.bf16.mxu0 0
      %1424 = vmatpush1.bf16.msra.mxu0 0
      %1425 = vmatprep.mubr.bf16.mxu0 0
      %1426 = vmatmul.mubr.bf16.gmra.mrb[0].mxu0 %v1382
      %v1427 = vpop.f32.mrb[0].mxu0
      %v1428 = vadd.f32 0.0, %v1427
      %v1429 = vpop.f32.mrb[0].mxu0
      %v1430 = vadd.f32 0.0, %v1429
      %v1431 = vpop.f32.mrb[0].mxu0
      %v1432 = vadd.f32 0.0, %v1431
      %v1433 = vpop.f32.mrb[0].mxu0
      %v1434 = vadd.f32 0.0, %v1433
      %1435 = vmatprep.mubr.bf16.mxu0 0
      %1436 = vmatmul.mubr.bf16.gmra.mrb[0].mxu0 %v1385
      %v1437 = vpop.f32.mrb[0].mxu0
      %v1438 = vadd.f32 0.0, %v1437
      %v1439 = vpop.f32.mrb[0].mxu0
      %v1440 = vadd.f32 0.0, %v1439
      %v1441 = vpop.f32.mrb[0].mxu0
      %v1442 = vadd.f32 0.0, %v1441
      %v1443 = vpop.f32.mrb[0].mxu0
      %v1444 = vadd.f32 0.0, %v1443
      %1445 = vmatprep.mubr.bf16.mxu0 0
      %1446 = vmatmul.mubr.bf16.gmra.mrb[0].mxu0 %v1388
      %v1447 = vpop.f32.mrb[0].mxu0
      %v1448 = vadd.f32 0.0, %v1447
      %v1449 = vpop.f32.mrb[0].mxu0
      %v1450 = vadd.f32 0.0, %v1449
      %v1451 = vpop.f32.mrb[0].mxu0
      %v1452 = vadd.f32 0.0, %v1451
      %v1453 = vpop.f32.mrb[0].mxu0
      %v1454 = vadd.f32 0.0, %v1453
      %1455 = vmatprep.mubr.bf16.mxu0 0
      %1456 = vmatmul.mubr.bf16.gmra.mrb[0].mxu0 %v1391
      %v1457 = vpop.f32.mrb[0].mxu0
      %v1458 = vadd.f32 0.0, %v1457
      %v1459 = vpop.f32.mrb[0].mxu0
      %v1460 = vadd.f32 0.0, %v1459
      %v1461 = vpop.f32.mrb[0].mxu0
      %v1462 = vadd.f32 0.0, %v1461
      %v1463 = vpop.f32.mrb[0].mxu0
      %v1464 = vadd.f32 0.0, %v1463
      %1465 = vdwg.mxu0
      %1466 = vmatprep.subr.bf16.mxu0 %v1351
      %1467 = vmatpush1.bf16.msra.mxu0 %v1350
      %1468 = vmatprep.subr.bf16.mxu0 %v1355
      %1469 = vmatpush1.bf16.msra.mxu0 %v1354
      %1470 = vmatprep.subr.bf16.mxu0 %v1359
      %1471 = vmatpush1.bf16.msra.mxu0 %v1358
      %1472 = vmatprep.subr.bf16.mxu0 %v1363
      %1473 = vmatpush1.bf16.msra.mxu0 %v1362
      %1474 = vmatprep.subr.bf16.mxu0 0
      %1475 = vmatpush1.bf16.msra.mxu0 0
      %1476 = vmatprep.subr.bf16.mxu0 0
      %1477 = vmatpush1.bf16.msra.mxu0 0
      %1478 = vmatprep.subr.bf16.mxu0 0
      %1479 = vmatpush1.bf16.msra.mxu0 0
      %1480 = vmatprep.subr.bf16.mxu0 0
      %1481 = vmatpush1.bf16.msra.mxu0 0
      %1482 = vmatprep.subr.bf16.mxu0 0
      %1483 = vmatpush1.bf16.msra.mxu0 0
      %1484 = vmatprep.subr.bf16.mxu0 0
      %1485 = vmatpush1.bf16.msra.mxu0 0
      %1486 = vmatprep.subr.bf16.mxu0 0
      %1487 = vmatpush1.bf16.msra.mxu0 0
      %1488 = vmatprep.subr.bf16.mxu0 0
      %1489 = vmatpush1.bf16.msra.mxu0 0
      %1490 = vmatprep.subr.bf16.mxu0 0
      %1491 = vmatpush1.bf16.msra.mxu0 0
      %1492 = vmatprep.subr.bf16.mxu0 0
      %1493 = vmatpush1.bf16.msra.mxu0 0
      %1494 = vmatprep.subr.bf16.mxu0 0
      %1495 = vmatpush1.bf16.msra.mxu0 0
      %1496 = vmatprep.subr.bf16.mxu0 0
      %1497 = vmatpush1.bf16.msra.mxu0 0
      %1498 = vmatprep.mubr.bf16.mxu0 0
      %1499 = vmatmul.mubr.bf16.gmra.mrb[0].mxu0 %v1382
      %v1500 = vpop.f32.mrb[0].mxu0
      %v1501 = vadd.f32 0.0, %v1500
      %v1502 = vpop.f32.mrb[0].mxu0
      %v1503 = vadd.f32 0.0, %v1502
      %v1504 = vpop.f32.mrb[0].mxu0
      %v1505 = vadd.f32 0.0, %v1504
      %v1506 = vpop.f32.mrb[0].mxu0
      %v1507 = vadd.f32 0.0, %v1506
      %1508 = vmatprep.mubr.bf16.mxu0 0
      %1509 = vmatmul.mubr.bf16.gmra.mrb[0].mxu0 %v1385
      %v1510 = vpop.f32.mrb[0].mxu0
      %v1511 = vadd.f32 0.0, %v1510
      %v1512 = vpop.f32.mrb[0].mxu0
      %v1513 = vadd.f32 0.0, %v1512
      %v1514 = vpop.f32.mrb[0].mxu0
      %v1515 = vadd.f32 0.0, %v1514
      %v1516 = vpop.f32.mrb[0].mxu0
      %v1517 = vadd.f32 0.0, %v1516
      %1518 = vmatprep.mubr.bf16.mxu0 0
      %1519 = vmatmul.mubr.bf16.gmra.mrb[0].mxu0 %v1388
      %v1520 = vpop.f32.mrb[0].mxu0
      %v1521 = vadd.f32 0.0, %v1520
      %v1522 = vpop.f32.mrb[0].mxu0
      %v1523 = vadd.f32 0.0, %v1522
      %v1524 = vpop.f32.mrb[0].mxu0
      %v1525 = vadd.f32 0.0, %v1524
      %v1526 = vpop.f32.mrb[0].mxu0
      %v1527 = vadd.f32 0.0, %v1526
      %1528 = vmatprep.mubr.bf16.mxu0 0
      %1529 = vmatmul.mubr.bf16.gmra.mrb[0].mxu0 %v1391
      %v1530 = vpop.f32.mrb[0].mxu0
      %v1531 = vadd.f32 0.0, %v1530
      %v1532 = vpop.f32.mrb[0].mxu0
      %v1533 = vadd.f32 0.0, %v1532
      %v1534 = vpop.f32.mrb[0].mxu0
      %v1535 = vadd.f32 0.0, %v1534
      %v1536 = vpop.f32.mrb[0].mxu0
      %v1537 = vadd.f32 0.0, %v1536
      %1538 = vdwg.mxu0
      %v1539 = vpack.c.bf16 %v1432, %v1428
      %v1540 = vpack.c.bf16 %v1434, %v1430
      %v1541 = vpack.c.bf16 %v1505, %v1501
      %v1542 = vpack.c.bf16 %v1507, %v1503
      %v1543 = vpack.c.bf16 %v1442, %v1438
      %v1544 = vpack.c.bf16 %v1444, %v1440
      %v1545 = vpack.c.bf16 %v1515, %v1511
      %v1546 = vpack.c.bf16 %v1517, %v1513
      %v1547 = vpack.c.bf16 %v1452, %v1448
      %v1548 = vpack.c.bf16 %v1454, %v1450
      %v1549 = vpack.c.bf16 %v1525, %v1521
      %v1550 = vpack.c.bf16 %v1527, %v1523
      %v1551 = vpack.c.bf16 %v1462, %v1458
      %v1552 = vpack.c.bf16 %v1464, %v1460
      %v1553 = vpack.c.bf16 %v1535, %v1531
      %v1554 = vpack.c.bf16 %v1537, %v1533
      %1556 = vset.pattern.permute.xlu0 0
      %1557 = vperm.xlu0 %1556, %v433
      %v1558 = vpop.permute.xlu0 %1557
      %v1561 = vunpack.c.l.s4 839922192
      %v1562 = vunpack.c.0.s8 %v1561
      %v1563 = vlaneseq
      %v1564 = vshrl.u32 %v1563, 7
      %v1565 = vsub.s32 %v1562, %v1564
      %v1566 = vrot.slane %v1558, %v1565
      %1568 = vset.pattern.permute.xlu0 0
      %1569 = vperm.xlu0 %1568, %v434
      %v1570 = vpop.permute.xlu0 %1569
      %v1573 = vunpack.c.l.s4 839922192
      %v1574 = vunpack.c.0.s8 %v1573
      %v1575 = vlaneseq
      %v1576 = vshrl.u32 %v1575, 7
      %v1577 = vsub.s32 %v1574, %v1576
      %v1578 = vrot.slane %v1570, %v1577
      %1580 = vset.pattern.permute.xlu0 0
      %1581 = vperm.xlu0 %1580, %v435
      %v1582 = vpop.permute.xlu0 %1581
      %v1585 = vunpack.c.l.s4 839922192
      %v1586 = vunpack.c.0.s8 %v1585
      %v1587 = vlaneseq
      %v1588 = vshrl.u32 %v1587, 7
      %v1589 = vsub.s32 %v1586, %v1588
      %v1590 = vrot.slane %v1582, %v1589
      %1592 = vset.pattern.permute.xlu0 0
      %1593 = vperm.xlu0 %1592, %v436
      %v1594 = vpop.permute.xlu0 %1593
      %v1597 = vunpack.c.l.s4 839922192
      %v1598 = vunpack.c.0.s8 %v1597
      %v1599 = vlaneseq
      %v1600 = vshrl.u32 %v1599, 7
      %v1601 = vsub.s32 %v1598, %v1600
      %v1602 = vrot.slane %v1594, %v1601
      %1604 = vset.pattern.permute.xlu0 0
      %1605 = vperm.xlu0 %1604, %v437
      %v1606 = vpop.permute.xlu0 %1605
      %v1609 = vunpack.c.l.s4 839922192
      %v1610 = vunpack.c.0.s8 %v1609
      %v1611 = vlaneseq
      %v1612 = vshrl.u32 %v1611, 7
      %v1613 = vsub.s32 %v1610, %v1612
      %v1614 = vrot.slane %v1606, %v1613
      %1616 = vset.pattern.permute.xlu0 0
      %1617 = vperm.xlu0 %1616, %v438
      %v1618 = vpop.permute.xlu0 %1617
      %v1621 = vunpack.c.l.s4 839922192
      %v1622 = vunpack.c.0.s8 %v1621
      %v1623 = vlaneseq
      %v1624 = vshrl.u32 %v1623, 7
      %v1625 = vsub.s32 %v1622, %v1624
      %v1626 = vrot.slane %v1618, %v1625
      %1628 = vset.pattern.permute.xlu0 0
      %1629 = vperm.xlu0 %1628, %v439
      %v1630 = vpop.permute.xlu0 %1629
      %v1633 = vunpack.c.l.s4 839922192
      %v1634 = vunpack.c.0.s8 %v1633
      %v1635 = vlaneseq
      %v1636 = vshrl.u32 %v1635, 7
      %v1637 = vsub.s32 %v1634, %v1636
      %v1638 = vrot.slane %v1630, %v1637
      %1640 = vset.pattern.permute.xlu0 0
      %1641 = vperm.xlu0 %1640, %v440
      %v1642 = vpop.permute.xlu0 %1641
      %v1645 = vunpack.c.l.s4 839922192
      %v1646 = vunpack.c.0.s8 %v1645
      %v1647 = vlaneseq
      %v1648 = vshrl.u32 %v1647, 7
      %v1649 = vsub.s32 %v1646, %v1648
      %v1650 = vrot.slane %v1642, %v1649
      %v1659 = vunpack.c.l.b16 %v1566
      %v1660 = vunpack.c.l.b16 %v1578
      %v1661 = vunpack.c.l.b16 %v1590
      %v1662 = vunpack.c.l.b16 %v1602
      %v1663 = vunpack.c.l.b16 %v1614
      %v1664 = vunpack.c.l.b16 %v1626
      %v1665 = vunpack.c.l.b16 %v1638
      %v1666 = vunpack.c.l.b16 %v1650
      %v1667 = vpack.c.b16 %v1660, %v1659
      %v1668 = vpack.c.b16 %v1662, %v1661
      %v1669 = vpack.c.b16 %v1664, %v1663
      %v1670 = vpack.c.b16 %v1666, %v1665
      %v1675 = vadd.bf16 %v1539, %v1667
      %v1676 = vadd.bf16 %v1540, %v1667
      %v1677 = vadd.bf16 %v1541, %v1667
      %v1678 = vadd.bf16 %v1542, %v1667
      %v1679 = vadd.bf16 %v1543, %v1668
      %v1680 = vadd.bf16 %v1544, %v1668
      %v1681 = vadd.bf16 %v1545, %v1668
      %v1682 = vadd.bf16 %v1546, %v1668
      %v1683 = vadd.bf16 %v1547, %v1669
      %v1684 = vadd.bf16 %v1548, %v1669
      %v1685 = vadd.bf16 %v1549, %v1669
      %v1686 = vadd.bf16 %v1550, %v1669
      %v1687 = vadd.bf16 %v1551, %v1670
      %v1688 = vadd.bf16 %v1552, %v1670
      %v1689 = vadd.bf16 %v1553, %v1670
      %v1690 = vadd.bf16 %v1554, %v1670
      %v1691 = vmax.bf16 %v1675, 0
      %v1692 = vmax.bf16 %v1676, 0
      %v1693 = vmax.bf16 %v1677, 0
      %v1694 = vmax.bf16 %v1678, 0
      %v1695 = vmax.bf16 %v1679, 0
      %v1696 = vmax.bf16 %v1680, 0
      %v1697 = vmax.bf16 %v1681, 0
      %v1698 = vmax.bf16 %v1682, 0
      %v1699 = vmax.bf16 %v1683, 0
      %v1700 = vmax.bf16 %v1684, 0
      %v1701 = vmax.bf16 %v1685, 0
      %v1702 = vmax.bf16 %v1686, 0
      %v1703 = vmax.bf16 %v1687, 0
      %v1704 = vmax.bf16 %v1688, 0
      %v1705 = vmax.bf16 %v1689, 0
      %v1706 = vmax.bf16 %v1690, 0
      %v1715 = vunpack.c.l.b16 %v416
      %v1716 = vunpack.c.l.b16 %v417
      %v1717 = vunpack.c.l.b16 %v418
      %v1718 = vunpack.c.l.b16 %v419
      %v1719 = vunpack.c.l.b16 %v420
      %v1720 = vunpack.c.l.b16 %v421
      %v1721 = vunpack.c.l.b16 %v422
      %v1722 = vunpack.c.l.b16 %v423
      %v1723 = vpack.c.b16 %v1716, %v1715
      %v1724 = vpack.c.b16 %v1718, %v1717
      %v1725 = vpack.c.b16 %v1720, %v1719
      %v1726 = vpack.c.b16 %v1722, %v1721
      %v1728 = vsel %vm1380, %v1723, 0
      %v1731 = vsel %vm1380, %v1724, 0
      %v1734 = vsel %vm1380, %v1725, 0
      %v1737 = vsel %vm1380, %v1726, 0
      %1739 = vmatprep.subr.bf16.mxu0 %v1692
      %1740 = vmatpush1.bf16.msra.mxu0 %v1691
      %1741 = vmatprep.subr.bf16.mxu0 %v1696
      %1742 = vmatpush1.bf16.msra.mxu0 %v1695
      %1743 = vmatprep.subr.bf16.mxu0 %v1700
      %1744 = vmatpush1.bf16.msra.mxu0 %v1699
      %1745 = vmatprep.subr.bf16.mxu0 %v1704
      %1746 = vmatpush1.bf16.msra.mxu0 %v1703
      %1747 = vmatprep.subr.bf16.mxu0 0
      %1748 = vmatpush1.bf16.msra.mxu0 0
      %1749 = vmatprep.subr.bf16.mxu0 0
      %1750 = vmatpush1.bf16.msra.mxu0 0
      %1751 = vmatprep.subr.bf16.mxu0 0
      %1752 = vmatpush1.bf16.msra.mxu0 0
      %1753 = vmatprep.subr.bf16.mxu0 0
      %1754 = vmatpush1.bf16.msra.mxu0 0
      %1755 = vmatprep.subr.bf16.mxu0 0
      %1756 = vmatpush1.bf16.msra.mxu0 0
      %1757 = vmatprep.subr.bf16.mxu0 0
      %1758 = vmatpush1.bf16.msra.mxu0 0
      %1759 = vmatprep.subr.bf16.mxu0 0
      %1760 = vmatpush1.bf16.msra.mxu0 0
      %1761 = vmatprep.subr.bf16.mxu0 0
      %1762 = vmatpush1.bf16.msra.mxu0 0
      %1763 = vmatprep.subr.bf16.mxu0 0
      %1764 = vmatpush1.bf16.msra.mxu0 0
      %1765 = vmatprep.subr.bf16.mxu0 0
      %1766 = vmatpush1.bf16.msra.mxu0 0
      %1767 = vmatprep.subr.bf16.mxu0 0
      %1768 = vmatpush1.bf16.msra.mxu0 0
      %1769 = vmatprep.subr.bf16.mxu0 0
      %1770 = vmatpush1.bf16.msra.mxu0 0
      %1771 = vmatprep.mubr.bf16.mxu0 0
      %1772 = vmatmul.mubr.bf16.gmra.mrb[0].mxu0 %v1728
      %v1773 = vpop.f32.mrb[0].mxu0
      %v1774 = vadd.f32 0.0, %v1773
      %v1775 = vpop.f32.mrb[0].mxu0
      %v1776 = vadd.f32 0.0, %v1775
      %v1777 = vpop.f32.mrb[0].mxu0
      %v1778 = vadd.f32 0.0, %v1777
      %v1779 = vpop.f32.mrb[0].mxu0
      %v1780 = vadd.f32 0.0, %v1779
      %1781 = vmatprep.mubr.bf16.mxu0 0
      %1782 = vmatmul.mubr.bf16.gmra.mrb[0].mxu0 %v1731
      %v1783 = vpop.f32.mrb[0].mxu0
      %v1784 = vadd.f32 0.0, %v1783
      %v1785 = vpop.f32.mrb[0].mxu0
      %v1786 = vadd.f32 0.0, %v1785
      %v1787 = vpop.f32.mrb[0].mxu0
      %v1788 = vadd.f32 0.0, %v1787
      %v1789 = vpop.f32.mrb[0].mxu0
      %v1790 = vadd.f32 0.0, %v1789
      %1791 = vmatprep.mubr.bf16.mxu0 0
      %1792 = vmatmul.mubr.bf16.gmra.mrb[0].mxu0 %v1734
      %v1793 = vpop.f32.mrb[0].mxu0
      %v1794 = vadd.f32 0.0, %v1793
      %v1795 = vpop.f32.mrb[0].mxu0
      %v1796 = vadd.f32 0.0, %v1795
      %v1797 = vpop.f32.mrb[0].mxu0
      %v1798 = vadd.f32 0.0, %v1797
      %v1799 = vpop.f32.mrb[0].mxu0
      %v1800 = vadd.f32 0.0, %v1799
      %1801 = vmatprep.mubr.bf16.mxu0 0
      %1802 = vmatmul.mubr.bf16.gmra.mrb[0].mxu0 %v1737
      %v1803 = vpop.f32.mrb[0].mxu0
      %v1804 = vadd.f32 0.0, %v1803
      %v1805 = vpop.f32.mrb[0].mxu0
      %v1806 = vadd.f32 0.0, %v1805
      %v1807 = vpop.f32.mrb[0].mxu0
      %v1808 = vadd.f32 0.0, %v1807
      %v1809 = vpop.f32.mrb[0].mxu0
      %v1810 = vadd.f32 0.0, %v1809
      %1811 = vdwg.mxu0
      %1812 = vmatprep.subr.bf16.mxu0 %v1694
      %1813 = vmatpush1.bf16.msra.mxu0 %v1693
      %1814 = vmatprep.subr.bf16.mxu0 %v1698
      %1815 = vmatpush1.bf16.msra.mxu0 %v1697
      %1816 = vmatprep.subr.bf16.mxu0 %v1702
      %1817 = vmatpush1.bf16.msra.mxu0 %v1701
      %1818 = vmatprep.subr.bf16.mxu0 %v1706
      %1819 = vmatpush1.bf16.msra.mxu0 %v1705
      %1820 = vmatprep.subr.bf16.mxu0 0
      %1821 = vmatpush1.bf16.msra.mxu0 0
      %1822 = vmatprep.subr.bf16.mxu0 0
      %1823 = vmatpush1.bf16.msra.mxu0 0
      %1824 = vmatprep.subr.bf16.mxu0 0
      %1825 = vmatpush1.bf16.msra.mxu0 0
      %1826 = vmatprep.subr.bf16.mxu0 0
      %1827 = vmatpush1.bf16.msra.mxu0 0
      %1828 = vmatprep.subr.bf16.mxu0 0
      %1829 = vmatpush1.bf16.msra.mxu0 0
      %1830 = vmatprep.subr.bf16.mxu0 0
      %1831 = vmatpush1.bf16.msra.mxu0 0
      %1832 = vmatprep.subr.bf16.mxu0 0
      %1833 = vmatpush1.bf16.msra.mxu0 0
      %1834 = vmatprep.subr.bf16.mxu0 0
      %1835 = vmatpush1.bf16.msra.mxu0 0
      %1836 = vmatprep.subr.bf16.mxu0 0
      %1837 = vmatpush1.bf16.msra.mxu0 0
      %1838 = vmatprep.subr.bf16.mxu0 0
      %1839 = vmatpush1.bf16.msra.mxu0 0
      %1840 = vmatprep.subr.bf16.mxu0 0
      %1841 = vmatpush1.bf16.msra.mxu0 0
      %1842 = vmatprep.subr.bf16.mxu0 0
      %1843 = vmatpush1.bf16.msra.mxu0 0
      %1844 = vmatprep.mubr.bf16.mxu0 0
      %1845 = vmatmul.mubr.bf16.gmra.mrb[0].mxu0 %v1728
      %v1846 = vpop.f32.mrb[0].mxu0
      %v1847 = vadd.f32 0.0, %v1846
      %v1848 = vpop.f32.mrb[0].mxu0
      %v1849 = vadd.f32 0.0, %v1848
      %v1850 = vpop.f32.mrb[0].mxu0
      %v1851 = vadd.f32 0.0, %v1850
      %v1852 = vpop.f32.mrb[0].mxu0
      %v1853 = vadd.f32 0.0, %v1852
      %1854 = vmatprep.mubr.bf16.mxu0 0
      %1855 = vmatmul.mubr.bf16.gmra.mrb[0].mxu0 %v1731
      %v1856 = vpop.f32.mrb[0].mxu0
      %v1857 = vadd.f32 0.0, %v1856
      %v1858 = vpop.f32.mrb[0].mxu0
      %v1859 = vadd.f32 0.0, %v1858
      %v1860 = vpop.f32.mrb[0].mxu0
      %v1861 = vadd.f32 0.0, %v1860
      %v1862 = vpop.f32.mrb[0].mxu0
      %v1863 = vadd.f32 0.0, %v1862
      %1864 = vmatprep.mubr.bf16.mxu0 0
      %1865 = vmatmul.mubr.bf16.gmra.mrb[0].mxu0 %v1734
      %v1866 = vpop.f32.mrb[0].mxu0
      %v1867 = vadd.f32 0.0, %v1866
      %v1868 = vpop.f32.mrb[0].mxu0
      %v1869 = vadd.f32 0.0, %v1868
      %v1870 = vpop.f32.mrb[0].mxu0
      %v1871 = vadd.f32 0.0, %v1870
      %v1872 = vpop.f32.mrb[0].mxu0
      %v1873 = vadd.f32 0.0, %v1872
      %1874 = vmatprep.mubr.bf16.mxu0 0
      %1875 = vmatmul.mubr.bf16.gmra.mrb[0].mxu0 %v1737
      %v1876 = vpop.f32.mrb[0].mxu0
      %v1877 = vadd.f32 0.0, %v1876
      %v1878 = vpop.f32.mrb[0].mxu0
      %v1879 = vadd.f32 0.0, %v1878
      %v1880 = vpop.f32.mrb[0].mxu0
      %v1881 = vadd.f32 0.0, %v1880
      %v1882 = vpop.f32.mrb[0].mxu0
      %v1883 = vadd.f32 0.0, %v1882
      %1884 = vdwg.mxu0
      %v1885 = vpack.c.bf16 %v1778, %v1774
      %v1886 = vpack.c.bf16 %v1780, %v1776
      %v1887 = vpack.c.bf16 %v1851, %v1847
      %v1888 = vpack.c.bf16 %v1853, %v1849
      %v1889 = vpack.c.bf16 %v1788, %v1784
      %v1890 = vpack.c.bf16 %v1790, %v1786
      %v1891 = vpack.c.bf16 %v1861, %v1857
      %v1892 = vpack.c.bf16 %v1863, %v1859
      %v1893 = vpack.c.bf16 %v1798, %v1794
      %v1894 = vpack.c.bf16 %v1800, %v1796
      %v1895 = vpack.c.bf16 %v1871, %v1867
      %v1896 = vpack.c.bf16 %v1873, %v1869
      %v1897 = vpack.c.bf16 %v1808, %v1804
      %v1898 = vpack.c.bf16 %v1810, %v1806
      %v1899 = vpack.c.bf16 %v1881, %v1877
      %v1900 = vpack.c.bf16 %v1883, %v1879
      %1902 = vset.pattern.permute.xlu0 0
      %1903 = vperm.xlu0 %1902, %v442
      %v1904 = vpop.permute.xlu0 %1903
      %v1907 = vunpack.c.l.s4 839922192
      %v1908 = vunpack.c.0.s8 %v1907
      %v1909 = vlaneseq
      %v1910 = vshrl.u32 %v1909, 7
      %v1911 = vsub.s32 %v1908, %v1910
      %v1912 = vrot.slane %v1904, %v1911
      %1914 = vset.pattern.permute.xlu0 0
      %1915 = vperm.xlu0 %1914, %v443
      %v1916 = vpop.permute.xlu0 %1915
      %v1919 = vunpack.c.l.s4 839922192
      %v1920 = vunpack.c.0.s8 %v1919
      %v1921 = vlaneseq
      %v1922 = vshrl.u32 %v1921, 7
      %v1923 = vsub.s32 %v1920, %v1922
      %v1924 = vrot.slane %v1916, %v1923
      %1926 = vset.pattern.permute.xlu0 0
      %1927 = vperm.xlu0 %1926, %v444
      %v1928 = vpop.permute.xlu0 %1927
      %v1931 = vunpack.c.l.s4 839922192
      %v1932 = vunpack.c.0.s8 %v1931
      %v1933 = vlaneseq
      %v1934 = vshrl.u32 %v1933, 7
      %v1935 = vsub.s32 %v1932, %v1934
      %v1936 = vrot.slane %v1928, %v1935
      %1938 = vset.pattern.permute.xlu0 0
      %1939 = vperm.xlu0 %1938, %v445
      %v1940 = vpop.permute.xlu0 %1939
      %v1943 = vunpack.c.l.s4 839922192
      %v1944 = vunpack.c.0.s8 %v1943
      %v1945 = vlaneseq
      %v1946 = vshrl.u32 %v1945, 7
      %v1947 = vsub.s32 %v1944, %v1946
      %v1948 = vrot.slane %v1940, %v1947
      %1950 = vset.pattern.permute.xlu0 0
      %1951 = vperm.xlu0 %1950, %v446
      %v1952 = vpop.permute.xlu0 %1951
      %v1955 = vunpack.c.l.s4 839922192
      %v1956 = vunpack.c.0.s8 %v1955
      %v1957 = vlaneseq
      %v1958 = vshrl.u32 %v1957, 7
      %v1959 = vsub.s32 %v1956, %v1958
      %v1960 = vrot.slane %v1952, %v1959
      %1962 = vset.pattern.permute.xlu0 0
      %1963 = vperm.xlu0 %1962, %v447
      %v1964 = vpop.permute.xlu0 %1963
      %v1967 = vunpack.c.l.s4 839922192
      %v1968 = vunpack.c.0.s8 %v1967
      %v1969 = vlaneseq
      %v1970 = vshrl.u32 %v1969, 7
      %v1971 = vsub.s32 %v1968, %v1970
      %v1972 = vrot.slane %v1964, %v1971
      %1974 = vset.pattern.permute.xlu0 0
      %1975 = vperm.xlu0 %1974, %v448
      %v1976 = vpop.permute.xlu0 %1975
      %v1979 = vunpack.c.l.s4 839922192
      %v1980 = vunpack.c.0.s8 %v1979
      %v1981 = vlaneseq
      %v1982 = vshrl.u32 %v1981, 7
      %v1983 = vsub.s32 %v1980, %v1982
      %v1984 = vrot.slane %v1976, %v1983
      %1986 = vset.pattern.permute.xlu0 0
      %1987 = vperm.xlu0 %1986, %v449
      %v1988 = vpop.permute.xlu0 %1987
      %v1991 = vunpack.c.l.s4 839922192
      %v1992 = vunpack.c.0.s8 %v1991
      %v1993 = vlaneseq
      %v1994 = vshrl.u32 %v1993, 7
      %v1995 = vsub.s32 %v1992, %v1994
      %v1996 = vrot.slane %v1988, %v1995
      %v2005 = vunpack.c.l.b16 %v1912
      %v2006 = vunpack.c.l.b16 %v1924
      %v2007 = vunpack.c.l.b16 %v1936
      %v2008 = vunpack.c.l.b16 %v1948
      %v2009 = vunpack.c.l.b16 %v1960
      %v2010 = vunpack.c.l.b16 %v1972
      %v2011 = vunpack.c.l.b16 %v1984
      %v2012 = vunpack.c.l.b16 %v1996
      %v2013 = vpack.c.b16 %v2006, %v2005
      %v2014 = vpack.c.b16 %v2008, %v2007
      %v2015 = vpack.c.b16 %v2010, %v2009
      %v2016 = vpack.c.b16 %v2012, %v2011
      %v2021 = vadd.bf16 %v1885, %v2013
      %v2022 = vadd.bf16 %v1886, %v2013
      %v2023 = vadd.bf16 %v1887, %v2013
      %v2024 = vadd.bf16 %v1888, %v2013
      %v2025 = vadd.bf16 %v1889, %v2014
      %v2026 = vadd.bf16 %v1890, %v2014
      %v2027 = vadd.bf16 %v1891, %v2014
      %v2028 = vadd.bf16 %v1892, %v2014
      %v2029 = vadd.bf16 %v1893, %v2015
      %v2030 = vadd.bf16 %v1894, %v2015
      %v2031 = vadd.bf16 %v1895, %v2015
      %v2032 = vadd.bf16 %v1896, %v2015
      %v2033 = vadd.bf16 %v1897, %v2016
      %v2034 = vadd.bf16 %v1898, %v2016
      %v2035 = vadd.bf16 %v1899, %v2016
      %v2036 = vadd.bf16 %v1900, %v2016
      %v2037 = vmax.bf16 %v2021, 0
      %v2038 = vmax.bf16 %v2022, 0
      %v2039 = vmax.bf16 %v2023, 0
      %v2040 = vmax.bf16 %v2024, 0
      %v2041 = vmax.bf16 %v2025, 0
      %v2042 = vmax.bf16 %v2026, 0
      %v2043 = vmax.bf16 %v2027, 0
      %v2044 = vmax.bf16 %v2028, 0
      %v2045 = vmax.bf16 %v2029, 0
      %v2046 = vmax.bf16 %v2030, 0
      %v2047 = vmax.bf16 %v2031, 0
      %v2048 = vmax.bf16 %v2032, 0
      %v2049 = vmax.bf16 %v2033, 0
      %v2050 = vmax.bf16 %v2034, 0
      %v2051 = vmax.bf16 %v2035, 0
      %v2052 = vmax.bf16 %v2036, 0
      %v2061 = vunpack.c.l.b16 %v425
      %v2062 = vunpack.c.l.b16 %v426
      %v2063 = vunpack.c.l.b16 %v427
      %v2064 = vunpack.c.l.b16 %v428
      %v2065 = vunpack.c.l.b16 %v429
      %v2066 = vunpack.c.l.b16 %v430
      %v2067 = vunpack.c.l.b16 %v431
      %v2068 = vunpack.c.l.b16 %v432
      %v2069 = vpack.c.b16 %v2062, %v2061
      %v2070 = vpack.c.b16 %v2064, %v2063
      %v2071 = vpack.c.b16 %v2066, %v2065
      %v2072 = vpack.c.b16 %v2068, %v2067
      %v2074 = vsel %vm1380, %v2069, 0
      %v2077 = vsel %vm1380, %v2070, 0
      %v2080 = vsel %vm1380, %v2071, 0
      %v2083 = vsel %vm1380, %v2072, 0
      %2085 = vmatprep.subr.bf16.mxu0 %v2038
      %2086 = vmatpush1.bf16.msra.mxu0 %v2037
      %2087 = vmatprep.subr.bf16.mxu0 %v2042
      %2088 = vmatpush1.bf16.msra.mxu0 %v2041
      %2089 = vmatprep.subr.bf16.mxu0 %v2046
      %2090 = vmatpush1.bf16.msra.mxu0 %v2045
      %2091 = vmatprep.subr.bf16.mxu0 %v2050
      %2092 = vmatpush1.bf16.msra.mxu0 %v2049
      %2093 = vmatprep.subr.bf16.mxu0 0
      %2094 = vmatpush1.bf16.msra.mxu0 0
      %2095 = vmatprep.subr.bf16.mxu0 0
      %2096 = vmatpush1.bf16.msra.mxu0 0
      %2097 = vmatprep.subr.bf16.mxu0 0
      %2098 = vmatpush1.bf16.msra.mxu0 0
      %2099 = vmatprep.subr.bf16.mxu0 0
      %2100 = vmatpush1.bf16.msra.mxu0 0
      %2101 = vmatprep.subr.bf16.mxu0 0
      %2102 = vmatpush1.bf16.msra.mxu0 0
      %2103 = vmatprep.subr.bf16.mxu0 0
      %2104 = vmatpush1.bf16.msra.mxu0 0
      %2105 = vmatprep.subr.bf16.mxu0 0
      %2106 = vmatpush1.bf16.msra.mxu0 0
      %2107 = vmatprep.subr.bf16.mxu0 0
      %2108 = vmatpush1.bf16.msra.mxu0 0
      %2109 = vmatprep.subr.bf16.mxu0 0
      %2110 = vmatpush1.bf16.msra.mxu0 0
      %2111 = vmatprep.subr.bf16.mxu0 0
      %2112 = vmatpush1.bf16.msra.mxu0 0
      %2113 = vmatprep.subr.bf16.mxu0 0
      %2114 = vmatpush1.bf16.msra.mxu0 0
      %2115 = vmatprep.subr.bf16.mxu0 0
      %2116 = vmatpush1.bf16.msra.mxu0 0
      %2117 = vmatprep.mubr.bf16.mxu0 0
      %2118 = vmatmul.mubr.bf16.gmra.mrb[0].mxu0 %v2074
      %v2119 = vpop.f32.mrb[0].mxu0
      %v2120 = vadd.f32 0.0, %v2119
      %v2121 = vpop.f32.mrb[0].mxu0
      %v2122 = vadd.f32 0.0, %v2121
      %v2123 = vpop.f32.mrb[0].mxu0
      %v2124 = vadd.f32 0.0, %v2123
      %v2125 = vpop.f32.mrb[0].mxu0
      %v2126 = vadd.f32 0.0, %v2125
      %2127 = vmatprep.mubr.bf16.mxu0 0
      %2128 = vmatmul.mubr.bf16.gmra.mrb[0].mxu0 %v2077
      %v2129 = vpop.f32.mrb[0].mxu0
      %v2130 = vadd.f32 0.0, %v2129
      %v2131 = vpop.f32.mrb[0].mxu0
      %v2132 = vadd.f32 0.0, %v2131
      %v2133 = vpop.f32.mrb[0].mxu0
      %v2134 = vadd.f32 0.0, %v2133
      %v2135 = vpop.f32.mrb[0].mxu0
      %v2136 = vadd.f32 0.0, %v2135
      %2137 = vmatprep.mubr.bf16.mxu0 0
      %2138 = vmatmul.mubr.bf16.gmra.mrb[0].mxu0 %v2080
      %v2139 = vpop.f32.mrb[0].mxu0
      %v2140 = vadd.f32 0.0, %v2139
      %v2141 = vpop.f32.mrb[0].mxu0
      %v2142 = vadd.f32 0.0, %v2141
      %v2143 = vpop.f32.mrb[0].mxu0
      %v2144 = vadd.f32 0.0, %v2143
      %v2145 = vpop.f32.mrb[0].mxu0
      %v2146 = vadd.f32 0.0, %v2145
      %2147 = vmatprep.mubr.bf16.mxu0 0
      %2148 = vmatmul.mubr.bf16.gmra.mrb[0].mxu0 %v2083
      %v2149 = vpop.f32.mrb[0].mxu0
      %v2150 = vadd.f32 0.0, %v2149
      %v2151 = vpop.f32.mrb[0].mxu0
      %v2152 = vadd.f32 0.0, %v2151
      %v2153 = vpop.f32.mrb[0].mxu0
      %v2154 = vadd.f32 0.0, %v2153
      %v2155 = vpop.f32.mrb[0].mxu0
      %v2156 = vadd.f32 0.0, %v2155
      %2157 = vdwg.mxu0
      %2158 = vmatprep.subr.bf16.mxu0 %v2040
      %2159 = vmatpush1.bf16.msra.mxu0 %v2039
      %2160 = vmatprep.subr.bf16.mxu0 %v2044
      %2161 = vmatpush1.bf16.msra.mxu0 %v2043
      %2162 = vmatprep.subr.bf16.mxu0 %v2048
      %2163 = vmatpush1.bf16.msra.mxu0 %v2047
      %2164 = vmatprep.subr.bf16.mxu0 %v2052
      %2165 = vmatpush1.bf16.msra.mxu0 %v2051
      %2166 = vmatprep.subr.bf16.mxu0 0
      %2167 = vmatpush1.bf16.msra.mxu0 0
      %2168 = vmatprep.subr.bf16.mxu0 0
      %2169 = vmatpush1.bf16.msra.mxu0 0
      %2170 = vmatprep.subr.bf16.mxu0 0
      %2171 = vmatpush1.bf16.msra.mxu0 0
      %2172 = vmatprep.subr.bf16.mxu0 0
      %2173 = vmatpush1.bf16.msra.mxu0 0
      %2174 = vmatprep.subr.bf16.mxu0 0
      %2175 = vmatpush1.bf16.msra.mxu0 0
      %2176 = vmatprep.subr.bf16.mxu0 0
      %2177 = vmatpush1.bf16.msra.mxu0 0
      %2178 = vmatprep.subr.bf16.mxu0 0
      %2179 = vmatpush1.bf16.msra.mxu0 0
      %2180 = vmatprep.subr.bf16.mxu0 0
      %2181 = vmatpush1.bf16.msra.mxu0 0
      %2182 = vmatprep.subr.bf16.mxu0 0
      %2183 = vmatpush1.bf16.msra.mxu0 0
      %2184 = vmatprep.subr.bf16.mxu0 0
      %2185 = vmatpush1.bf16.msra.mxu0 0
      %2186 = vmatprep.subr.bf16.mxu0 0
      %2187 = vmatpush1.bf16.msra.mxu0 0
      %2188 = vmatprep.subr.bf16.mxu0 0
      %2189 = vmatpush1.bf16.msra.mxu0 0
      %2190 = vmatprep.mubr.bf16.mxu0 0
      %2191 = vmatmul.mubr.bf16.gmra.mrb[0].mxu0 %v2074
      %v2192 = vpop.f32.mrb[0].mxu0
      %v2193 = vadd.f32 0.0, %v2192
      %v2194 = vpop.f32.mrb[0].mxu0
      %v2195 = vadd.f32 0.0, %v2194
      %v2196 = vpop.f32.mrb[0].mxu0
      %v2197 = vadd.f32 0.0, %v2196
      %v2198 = vpop.f32.mrb[0].mxu0
      %v2199 = vadd.f32 0.0, %v2198
      %2200 = vmatprep.mubr.bf16.mxu0 0
      %2201 = vmatmul.mubr.bf16.gmra.mrb[0].mxu0 %v2077
      %v2202 = vpop.f32.mrb[0].mxu0
      %v2203 = vadd.f32 0.0, %v2202
      %v2204 = vpop.f32.mrb[0].mxu0
      %v2205 = vadd.f32 0.0, %v2204
      %v2206 = vpop.f32.mrb[0].mxu0
      %v2207 = vadd.f32 0.0, %v2206
      %v2208 = vpop.f32.mrb[0].mxu0
      %v2209 = vadd.f32 0.0, %v2208
      %2210 = vmatprep.mubr.bf16.mxu0 0
      %2211 = vmatmul.mubr.bf16.gmra.mrb[0].mxu0 %v2080
      %v2212 = vpop.f32.mrb[0].mxu0
      %v2213 = vadd.f32 0.0, %v2212
      %v2214 = vpop.f32.mrb[0].mxu0
      %v2215 = vadd.f32 0.0, %v2214
      %v2216 = vpop.f32.mrb[0].mxu0
      %v2217 = vadd.f32 0.0, %v2216
      %v2218 = vpop.f32.mrb[0].mxu0
      %v2219 = vadd.f32 0.0, %v2218
      %2220 = vmatprep.mubr.bf16.mxu0 0
      %2221 = vmatmul.mubr.bf16.gmra.mrb[0].mxu0 %v2083
      %v2222 = vpop.f32.mrb[0].mxu0
      %v2223 = vadd.f32 0.0, %v2222
      %v2224 = vpop.f32.mrb[0].mxu0
      %v2225 = vadd.f32 0.0, %v2224
      %v2226 = vpop.f32.mrb[0].mxu0
      %v2227 = vadd.f32 0.0, %v2226
      %v2228 = vpop.f32.mrb[0].mxu0
      %v2229 = vadd.f32 0.0, %v2228
      %2230 = vdwg.mxu0
      %v2231 = vpack.c.bf16 %v2124, %v2120
      %v2232 = vpack.c.bf16 %v2126, %v2122
      %v2233 = vpack.c.bf16 %v2197, %v2193
      %v2234 = vpack.c.bf16 %v2199, %v2195
      %v2235 = vpack.c.bf16 %v2134, %v2130
      %v2236 = vpack.c.bf16 %v2136, %v2132
      %v2237 = vpack.c.bf16 %v2207, %v2203
      %v2238 = vpack.c.bf16 %v2209, %v2205
      %v2239 = vpack.c.bf16 %v2144, %v2140
      %v2240 = vpack.c.bf16 %v2146, %v2142
      %v2241 = vpack.c.bf16 %v2217, %v2213
      %v2242 = vpack.c.bf16 %v2219, %v2215
      %v2243 = vpack.c.bf16 %v2154, %v2150
      %v2244 = vpack.c.bf16 %v2156, %v2152
      %v2245 = vpack.c.bf16 %v2227, %v2223
      %v2246 = vpack.c.bf16 %v2229, %v2225
      %2248 = vset.pattern.permute.xlu0 0
      %2249 = vperm.xlu0 %2248, %v451
      %v2250 = vpop.permute.xlu0 %2249
      %v2253 = vunpack.c.l.s4 839922192
      %v2254 = vunpack.c.0.s8 %v2253
      %v2255 = vlaneseq
      %v2256 = vshrl.u32 %v2255, 7
      %v2257 = vsub.s32 %v2254, %v2256
      %v2258 = vrot.slane %v2250, %v2257
      %2260 = vset.pattern.permute.xlu0 0
      %2261 = vperm.xlu0 %2260, %v452
      %v2262 = vpop.permute.xlu0 %2261
      %v2265 = vunpack.c.l.s4 839922192
      %v2266 = vunpack.c.0.s8 %v2265
      %v2267 = vlaneseq
      %v2268 = vshrl.u32 %v2267, 7
      %v2269 = vsub.s32 %v2266, %v2268
      %v2270 = vrot.slane %v2262, %v2269
      %2272 = vset.pattern.permute.xlu0 0
      %2273 = vperm.xlu0 %2272, %v453
      %v2274 = vpop.permute.xlu0 %2273
      %v2277 = vunpack.c.l.s4 839922192
      %v2278 = vunpack.c.0.s8 %v2277
      %v2279 = vlaneseq
      %v2280 = vshrl.u32 %v2279, 7
      %v2281 = vsub.s32 %v2278, %v2280
      %v2282 = vrot.slane %v2274, %v2281
      %2284 = vset.pattern.permute.xlu0 0
      %2285 = vperm.xlu0 %2284, %v454
      %v2286 = vpop.permute.xlu0 %2285
      %v2289 = vunpack.c.l.s4 839922192
      %v2290 = vunpack.c.0.s8 %v2289
      %v2291 = vlaneseq
      %v2292 = vshrl.u32 %v2291, 7
      %v2293 = vsub.s32 %v2290, %v2292
      %v2294 = vrot.slane %v2286, %v2293
      %2296 = vset.pattern.permute.xlu0 0
      %2297 = vperm.xlu0 %2296, %v455
      %v2298 = vpop.permute.xlu0 %2297
      %v2301 = vunpack.c.l.s4 839922192
      %v2302 = vunpack.c.0.s8 %v2301
      %v2303 = vlaneseq
      %v2304 = vshrl.u32 %v2303, 7
      %v2305 = vsub.s32 %v2302, %v2304
      %v2306 = vrot.slane %v2298, %v2305
      %2308 = vset.pattern.permute.xlu0 0
      %2309 = vperm.xlu0 %2308, %v456
      %v2310 = vpop.permute.xlu0 %2309
      %v2313 = vunpack.c.l.s4 839922192
      %v2314 = vunpack.c.0.s8 %v2313
      %v2315 = vlaneseq
      %v2316 = vshrl.u32 %v2315, 7
      %v2317 = vsub.s32 %v2314, %v2316
      %v2318 = vrot.slane %v2310, %v2317
      %2320 = vset.pattern.permute.xlu0 0
      %2321 = vperm.xlu0 %2320, %v457
      %v2322 = vpop.permute.xlu0 %2321
      %v2325 = vunpack.c.l.s4 839922192
      %v2326 = vunpack.c.0.s8 %v2325
      %v2327 = vlaneseq
      %v2328 = vshrl.u32 %v2327, 7
      %v2329 = vsub.s32 %v2326, %v2328
      %v2330 = vrot.slane %v2322, %v2329
      %2332 = vset.pattern.permute.xlu0 0
      %2333 = vperm.xlu0 %2332, %v458
      %v2334 = vpop.permute.xlu0 %2333
      %v2337 = vunpack.c.l.s4 839922192
      %v2338 = vunpack.c.0.s8 %v2337
      %v2339 = vlaneseq
      %v2340 = vshrl.u32 %v2339, 7
      %v2341 = vsub.s32 %v2338, %v2340
      %v2342 = vrot.slane %v2334, %v2341
      %v2351 = vunpack.c.l.b16 %v2258
      %v2352 = vunpack.c.l.b16 %v2270
      %v2353 = vunpack.c.l.b16 %v2282
      %v2354 = vunpack.c.l.b16 %v2294
      %v2355 = vunpack.c.l.b16 %v2306
      %v2356 = vunpack.c.l.b16 %v2318
      %v2357 = vunpack.c.l.b16 %v2330
      %v2358 = vunpack.c.l.b16 %v2342
      %v2359 = vpack.c.b16 %v2352, %v2351
      %v2360 = vpack.c.b16 %v2354, %v2353
      %v2361 = vpack.c.b16 %v2356, %v2355
      %v2362 = vpack.c.b16 %v2358, %v2357
      %v2367 = vadd.bf16 %v2231, %v2359
      %v2368 = vadd.bf16 %v2232, %v2359
      %v2369 = vadd.bf16 %v2233, %v2359
      %v2370 = vadd.bf16 %v2234, %v2359
      %v2371 = vadd.bf16 %v2235, %v2360
      %v2372 = vadd.bf16 %v2236, %v2360
      %v2373 = vadd.bf16 %v2237, %v2360
      %v2374 = vadd.bf16 %v2238, %v2360
      %v2375 = vadd.bf16 %v2239, %v2361
      %v2376 = vadd.bf16 %v2240, %v2361
      %v2377 = vadd.bf16 %v2241, %v2361
      %v2378 = vadd.bf16 %v2242, %v2361
      %v2379 = vadd.bf16 %v2243, %v2362
      %v2380 = vadd.bf16 %v2244, %v2362
      %v2381 = vadd.bf16 %v2245, %v2362
      %v2382 = vadd.bf16 %v2246, %v2362
      %v2383 = vmax.bf16 %v2367, 0
      %v2384 = vmax.bf16 %v2368, 0
      %v2385 = vmax.bf16 %v2369, 0
      %v2386 = vmax.bf16 %v2370, 0
      %v2387 = vmax.bf16 %v2371, 0
      %v2388 = vmax.bf16 %v2372, 0
      %v2389 = vmax.bf16 %v2373, 0
      %v2390 = vmax.bf16 %v2374, 0
      %v2391 = vmax.bf16 %v2375, 0
      %v2392 = vmax.bf16 %v2376, 0
      %v2393 = vmax.bf16 %v2377, 0
      %v2394 = vmax.bf16 %v2378, 0
      %v2395 = vmax.bf16 %v2379, 0
      %v2396 = vmax.bf16 %v2380, 0
      %v2397 = vmax.bf16 %v2381, 0
      %v2398 = vmax.bf16 %v2382, 0
      %v2415 = vunpack.c.l.b16 %v459
      %v2416 = vunpack.c.l.b16 %v460
      %v2417 = vunpack.c.l.b16 %v461
      %v2418 = vunpack.c.l.b16 %v462
      %v2419 = vunpack.c.l.b16 %v463
      %v2420 = vunpack.c.l.b16 %v464
      %v2421 = vunpack.c.l.b16 %v465
      %v2422 = vunpack.c.l.b16 %v466
      %v2423 = vunpack.c.l.b16 %v467
      %v2424 = vunpack.c.l.b16 %v468
      %v2425 = vunpack.c.l.b16 %v469
      %v2426 = vunpack.c.l.b16 %v470
      %v2427 = vunpack.c.l.b16 %v471
      %v2428 = vunpack.c.l.b16 %v472
      %v2429 = vunpack.c.l.b16 %v473
      %v2430 = vunpack.c.l.b16 %v474
      %v2431 = vpack.c.b16 %v2416, %v2415
      %v2432 = vpack.c.b16 %v2418, %v2417
      %v2433 = vpack.c.b16 %v2420, %v2419
      %v2434 = vpack.c.b16 %v2422, %v2421
      %v2435 = vpack.c.b16 %v2424, %v2423
      %v2436 = vpack.c.b16 %v2426, %v2425
      %v2437 = vpack.c.b16 %v2428, %v2427
      %v2438 = vpack.c.b16 %v2430, %v2429
      %v2440 = vsel %vm1380, %v2431, 0
      %v2443 = vsel %vm1380, %v2432, 0
      %v2446 = vsel %vm1380, %v2433, 0
      %v2449 = vsel %vm1380, %v2434, 0
      %v2452 = vsel %vm1380, %v2435, 0
      %v2455 = vsel %vm1380, %v2436, 0
      %v2458 = vsel %vm1380, %v2437, 0
      %v2461 = vsel %vm1380, %v2438, 0
      %2463 = vmatprep.subr.bf16.mxu0 %v2384
      %2464 = vmatpush1.bf16.msra.mxu0 %v2383
      %2465 = vmatprep.subr.bf16.mxu0 %v2388
      %2466 = vmatpush1.bf16.msra.mxu0 %v2387
      %2467 = vmatprep.subr.bf16.mxu0 %v2392
      %2468 = vmatpush1.bf16.msra.mxu0 %v2391
      %2469 = vmatprep.subr.bf16.mxu0 %v2396
      %2470 = vmatpush1.bf16.msra.mxu0 %v2395
      %2471 = vmatprep.subr.bf16.mxu0 0
      %2472 = vmatpush1.bf16.msra.mxu0 0
      %2473 = vmatprep.subr.bf16.mxu0 0
      %2474 = vmatpush1.bf16.msra.mxu0 0
      %2475 = vmatprep.subr.bf16.mxu0 0
      %2476 = vmatpush1.bf16.msra.mxu0 0
      %2477 = vmatprep.subr.bf16.mxu0 0
      %2478 = vmatpush1.bf16.msra.mxu0 0
      %2479 = vmatprep.subr.bf16.mxu0 0
      %2480 = vmatpush1.bf16.msra.mxu0 0
      %2481 = vmatprep.subr.bf16.mxu0 0
      %2482 = vmatpush1.bf16.msra.mxu0 0
      %2483 = vmatprep.subr.bf16.mxu0 0
      %2484 = vmatpush1.bf16.msra.mxu0 0
      %2485 = vmatprep.subr.bf16.mxu0 0
      %2486 = vmatpush1.bf16.msra.mxu0 0
      %2487 = vmatprep.subr.bf16.mxu0 0
      %2488 = vmatpush1.bf16.msra.mxu0 0
      %2489 = vmatprep.subr.bf16.mxu0 0
      %2490 = vmatpush1.bf16.msra.mxu0 0
      %2491 = vmatprep.subr.bf16.mxu0 0
      %2492 = vmatpush1.bf16.msra.mxu0 0
      %2493 = vmatprep.subr.bf16.mxu0 0
      %2494 = vmatpush1.bf16.msra.mxu0 0
      %2495 = vmatprep.mubr.bf16.mxu0 0
      %2496 = vmatmul.mubr.bf16.gmra.mrb[0].mxu0 %v2440
      %v2497 = vpop.f32.mrb[0].mxu0
      %v2498 = vadd.f32 0.0, %v2497
      %v2499 = vpop.f32.mrb[0].mxu0
      %v2500 = vadd.f32 0.0, %v2499
      %v2501 = vpop.f32.mrb[0].mxu0
      %v2502 = vadd.f32 0.0, %v2501
      %v2503 = vpop.f32.mrb[0].mxu0
      %v2504 = vadd.f32 0.0, %v2503
      %2505 = vmatprep.mubr.bf16.mxu0 0
      %2506 = vmatmul.mubr.bf16.gmra.mrb[0].mxu0 %v2443
      %v2507 = vpop.f32.mrb[0].mxu0
      %v2508 = vadd.f32 0.0, %v2507
      %v2509 = vpop.f32.mrb[0].mxu0
      %v2510 = vadd.f32 0.0, %v2509
      %v2511 = vpop.f32.mrb[0].mxu0
      %v2512 = vadd.f32 0.0, %v2511
      %v2513 = vpop.f32.mrb[0].mxu0
      %v2514 = vadd.f32 0.0, %v2513
      %2515 = vmatprep.mubr.bf16.mxu0 0
      %2516 = vmatmul.mubr.bf16.gmra.mrb[0].mxu0 %v2446
      %v2517 = vpop.f32.mrb[0].mxu0
      %v2518 = vadd.f32 0.0, %v2517
      %v2519 = vpop.f32.mrb[0].mxu0
      %v2520 = vadd.f32 0.0, %v2519
      %v2521 = vpop.f32.mrb[0].mxu0
      %v2522 = vadd.f32 0.0, %v2521
      %v2523 = vpop.f32.mrb[0].mxu0
      %v2524 = vadd.f32 0.0, %v2523
      %2525 = vmatprep.mubr.bf16.mxu0 0
      %2526 = vmatmul.mubr.bf16.gmra.mrb[0].mxu0 %v2449
      %v2527 = vpop.f32.mrb[0].mxu0
      %v2528 = vadd.f32 0.0, %v2527
      %v2529 = vpop.f32.mrb[0].mxu0
      %v2530 = vadd.f32 0.0, %v2529
      %v2531 = vpop.f32.mrb[0].mxu0
      %v2532 = vadd.f32 0.0, %v2531
      %v2533 = vpop.f32.mrb[0].mxu0
      %v2534 = vadd.f32 0.0, %v2533
      %2535 = vmatprep.mubr.bf16.mxu0 0
      %2536 = vmatmul.mubr.bf16.gmra.mrb[0].mxu0 %v2452
      %v2537 = vpop.f32.mrb[0].mxu0
      %v2538 = vadd.f32 0.0, %v2537
      %v2539 = vpop.f32.mrb[0].mxu0
      %v2540 = vadd.f32 0.0, %v2539
      %v2541 = vpop.f32.mrb[0].mxu0
      %v2542 = vadd.f32 0.0, %v2541
      %v2543 = vpop.f32.mrb[0].mxu0
      %v2544 = vadd.f32 0.0, %v2543
      %2545 = vmatprep.mubr.bf16.mxu0 0
      %2546 = vmatmul.mubr.bf16.gmra.mrb[0].mxu0 %v2455
      %v2547 = vpop.f32.mrb[0].mxu0
      %v2548 = vadd.f32 0.0, %v2547
      %v2549 = vpop.f32.mrb[0].mxu0
      %v2550 = vadd.f32 0.0, %v2549
      %v2551 = vpop.f32.mrb[0].mxu0
      %v2552 = vadd.f32 0.0, %v2551
      %v2553 = vpop.f32.mrb[0].mxu0
      %v2554 = vadd.f32 0.0, %v2553
      %2555 = vmatprep.mubr.bf16.mxu0 0
      %2556 = vmatmul.mubr.bf16.gmra.mrb[0].mxu0 %v2458
      %v2557 = vpop.f32.mrb[0].mxu0
      %v2558 = vadd.f32 0.0, %v2557
      %v2559 = vpop.f32.mrb[0].mxu0
      %v2560 = vadd.f32 0.0, %v2559
      %v2561 = vpop.f32.mrb[0].mxu0
      %v2562 = vadd.f32 0.0, %v2561
      %v2563 = vpop.f32.mrb[0].mxu0
      %v2564 = vadd.f32 0.0, %v2563
      %2565 = vmatprep.mubr.bf16.mxu0 0
      %2566 = vmatmul.mubr.bf16.gmra.mrb[0].mxu0 %v2461
      %v2567 = vpop.f32.mrb[0].mxu0
      %v2568 = vadd.f32 0.0, %v2567
      %v2569 = vpop.f32.mrb[0].mxu0
      %v2570 = vadd.f32 0.0, %v2569
      %v2571 = vpop.f32.mrb[0].mxu0
      %v2572 = vadd.f32 0.0, %v2571
      %v2573 = vpop.f32.mrb[0].mxu0
      %v2574 = vadd.f32 0.0, %v2573
      %2575 = vdwg.mxu0
      %2576 = vmatprep.subr.bf16.mxu0 %v2386
      %2577 = vmatpush1.bf16.msra.mxu0 %v2385
      %2578 = vmatprep.subr.bf16.mxu0 %v2390
      %2579 = vmatpush1.bf16.msra.mxu0 %v2389
      %2580 = vmatprep.subr.bf16.mxu0 %v2394
      %2581 = vmatpush1.bf16.msra.mxu0 %v2393
      %2582 = vmatprep.subr.bf16.mxu0 %v2398
      %2583 = vmatpush1.bf16.msra.mxu0 %v2397
      %2584 = vmatprep.subr.bf16.mxu0 0
      %2585 = vmatpush1.bf16.msra.mxu0 0
      %2586 = vmatprep.subr.bf16.mxu0 0
      %2587 = vmatpush1.bf16.msra.mxu0 0
      %2588 = vmatprep.subr.bf16.mxu0 0
      %2589 = vmatpush1.bf16.msra.mxu0 0
      %2590 = vmatprep.subr.bf16.mxu0 0
      %2591 = vmatpush1.bf16.msra.mxu0 0
      %2592 = vmatprep.subr.bf16.mxu0 0
      %2593 = vmatpush1.bf16.msra.mxu0 0
      %2594 = vmatprep.subr.bf16.mxu0 0
      %2595 = vmatpush1.bf16.msra.mxu0 0
      %2596 = vmatprep.subr.bf16.mxu0 0
      %2597 = vmatpush1.bf16.msra.mxu0 0
      %2598 = vmatprep.subr.bf16.mxu0 0
      %2599 = vmatpush1.bf16.msra.mxu0 0
      %2600 = vmatprep.subr.bf16.mxu0 0
      %2601 = vmatpush1.bf16.msra.mxu0 0
      %2602 = vmatprep.subr.bf16.mxu0 0
      %2603 = vmatpush1.bf16.msra.mxu0 0
      %2604 = vmatprep.subr.bf16.mxu0 0
      %2605 = vmatpush1.bf16.msra.mxu0 0
      %2606 = vmatprep.subr.bf16.mxu0 0
      %2607 = vmatpush1.bf16.msra.mxu0 0
      %2608 = vmatprep.mubr.bf16.mxu0 0
      %2609 = vmatmul.mubr.bf16.gmra.mrb[0].mxu0 %v2440
      %v2610 = vpop.f32.mrb[0].mxu0
      %v2611 = vadd.f32 0.0, %v2610
      %v2612 = vpop.f32.mrb[0].mxu0
      %v2613 = vadd.f32 0.0, %v2612
      %v2614 = vpop.f32.mrb[0].mxu0
      %v2615 = vadd.f32 0.0, %v2614
      %v2616 = vpop.f32.mrb[0].mxu0
      %v2617 = vadd.f32 0.0, %v2616
      %2618 = vmatprep.mubr.bf16.mxu0 0
      %2619 = vmatmul.mubr.bf16.gmra.mrb[0].mxu0 %v2443
      %v2620 = vpop.f32.mrb[0].mxu0
      %v2621 = vadd.f32 0.0, %v2620
      %v2622 = vpop.f32.mrb[0].mxu0
      %v2623 = vadd.f32 0.0, %v2622
      %v2624 = vpop.f32.mrb[0].mxu0
      %v2625 = vadd.f32 0.0, %v2624
      %v2626 = vpop.f32.mrb[0].mxu0
      %v2627 = vadd.f32 0.0, %v2626
      %2628 = vmatprep.mubr.bf16.mxu0 0
      %2629 = vmatmul.mubr.bf16.gmra.mrb[0].mxu0 %v2446
      %v2630 = vpop.f32.mrb[0].mxu0
      %v2631 = vadd.f32 0.0, %v2630
      %v2632 = vpop.f32.mrb[0].mxu0
      %v2633 = vadd.f32 0.0, %v2632
      %v2634 = vpop.f32.mrb[0].mxu0
      %v2635 = vadd.f32 0.0, %v2634
      %v2636 = vpop.f32.mrb[0].mxu0
      %v2637 = vadd.f32 0.0, %v2636
      %2638 = vmatprep.mubr.bf16.mxu0 0
      %2639 = vmatmul.mubr.bf16.gmra.mrb[0].mxu0 %v2449
      %v2640 = vpop.f32.mrb[0].mxu0
      %v2641 = vadd.f32 0.0, %v2640
      %v2642 = vpop.f32.mrb[0].mxu0
      %v2643 = vadd.f32 0.0, %v2642
      %v2644 = vpop.f32.mrb[0].mxu0
      %v2645 = vadd.f32 0.0, %v2644
      %v2646 = vpop.f32.mrb[0].mxu0
      %v2647 = vadd.f32 0.0, %v2646
      %2648 = vmatprep.mubr.bf16.mxu0 0
      %2649 = vmatmul.mubr.bf16.gmra.mrb[0].mxu0 %v2452
      %v2650 = vpop.f32.mrb[0].mxu0
      %v2651 = vadd.f32 0.0, %v2650
      %v2652 = vpop.f32.mrb[0].mxu0
      %v2653 = vadd.f32 0.0, %v2652
      %v2654 = vpop.f32.mrb[0].mxu0
      %v2655 = vadd.f32 0.0, %v2654
      %v2656 = vpop.f32.mrb[0].mxu0
      %v2657 = vadd.f32 0.0, %v2656
      %2658 = vmatprep.mubr.bf16.mxu0 0
      %2659 = vmatmul.mubr.bf16.gmra.mrb[0].mxu0 %v2455
      %v2660 = vpop.f32.mrb[0].mxu0
      %v2661 = vadd.f32 0.0, %v2660
      %v2662 = vpop.f32.mrb[0].mxu0
      %v2663 = vadd.f32 0.0, %v2662
      %v2664 = vpop.f32.mrb[0].mxu0
      %v2665 = vadd.f32 0.0, %v2664
      %v2666 = vpop.f32.mrb[0].mxu0
      %v2667 = vadd.f32 0.0, %v2666
      %2668 = vmatprep.mubr.bf16.mxu0 0
      %2669 = vmatmul.mubr.bf16.gmra.mrb[0].mxu0 %v2458
      %v2670 = vpop.f32.mrb[0].mxu0
      %v2671 = vadd.f32 0.0, %v2670
      %v2672 = vpop.f32.mrb[0].mxu0
      %v2673 = vadd.f32 0.0, %v2672
      %v2674 = vpop.f32.mrb[0].mxu0
      %v2675 = vadd.f32 0.0, %v2674
      %v2676 = vpop.f32.mrb[0].mxu0
      %v2677 = vadd.f32 0.0, %v2676
      %2678 = vmatprep.mubr.bf16.mxu0 0
      %2679 = vmatmul.mubr.bf16.gmra.mrb[0].mxu0 %v2461
      %v2680 = vpop.f32.mrb[0].mxu0
      %v2681 = vadd.f32 0.0, %v2680
      %v2682 = vpop.f32.mrb[0].mxu0
      %v2683 = vadd.f32 0.0, %v2682
      %v2684 = vpop.f32.mrb[0].mxu0
      %v2685 = vadd.f32 0.0, %v2684
      %v2686 = vpop.f32.mrb[0].mxu0
      %v2687 = vadd.f32 0.0, %v2686
      %2688 = vdwg.mxu0
      %v2689 = vpack.c.bf16 %v2502, %v2498
      %v2690 = vpack.c.bf16 %v2504, %v2500
      %v2691 = vpack.c.bf16 %v2615, %v2611
      %v2692 = vpack.c.bf16 %v2617, %v2613
      %v2693 = vpack.c.bf16 %v2512, %v2508
      %v2694 = vpack.c.bf16 %v2514, %v2510
      %v2695 = vpack.c.bf16 %v2625, %v2621
      %v2696 = vpack.c.bf16 %v2627, %v2623
      %v2697 = vpack.c.bf16 %v2522, %v2518
      %v2698 = vpack.c.bf16 %v2524, %v2520
      %v2699 = vpack.c.bf16 %v2635, %v2631
      %v2700 = vpack.c.bf16 %v2637, %v2633
      %v2701 = vpack.c.bf16 %v2532, %v2528
      %v2702 = vpack.c.bf16 %v2534, %v2530
      %v2703 = vpack.c.bf16 %v2645, %v2641
      %v2704 = vpack.c.bf16 %v2647, %v2643
      %v2705 = vpack.c.bf16 %v2542, %v2538
      %v2706 = vpack.c.bf16 %v2544, %v2540
      %v2707 = vpack.c.bf16 %v2655, %v2651
      %v2708 = vpack.c.bf16 %v2657, %v2653
      %v2709 = vpack.c.bf16 %v2552, %v2548
      %v2710 = vpack.c.bf16 %v2554, %v2550
      %v2711 = vpack.c.bf16 %v2665, %v2661
      %v2712 = vpack.c.bf16 %v2667, %v2663
      %v2713 = vpack.c.bf16 %v2562, %v2558
      %v2714 = vpack.c.bf16 %v2564, %v2560
      %v2715 = vpack.c.bf16 %v2675, %v2671
      %v2716 = vpack.c.bf16 %v2677, %v2673
      %v2717 = vpack.c.bf16 %v2572, %v2568
      %v2718 = vpack.c.bf16 %v2574, %v2570
      %v2719 = vpack.c.bf16 %v2685, %v2681
      %v2720 = vpack.c.bf16 %v2687, %v2683
      %2722 = vset.pattern.permute.xlu0 0
      %2723 = vperm.xlu0 %2722, %v475
      %v2724 = vpop.permute.xlu0 %2723
      %v2727 = vunpack.c.l.s4 839922192
      %v2728 = vunpack.c.0.s8 %v2727
      %v2729 = vlaneseq
      %v2730 = vshrl.u32 %v2729, 7
      %v2731 = vsub.s32 %v2728, %v2730
      %v2732 = vrot.slane %v2724, %v2731
      %2734 = vset.pattern.permute.xlu0 0
      %2735 = vperm.xlu0 %2734, %v476
      %v2736 = vpop.permute.xlu0 %2735
      %v2739 = vunpack.c.l.s4 839922192
      %v2740 = vunpack.c.0.s8 %v2739
      %v2741 = vlaneseq
      %v2742 = vshrl.u32 %v2741, 7
      %v2743 = vsub.s32 %v2740, %v2742
      %v2744 = vrot.slane %v2736, %v2743
      %2746 = vset.pattern.permute.xlu0 0
      %2747 = vperm.xlu0 %2746, %v477
      %v2748 = vpop.permute.xlu0 %2747
      %v2751 = vunpack.c.l.s4 839922192
      %v2752 = vunpack.c.0.s8 %v2751
      %v2753 = vlaneseq
      %v2754 = vshrl.u32 %v2753, 7
      %v2755 = vsub.s32 %v2752, %v2754
      %v2756 = vrot.slane %v2748, %v2755
      %2758 = vset.pattern.permute.xlu0 0
      %2759 = vperm.xlu0 %2758, %v478
      %v2760 = vpop.permute.xlu0 %2759
      %v2763 = vunpack.c.l.s4 839922192
      %v2764 = vunpack.c.0.s8 %v2763
      %v2765 = vlaneseq
      %v2766 = vshrl.u32 %v2765, 7
      %v2767 = vsub.s32 %v2764, %v2766
      %v2768 = vrot.slane %v2760, %v2767
      %2770 = vset.pattern.permute.xlu0 0
      %2771 = vperm.xlu0 %2770, %v479
      %v2772 = vpop.permute.xlu0 %2771
      %v2775 = vunpack.c.l.s4 839922192
      %v2776 = vunpack.c.0.s8 %v2775
      %v2777 = vlaneseq
      %v2778 = vshrl.u32 %v2777, 7
      %v2779 = vsub.s32 %v2776, %v2778
      %v2780 = vrot.slane %v2772, %v2779
      %2782 = vset.pattern.permute.xlu0 0
      %2783 = vperm.xlu0 %2782, %v480
      %v2784 = vpop.permute.xlu0 %2783
      %v2787 = vunpack.c.l.s4 839922192
      %v2788 = vunpack.c.0.s8 %v2787
      %v2789 = vlaneseq
      %v2790 = vshrl.u32 %v2789, 7
      %v2791 = vsub.s32 %v2788, %v2790
      %v2792 = vrot.slane %v2784, %v2791
      %2794 = vset.pattern.permute.xlu0 0
      %2795 = vperm.xlu0 %2794, %v481
      %v2796 = vpop.permute.xlu0 %2795
      %v2799 = vunpack.c.l.s4 839922192
      %v2800 = vunpack.c.0.s8 %v2799
      %v2801 = vlaneseq
      %v2802 = vshrl.u32 %v2801, 7
      %v2803 = vsub.s32 %v2800, %v2802
      %v2804 = vrot.slane %v2796, %v2803
      %2806 = vset.pattern.permute.xlu0 0
      %2807 = vperm.xlu0 %2806, %v482
      %v2808 = vpop.permute.xlu0 %2807
      %v2811 = vunpack.c.l.s4 839922192
      %v2812 = vunpack.c.0.s8 %v2811
      %v2813 = vlaneseq
      %v2814 = vshrl.u32 %v2813, 7
      %v2815 = vsub.s32 %v2812, %v2814
      %v2816 = vrot.slane %v2808, %v2815
      %2818 = vset.pattern.permute.xlu0 0
      %2819 = vperm.xlu0 %2818, %v483
      %v2820 = vpop.permute.xlu0 %2819
      %v2823 = vunpack.c.l.s4 839922192
      %v2824 = vunpack.c.0.s8 %v2823
      %v2825 = vlaneseq
      %v2826 = vshrl.u32 %v2825, 7
      %v2827 = vsub.s32 %v2824, %v2826
      %v2828 = vrot.slane %v2820, %v2827
      %2830 = vset.pattern.permute.xlu0 0
      %2831 = vperm.xlu0 %2830, %v484
      %v2832 = vpop.permute.xlu0 %2831
      %v2835 = vunpack.c.l.s4 839922192
      %v2836 = vunpack.c.0.s8 %v2835
      %v2837 = vlaneseq
      %v2838 = vshrl.u32 %v2837, 7
      %v2839 = vsub.s32 %v2836, %v2838
      %v2840 = vrot.slane %v2832, %v2839
      %2842 = vset.pattern.permute.xlu0 0
      %2843 = vperm.xlu0 %2842, %v485
      %v2844 = vpop.permute.xlu0 %2843
      %v2847 = vunpack.c.l.s4 839922192
      %v2848 = vunpack.c.0.s8 %v2847
      %v2849 = vlaneseq
      %v2850 = vshrl.u32 %v2849, 7
      %v2851 = vsub.s32 %v2848, %v2850
      %v2852 = vrot.slane %v2844, %v2851
      %2854 = vset.pattern.permute.xlu0 0
      %2855 = vperm.xlu0 %2854, %v486
      %v2856 = vpop.permute.xlu0 %2855
      %v2859 = vunpack.c.l.s4 839922192
      %v2860 = vunpack.c.0.s8 %v2859
      %v2861 = vlaneseq
      %v2862 = vshrl.u32 %v2861, 7
      %v2863 = vsub.s32 %v2860, %v2862
      %v2864 = vrot.slane %v2856, %v2863
      %2866 = vset.pattern.permute.xlu0 0
      %2867 = vperm.xlu0 %2866, %v487
      %v2868 = vpop.permute.xlu0 %2867
      %v2871 = vunpack.c.l.s4 839922192
      %v2872 = vunpack.c.0.s8 %v2871
      %v2873 = vlaneseq
      %v2874 = vshrl.u32 %v2873, 7
      %v2875 = vsub.s32 %v2872, %v2874
      %v2876 = vrot.slane %v2868, %v2875
      %2878 = vset.pattern.permute.xlu0 0
      %2879 = vperm.xlu0 %2878, %v488
      %v2880 = vpop.permute.xlu0 %2879
      %v2883 = vunpack.c.l.s4 839922192
      %v2884 = vunpack.c.0.s8 %v2883
      %v2885 = vlaneseq
      %v2886 = vshrl.u32 %v2885, 7
      %v2887 = vsub.s32 %v2884, %v2886
      %v2888 = vrot.slane %v2880, %v2887
      %2890 = vset.pattern.permute.xlu0 0
      %2891 = vperm.xlu0 %2890, %v489
      %v2892 = vpop.permute.xlu0 %2891
      %v2895 = vunpack.c.l.s4 839922192
      %v2896 = vunpack.c.0.s8 %v2895
      %v2897 = vlaneseq
      %v2898 = vshrl.u32 %v2897, 7
      %v2899 = vsub.s32 %v2896, %v2898
      %v2900 = vrot.slane %v2892, %v2899
      %2902 = vset.pattern.permute.xlu0 0
      %2903 = vperm.xlu0 %2902, %v490
      %v2904 = vpop.permute.xlu0 %2903
      %v2907 = vunpack.c.l.s4 839922192
      %v2908 = vunpack.c.0.s8 %v2907
      %v2909 = vlaneseq
      %v2910 = vshrl.u32 %v2909, 7
      %v2911 = vsub.s32 %v2908, %v2910
      %v2912 = vrot.slane %v2904, %v2911
      %v2929 = vunpack.c.l.b16 %v2732
      %v2930 = vunpack.c.l.b16 %v2744
      %v2931 = vunpack.c.l.b16 %v2756
      %v2932 = vunpack.c.l.b16 %v2768
      %v2933 = vunpack.c.l.b16 %v2780
      %v2934 = vunpack.c.l.b16 %v2792
      %v2935 = vunpack.c.l.b16 %v2804
      %v2936 = vunpack.c.l.b16 %v2816
      %v2937 = vunpack.c.l.b16 %v2828
      %v2938 = vunpack.c.l.b16 %v2840
      %v2939 = vunpack.c.l.b16 %v2852
      %v2940 = vunpack.c.l.b16 %v2864
      %v2941 = vunpack.c.l.b16 %v2876
      %v2942 = vunpack.c.l.b16 %v2888
      %v2943 = vunpack.c.l.b16 %v2900
      %v2944 = vunpack.c.l.b16 %v2912
      %v2945 = vpack.c.b16 %v2930, %v2929
      %v2946 = vpack.c.b16 %v2932, %v2931
      %v2947 = vpack.c.b16 %v2934, %v2933
      %v2948 = vpack.c.b16 %v2936, %v2935
      %v2949 = vpack.c.b16 %v2938, %v2937
      %v2950 = vpack.c.b16 %v2940, %v2939
      %v2951 = vpack.c.b16 %v2942, %v2941
      %v2952 = vpack.c.b16 %v2944, %v2943
      %v2961 = vadd.bf16 %v2689, %v2945
      %v2962 = vadd.bf16 %v2690, %v2945
      %v2963 = vadd.bf16 %v2691, %v2945
      %v2964 = vadd.bf16 %v2692, %v2945
      %v2965 = vadd.bf16 %v2693, %v2946
      %v2966 = vadd.bf16 %v2694, %v2946
      %v2967 = vadd.bf16 %v2695, %v2946
      %v2968 = vadd.bf16 %v2696, %v2946
      %v2969 = vadd.bf16 %v2697, %v2947
      %v2970 = vadd.bf16 %v2698, %v2947
      %v2971 = vadd.bf16 %v2699, %v2947
      %v2972 = vadd.bf16 %v2700, %v2947
      %v2973 = vadd.bf16 %v2701, %v2948
      %v2974 = vadd.bf16 %v2702, %v2948
      %v2975 = vadd.bf16 %v2703, %v2948
      %v2976 = vadd.bf16 %v2704, %v2948
      %v2977 = vadd.bf16 %v2705, %v2949
      %v2978 = vadd.bf16 %v2706, %v2949
      %v2979 = vadd.bf16 %v2707, %v2949
      %v2980 = vadd.bf16 %v2708, %v2949
      %v2981 = vadd.bf16 %v2709, %v2950
      %v2982 = vadd.bf16 %v2710, %v2950
      %v2983 = vadd.bf16 %v2711, %v2950
      %v2984 = vadd.bf16 %v2712, %v2950
      %v2985 = vadd.bf16 %v2713, %v2951
      %v2986 = vadd.bf16 %v2714, %v2951
      %v2987 = vadd.bf16 %v2715, %v2951
      %v2988 = vadd.bf16 %v2716, %v2951
      %v2989 = vadd.bf16 %v2717, %v2952
      %v2990 = vadd.bf16 %v2718, %v2952
      %v2991 = vadd.bf16 %v2719, %v2952
      %v2992 = vadd.bf16 %v2720, %v2952
      %v2993 = vmax.bf16 %v2961, 0
      %v2994 = vmax.bf16 %v2962, 0
      %v2995 = vmax.bf16 %v2963, 0
      %v2996 = vmax.bf16 %v2964, 0
      %v2997 = vmax.bf16 %v2965, 0
      %v2998 = vmax.bf16 %v2966, 0
      %v2999 = vmax.bf16 %v2967, 0
      %v3000 = vmax.bf16 %v2968, 0
      %v3001 = vmax.bf16 %v2969, 0
      %v3002 = vmax.bf16 %v2970, 0
      %v3003 = vmax.bf16 %v2971, 0
      %v3004 = vmax.bf16 %v2972, 0
      %v3005 = vmax.bf16 %v2973, 0
      %v3006 = vmax.bf16 %v2974, 0
      %v3007 = vmax.bf16 %v2975, 0
      %v3008 = vmax.bf16 %v2976, 0
      %v3009 = vmax.bf16 %v2977, 0
      %v3010 = vmax.bf16 %v2978, 0
      %v3011 = vmax.bf16 %v2979, 0
      %v3012 = vmax.bf16 %v2980, 0
      %v3013 = vmax.bf16 %v2981, 0
      %v3014 = vmax.bf16 %v2982, 0
      %v3015 = vmax.bf16 %v2983, 0
      %v3016 = vmax.bf16 %v2984, 0
      %v3017 = vmax.bf16 %v2985, 0
      %v3018 = vmax.bf16 %v2986, 0
      %v3019 = vmax.bf16 %v2987, 0
      %v3020 = vmax.bf16 %v2988, 0
      %v3021 = vmax.bf16 %v2989, 0
      %v3022 = vmax.bf16 %v2990, 0
      %v3023 = vmax.bf16 %v2991, 0
      %v3024 = vmax.bf16 %v2992, 0
      %v3041 = vunpack.c.l.b16 %v491
      %v3042 = vunpack.c.l.b16 %v492
      %v3043 = vunpack.c.l.b16 %v493
      %v3044 = vunpack.c.l.b16 %v494
      %v3045 = vunpack.c.l.b16 %v495
      %v3046 = vunpack.c.l.b16 %v496
      %v3047 = vunpack.c.l.b16 %v497
      %v3048 = vunpack.c.l.b16 %v498
      %v3049 = vunpack.c.l.b16 %v499
      %v3050 = vunpack.c.l.b16 %v500
      %v3051 = vunpack.c.l.b16 %v501
      %v3052 = vunpack.c.l.b16 %v502
      %v3053 = vunpack.c.l.b16 %v503
      %v3054 = vunpack.c.l.b16 %v504
      %v3055 = vunpack.c.l.b16 %v505
      %v3056 = vunpack.c.l.b16 %v506
      %v3057 = vpack.c.b16 %v3042, %v3041
      %v3058 = vpack.c.b16 %v3044, %v3043
      %v3059 = vpack.c.b16 %v3046, %v3045
      %v3060 = vpack.c.b16 %v3048, %v3047
      %v3061 = vpack.c.b16 %v3050, %v3049
      %v3062 = vpack.c.b16 %v3052, %v3051
      %v3063 = vpack.c.b16 %v3054, %v3053
      %v3064 = vpack.c.b16 %v3056, %v3055
      %3073 = vmatprep.subr.bf16.mxu0 %v2994
      %3074 = vmatpush1.bf16.msra.mxu0 %v2993
      %3075 = vmatprep.subr.bf16.mxu0 %v2998
      %3076 = vmatpush1.bf16.msra.mxu0 %v2997
      %3077 = vmatprep.subr.bf16.mxu0 %v3002
      %3078 = vmatpush1.bf16.msra.mxu0 %v3001
      %3079 = vmatprep.subr.bf16.mxu0 %v3006
      %3080 = vmatpush1.bf16.msra.mxu0 %v3005
      %3081 = vmatprep.subr.bf16.mxu0 %v3010
      %3082 = vmatpush1.bf16.msra.mxu0 %v3009
      %3083 = vmatprep.subr.bf16.mxu0 %v3014
      %3084 = vmatpush1.bf16.msra.mxu0 %v3013
      %3085 = vmatprep.subr.bf16.mxu0 %v3018
      %3086 = vmatpush1.bf16.msra.mxu0 %v3017
      %3087 = vmatprep.subr.bf16.mxu0 %v3022
      %3088 = vmatpush1.bf16.msra.mxu0 %v3021
      %3089 = vmatprep.subr.bf16.mxu0 0
      %3090 = vmatpush1.bf16.msra.mxu0 0
      %3091 = vmatprep.subr.bf16.mxu0 0
      %3092 = vmatpush1.bf16.msra.mxu0 0
      %3093 = vmatprep.subr.bf16.mxu0 0
      %3094 = vmatpush1.bf16.msra.mxu0 0
      %3095 = vmatprep.subr.bf16.mxu0 0
      %3096 = vmatpush1.bf16.msra.mxu0 0
      %3097 = vmatprep.subr.bf16.mxu0 0
      %3098 = vmatpush1.bf16.msra.mxu0 0
      %3099 = vmatprep.subr.bf16.mxu0 0
      %3100 = vmatpush1.bf16.msra.mxu0 0
      %3101 = vmatprep.subr.bf16.mxu0 0
      %3102 = vmatpush1.bf16.msra.mxu0 0
      %3103 = vmatprep.subr.bf16.mxu0 0
      %3104 = vmatpush1.bf16.msra.mxu0 0
      %3105 = vmatprep.mubr.bf16.mxu0 0
      %3106 = vmatmul.mubr.bf16.gmra.mrb[0].mxu0 %v3057
      %v3107 = vpop.f32.mrb[0].mxu0
      %v3108 = vadd.f32 0.0, %v3107
      %v3109 = vpop.f32.mrb[0].mxu0
      %v3110 = vadd.f32 0.0, %v3109
      %v3111 = vpop.f32.mrb[0].mxu0
      %v3112 = vadd.f32 0.0, %v3111
      %v3113 = vpop.f32.mrb[0].mxu0
      %v3114 = vadd.f32 0.0, %v3113
      %3115 = vmatprep.mubr.bf16.mxu0 0
      %3116 = vmatmul.mubr.bf16.gmra.mrb[0].mxu0 %v3058
      %v3117 = vpop.f32.mrb[0].mxu0
      %v3118 = vadd.f32 0.0, %v3117
      %v3119 = vpop.f32.mrb[0].mxu0
      %v3120 = vadd.f32 0.0, %v3119
      %v3121 = vpop.f32.mrb[0].mxu0
      %v3122 = vadd.f32 0.0, %v3121
      %v3123 = vpop.f32.mrb[0].mxu0
      %v3124 = vadd.f32 0.0, %v3123
      %3125 = vmatprep.mubr.bf16.mxu0 0
      %3126 = vmatmul.mubr.bf16.gmra.mrb[0].mxu0 %v3059
      %v3127 = vpop.f32.mrb[0].mxu0
      %v3128 = vadd.f32 0.0, %v3127
      %v3129 = vpop.f32.mrb[0].mxu0
      %v3130 = vadd.f32 0.0, %v3129
      %v3131 = vpop.f32.mrb[0].mxu0
      %v3132 = vadd.f32 0.0, %v3131
      %v3133 = vpop.f32.mrb[0].mxu0
      %v3134 = vadd.f32 0.0, %v3133
      %3135 = vmatprep.mubr.bf16.mxu0 0
      %3136 = vmatmul.mubr.bf16.gmra.mrb[0].mxu0 %v3060
      %v3137 = vpop.f32.mrb[0].mxu0
      %v3138 = vadd.f32 0.0, %v3137
      %v3139 = vpop.f32.mrb[0].mxu0
      %v3140 = vadd.f32 0.0, %v3139
      %v3141 = vpop.f32.mrb[0].mxu0
      %v3142 = vadd.f32 0.0, %v3141
      %v3143 = vpop.f32.mrb[0].mxu0
      %v3144 = vadd.f32 0.0, %v3143
      %3145 = vmatprep.mubr.bf16.mxu0 0
      %3146 = vmatmul.mubr.bf16.gmra.mrb[0].mxu0 %v3061
      %v3147 = vpop.f32.mrb[0].mxu0
      %v3148 = vadd.f32 0.0, %v3147
      %v3149 = vpop.f32.mrb[0].mxu0
      %v3150 = vadd.f32 0.0, %v3149
      %v3151 = vpop.f32.mrb[0].mxu0
      %v3152 = vadd.f32 0.0, %v3151
      %v3153 = vpop.f32.mrb[0].mxu0
      %v3154 = vadd.f32 0.0, %v3153
      %3155 = vmatprep.mubr.bf16.mxu0 0
      %3156 = vmatmul.mubr.bf16.gmra.mrb[0].mxu0 %v3062
      %v3157 = vpop.f32.mrb[0].mxu0
      %v3158 = vadd.f32 0.0, %v3157
      %v3159 = vpop.f32.mrb[0].mxu0
      %v3160 = vadd.f32 0.0, %v3159
      %v3161 = vpop.f32.mrb[0].mxu0
      %v3162 = vadd.f32 0.0, %v3161
      %v3163 = vpop.f32.mrb[0].mxu0
      %v3164 = vadd.f32 0.0, %v3163
      %3165 = vmatprep.mubr.bf16.mxu0 0
      %3166 = vmatmul.mubr.bf16.gmra.mrb[0].mxu0 %v3063
      %v3167 = vpop.f32.mrb[0].mxu0
      %v3168 = vadd.f32 0.0, %v3167
      %v3169 = vpop.f32.mrb[0].mxu0
      %v3170 = vadd.f32 0.0, %v3169
      %v3171 = vpop.f32.mrb[0].mxu0
      %v3172 = vadd.f32 0.0, %v3171
      %v3173 = vpop.f32.mrb[0].mxu0
      %v3174 = vadd.f32 0.0, %v3173
      %3175 = vmatprep.mubr.bf16.mxu0 0
      %3176 = vmatmul.mubr.bf16.gmra.mrb[0].mxu0 %v3064
      %v3177 = vpop.f32.mrb[0].mxu0
      %v3178 = vadd.f32 0.0, %v3177
      %v3179 = vpop.f32.mrb[0].mxu0
      %v3180 = vadd.f32 0.0, %v3179
      %v3181 = vpop.f32.mrb[0].mxu0
      %v3182 = vadd.f32 0.0, %v3181
      %v3183 = vpop.f32.mrb[0].mxu0
      %v3184 = vadd.f32 0.0, %v3183
      %3185 = vdwg.mxu0
      %3186 = vmatprep.subr.bf16.mxu0 %v2996
      %3187 = vmatpush1.bf16.msra.mxu0 %v2995
      %3188 = vmatprep.subr.bf16.mxu0 %v3000
      %3189 = vmatpush1.bf16.msra.mxu0 %v2999
      %3190 = vmatprep.subr.bf16.mxu0 %v3004
      %3191 = vmatpush1.bf16.msra.mxu0 %v3003
      %3192 = vmatprep.subr.bf16.mxu0 %v3008
      %3193 = vmatpush1.bf16.msra.mxu0 %v3007
      %3194 = vmatprep.subr.bf16.mxu0 %v3012
      %3195 = vmatpush1.bf16.msra.mxu0 %v3011
      %3196 = vmatprep.subr.bf16.mxu0 %v3016
      %3197 = vmatpush1.bf16.msra.mxu0 %v3015
      %3198 = vmatprep.subr.bf16.mxu0 %v3020
      %3199 = vmatpush1.bf16.msra.mxu0 %v3019
      %3200 = vmatprep.subr.bf16.mxu0 %v3024
      %3201 = vmatpush1.bf16.msra.mxu0 %v3023
      %3202 = vmatprep.subr.bf16.mxu0 0
      %3203 = vmatpush1.bf16.msra.mxu0 0
      %3204 = vmatprep.subr.bf16.mxu0 0
      %3205 = vmatpush1.bf16.msra.mxu0 0
      %3206 = vmatprep.subr.bf16.mxu0 0
      %3207 = vmatpush1.bf16.msra.mxu0 0
      %3208 = vmatprep.subr.bf16.mxu0 0
      %3209 = vmatpush1.bf16.msra.mxu0 0
      %3210 = vmatprep.subr.bf16.mxu0 0
      %3211 = vmatpush1.bf16.msra.mxu0 0
      %3212 = vmatprep.subr.bf16.mxu0 0
      %3213 = vmatpush1.bf16.msra.mxu0 0
      %3214 = vmatprep.subr.bf16.mxu0 0
      %3215 = vmatpush1.bf16.msra.mxu0 0
      %3216 = vmatprep.subr.bf16.mxu0 0
      %3217 = vmatpush1.bf16.msra.mxu0 0
      %3218 = vmatprep.mubr.bf16.mxu0 0
      %3219 = vmatmul.mubr.bf16.gmra.mrb[0].mxu0 %v3057
      %v3220 = vpop.f32.mrb[0].mxu0
      %v3221 = vadd.f32 0.0, %v3220
      %v3222 = vpop.f32.mrb[0].mxu0
      %v3223 = vadd.f32 0.0, %v3222
      %v3224 = vpop.f32.mrb[0].mxu0
      %v3225 = vadd.f32 0.0, %v3224
      %v3226 = vpop.f32.mrb[0].mxu0
      %v3227 = vadd.f32 0.0, %v3226
      %3228 = vmatprep.mubr.bf16.mxu0 0
      %3229 = vmatmul.mubr.bf16.gmra.mrb[0].mxu0 %v3058
      %v3230 = vpop.f32.mrb[0].mxu0
      %v3231 = vadd.f32 0.0, %v3230
      %v3232 = vpop.f32.mrb[0].mxu0
      %v3233 = vadd.f32 0.0, %v3232
      %v3234 = vpop.f32.mrb[0].mxu0
      %v3235 = vadd.f32 0.0, %v3234
      %v3236 = vpop.f32.mrb[0].mxu0
      %v3237 = vadd.f32 0.0, %v3236
      %3238 = vmatprep.mubr.bf16.mxu0 0
      %3239 = vmatmul.mubr.bf16.gmra.mrb[0].mxu0 %v3059
      %v3240 = vpop.f32.mrb[0].mxu0
      %v3241 = vadd.f32 0.0, %v3240
      %v3242 = vpop.f32.mrb[0].mxu0
      %v3243 = vadd.f32 0.0, %v3242
      %v3244 = vpop.f32.mrb[0].mxu0
      %v3245 = vadd.f32 0.0, %v3244
      %v3246 = vpop.f32.mrb[0].mxu0
      %v3247 = vadd.f32 0.0, %v3246
      %3248 = vmatprep.mubr.bf16.mxu0 0
      %3249 = vmatmul.mubr.bf16.gmra.mrb[0].mxu0 %v3060
      %v3250 = vpop.f32.mrb[0].mxu0
      %v3251 = vadd.f32 0.0, %v3250
      %v3252 = vpop.f32.mrb[0].mxu0
      %v3253 = vadd.f32 0.0, %v3252
      %v3254 = vpop.f32.mrb[0].mxu0
      %v3255 = vadd.f32 0.0, %v3254
      %v3256 = vpop.f32.mrb[0].mxu0
      %v3257 = vadd.f32 0.0, %v3256
      %3258 = vmatprep.mubr.bf16.mxu0 0
      %3259 = vmatmul.mubr.bf16.gmra.mrb[0].mxu0 %v3061
      %v3260 = vpop.f32.mrb[0].mxu0
      %v3261 = vadd.f32 0.0, %v3260
      %v3262 = vpop.f32.mrb[0].mxu0
      %v3263 = vadd.f32 0.0, %v3262
      %v3264 = vpop.f32.mrb[0].mxu0
      %v3265 = vadd.f32 0.0, %v3264
      %v3266 = vpop.f32.mrb[0].mxu0
      %v3267 = vadd.f32 0.0, %v3266
      %3268 = vmatprep.mubr.bf16.mxu0 0
      %3269 = vmatmul.mubr.bf16.gmra.mrb[0].mxu0 %v3062
      %v3270 = vpop.f32.mrb[0].mxu0
      %v3271 = vadd.f32 0.0, %v3270
      %v3272 = vpop.f32.mrb[0].mxu0
      %v3273 = vadd.f32 0.0, %v3272
      %v3274 = vpop.f32.mrb[0].mxu0
      %v3275 = vadd.f32 0.0, %v3274
      %v3276 = vpop.f32.mrb[0].mxu0
      %v3277 = vadd.f32 0.0, %v3276
      %3278 = vmatprep.mubr.bf16.mxu0 0
      %3279 = vmatmul.mubr.bf16.gmra.mrb[0].mxu0 %v3063
      %v3280 = vpop.f32.mrb[0].mxu0
      %v3281 = vadd.f32 0.0, %v3280
      %v3282 = vpop.f32.mrb[0].mxu0
      %v3283 = vadd.f32 0.0, %v3282
      %v3284 = vpop.f32.mrb[0].mxu0
      %v3285 = vadd.f32 0.0, %v3284
      %v3286 = vpop.f32.mrb[0].mxu0
      %v3287 = vadd.f32 0.0, %v3286
      %3288 = vmatprep.mubr.bf16.mxu0 0
      %3289 = vmatmul.mubr.bf16.gmra.mrb[0].mxu0 %v3064
      %v3290 = vpop.f32.mrb[0].mxu0
      %v3291 = vadd.f32 0.0, %v3290
      %v3292 = vpop.f32.mrb[0].mxu0
      %v3293 = vadd.f32 0.0, %v3292
      %v3294 = vpop.f32.mrb[0].mxu0
      %v3295 = vadd.f32 0.0, %v3294
      %v3296 = vpop.f32.mrb[0].mxu0
      %v3297 = vadd.f32 0.0, %v3296
      %3298 = vdwg.mxu0
      %v3299 = vpack.c.bf16 %v3112, %v3108
      %v3300 = vpack.c.bf16 %v3114, %v3110
      %v3301 = vpack.c.bf16 %v3225, %v3221
      %v3302 = vpack.c.bf16 %v3227, %v3223
      %v3303 = vpack.c.bf16 %v3122, %v3118
      %v3304 = vpack.c.bf16 %v3124, %v3120
      %v3305 = vpack.c.bf16 %v3235, %v3231
      %v3306 = vpack.c.bf16 %v3237, %v3233
      %v3307 = vpack.c.bf16 %v3132, %v3128
      %v3308 = vpack.c.bf16 %v3134, %v3130
      %v3309 = vpack.c.bf16 %v3245, %v3241
      %v3310 = vpack.c.bf16 %v3247, %v3243
      %v3311 = vpack.c.bf16 %v3142, %v3138
      %v3312 = vpack.c.bf16 %v3144, %v3140
      %v3313 = vpack.c.bf16 %v3255, %v3251
      %v3314 = vpack.c.bf16 %v3257, %v3253
      %v3315 = vpack.c.bf16 %v3152, %v3148
      %v3316 = vpack.c.bf16 %v3154, %v3150
      %v3317 = vpack.c.bf16 %v3265, %v3261
      %v3318 = vpack.c.bf16 %v3267, %v3263
      %v3319 = vpack.c.bf16 %v3162, %v3158
      %v3320 = vpack.c.bf16 %v3164, %v3160
      %v3321 = vpack.c.bf16 %v3275, %v3271
      %v3322 = vpack.c.bf16 %v3277, %v3273
      %v3323 = vpack.c.bf16 %v3172, %v3168
      %v3324 = vpack.c.bf16 %v3174, %v3170
      %v3325 = vpack.c.bf16 %v3285, %v3281
      %v3326 = vpack.c.bf16 %v3287, %v3283
      %v3327 = vpack.c.bf16 %v3182, %v3178
      %v3328 = vpack.c.bf16 %v3184, %v3180
      %v3329 = vpack.c.bf16 %v3295, %v3291
      %v3330 = vpack.c.bf16 %v3297, %v3293
      %3332 = vset.pattern.permute.xlu0 0
      %3333 = vperm.xlu0 %3332, %v507
      %v3334 = vpop.permute.xlu0 %3333
      %v3337 = vunpack.c.l.s4 839922192
      %v3338 = vunpack.c.0.s8 %v3337
      %v3339 = vlaneseq
      %v3340 = vshrl.u32 %v3339, 7
      %v3341 = vsub.s32 %v3338, %v3340
      %v3342 = vrot.slane %v3334, %v3341
      %3344 = vset.pattern.permute.xlu0 0
      %3345 = vperm.xlu0 %3344, %v508
      %v3346 = vpop.permute.xlu0 %3345
      %v3349 = vunpack.c.l.s4 839922192
      %v3350 = vunpack.c.0.s8 %v3349
      %v3351 = vlaneseq
      %v3352 = vshrl.u32 %v3351, 7
      %v3353 = vsub.s32 %v3350, %v3352
      %v3354 = vrot.slane %v3346, %v3353
      %3356 = vset.pattern.permute.xlu0 0
      %3357 = vperm.xlu0 %3356, %v509
      %v3358 = vpop.permute.xlu0 %3357
      %v3361 = vunpack.c.l.s4 839922192
      %v3362 = vunpack.c.0.s8 %v3361
      %v3363 = vlaneseq
      %v3364 = vshrl.u32 %v3363, 7
      %v3365 = vsub.s32 %v3362, %v3364
      %v3366 = vrot.slane %v3358, %v3365
      %3368 = vset.pattern.permute.xlu0 0
      %3369 = vperm.xlu0 %3368, %v510
      %v3370 = vpop.permute.xlu0 %3369
      %v3373 = vunpack.c.l.s4 839922192
      %v3374 = vunpack.c.0.s8 %v3373
      %v3375 = vlaneseq
      %v3376 = vshrl.u32 %v3375, 7
      %v3377 = vsub.s32 %v3374, %v3376
      %v3378 = vrot.slane %v3370, %v3377
      %3380 = vset.pattern.permute.xlu0 0
      %3381 = vperm.xlu0 %3380, %v511
      %v3382 = vpop.permute.xlu0 %3381
      %v3385 = vunpack.c.l.s4 839922192
      %v3386 = vunpack.c.0.s8 %v3385
      %v3387 = vlaneseq
      %v3388 = vshrl.u32 %v3387, 7
      %v3389 = vsub.s32 %v3386, %v3388
      %v3390 = vrot.slane %v3382, %v3389
      %3392 = vset.pattern.permute.xlu0 0
      %3393 = vperm.xlu0 %3392, %v512
      %v3394 = vpop.permute.xlu0 %3393
      %v3397 = vunpack.c.l.s4 839922192
      %v3398 = vunpack.c.0.s8 %v3397
      %v3399 = vlaneseq
      %v3400 = vshrl.u32 %v3399, 7
      %v3401 = vsub.s32 %v3398, %v3400
      %v3402 = vrot.slane %v3394, %v3401
      %3404 = vset.pattern.permute.xlu0 0
      %3405 = vperm.xlu0 %3404, %v513
      %v3406 = vpop.permute.xlu0 %3405
      %v3409 = vunpack.c.l.s4 839922192
      %v3410 = vunpack.c.0.s8 %v3409
      %v3411 = vlaneseq
      %v3412 = vshrl.u32 %v3411, 7
      %v3413 = vsub.s32 %v3410, %v3412
      %v3414 = vrot.slane %v3406, %v3413
      %3416 = vset.pattern.permute.xlu0 0
      %3417 = vperm.xlu0 %3416, %v514
      %v3418 = vpop.permute.xlu0 %3417
      %v3421 = vunpack.c.l.s4 839922192
      %v3422 = vunpack.c.0.s8 %v3421
      %v3423 = vlaneseq
      %v3424 = vshrl.u32 %v3423, 7
      %v3425 = vsub.s32 %v3422, %v3424
      %v3426 = vrot.slane %v3418, %v3425
      %3428 = vset.pattern.permute.xlu0 0
      %3429 = vperm.xlu0 %3428, %v515
      %v3430 = vpop.permute.xlu0 %3429
      %v3433 = vunpack.c.l.s4 839922192
      %v3434 = vunpack.c.0.s8 %v3433
      %v3435 = vlaneseq
      %v3436 = vshrl.u32 %v3435, 7
      %v3437 = vsub.s32 %v3434, %v3436
      %v3438 = vrot.slane %v3430, %v3437
      %3440 = vset.pattern.permute.xlu0 0
      %3441 = vperm.xlu0 %3440, %v516
      %v3442 = vpop.permute.xlu0 %3441
      %v3445 = vunpack.c.l.s4 839922192
      %v3446 = vunpack.c.0.s8 %v3445
      %v3447 = vlaneseq
      %v3448 = vshrl.u32 %v3447, 7
      %v3449 = vsub.s32 %v3446, %v3448
      %v3450 = vrot.slane %v3442, %v3449
      %3452 = vset.pattern.permute.xlu0 0
      %3453 = vperm.xlu0 %3452, %v517
      %v3454 = vpop.permute.xlu0 %3453
      %v3457 = vunpack.c.l.s4 839922192
      %v3458 = vunpack.c.0.s8 %v3457
      %v3459 = vlaneseq
      %v3460 = vshrl.u32 %v3459, 7
      %v3461 = vsub.s32 %v3458, %v3460
      %v3462 = vrot.slane %v3454, %v3461
      %3464 = vset.pattern.permute.xlu0 0
      %3465 = vperm.xlu0 %3464, %v518
      %v3466 = vpop.permute.xlu0 %3465
      %v3469 = vunpack.c.l.s4 839922192
      %v3470 = vunpack.c.0.s8 %v3469
      %v3471 = vlaneseq
      %v3472 = vshrl.u32 %v3471, 7
      %v3473 = vsub.s32 %v3470, %v3472
      %v3474 = vrot.slane %v3466, %v3473
      %3476 = vset.pattern.permute.xlu0 0
      %3477 = vperm.xlu0 %3476, %v519
      %v3478 = vpop.permute.xlu0 %3477
      %v3481 = vunpack.c.l.s4 839922192
      %v3482 = vunpack.c.0.s8 %v3481
      %v3483 = vlaneseq
      %v3484 = vshrl.u32 %v3483, 7
      %v3485 = vsub.s32 %v3482, %v3484
      %v3486 = vrot.slane %v3478, %v3485
      %3488 = vset.pattern.permute.xlu0 0
      %3489 = vperm.xlu0 %3488, %v520
      %v3490 = vpop.permute.xlu0 %3489
      %v3493 = vunpack.c.l.s4 839922192
      %v3494 = vunpack.c.0.s8 %v3493
      %v3495 = vlaneseq
      %v3496 = vshrl.u32 %v3495, 7
      %v3497 = vsub.s32 %v3494, %v3496
      %v3498 = vrot.slane %v3490, %v3497
      %3500 = vset.pattern.permute.xlu0 0
      %3501 = vperm.xlu0 %3500, %v521
      %v3502 = vpop.permute.xlu0 %3501
      %v3505 = vunpack.c.l.s4 839922192
      %v3506 = vunpack.c.0.s8 %v3505
      %v3507 = vlaneseq
      %v3508 = vshrl.u32 %v3507, 7
      %v3509 = vsub.s32 %v3506, %v3508
      %v3510 = vrot.slane %v3502, %v3509
      %3512 = vset.pattern.permute.xlu0 0
      %3513 = vperm.xlu0 %3512, %v522
      %v3514 = vpop.permute.xlu0 %3513
      %v3517 = vunpack.c.l.s4 839922192
      %v3518 = vunpack.c.0.s8 %v3517
      %v3519 = vlaneseq
      %v3520 = vshrl.u32 %v3519, 7
      %v3521 = vsub.s32 %v3518, %v3520
      %v3522 = vrot.slane %v3514, %v3521
      %v3539 = vunpack.c.l.b16 %v3342
      %v3540 = vunpack.c.l.b16 %v3354
      %v3541 = vunpack.c.l.b16 %v3366
      %v3542 = vunpack.c.l.b16 %v3378
      %v3543 = vunpack.c.l.b16 %v3390
      %v3544 = vunpack.c.l.b16 %v3402
      %v3545 = vunpack.c.l.b16 %v3414
      %v3546 = vunpack.c.l.b16 %v3426
      %v3547 = vunpack.c.l.b16 %v3438
      %v3548 = vunpack.c.l.b16 %v3450
      %v3549 = vunpack.c.l.b16 %v3462
      %v3550 = vunpack.c.l.b16 %v3474
      %v3551 = vunpack.c.l.b16 %v3486
      %v3552 = vunpack.c.l.b16 %v3498
      %v3553 = vunpack.c.l.b16 %v3510
      %v3554 = vunpack.c.l.b16 %v3522
      %v3555 = vpack.c.b16 %v3540, %v3539
      %v3556 = vpack.c.b16 %v3542, %v3541
      %v3557 = vpack.c.b16 %v3544, %v3543
      %v3558 = vpack.c.b16 %v3546, %v3545
      %v3559 = vpack.c.b16 %v3548, %v3547
      %v3560 = vpack.c.b16 %v3550, %v3549
      %v3561 = vpack.c.b16 %v3552, %v3551
      %v3562 = vpack.c.b16 %v3554, %v3553
      %v3571 = vadd.bf16 %v3299, %v3555
      %v3572 = vadd.bf16 %v3300, %v3555
      %v3573 = vadd.bf16 %v3301, %v3555
      %v3574 = vadd.bf16 %v3302, %v3555
      %v3575 = vadd.bf16 %v3303, %v3556
      %v3576 = vadd.bf16 %v3304, %v3556
      %v3577 = vadd.bf16 %v3305, %v3556
      %v3578 = vadd.bf16 %v3306, %v3556
      %v3579 = vadd.bf16 %v3307, %v3557
      %v3580 = vadd.bf16 %v3308, %v3557
      %v3581 = vadd.bf16 %v3309, %v3557
      %v3582 = vadd.bf16 %v3310, %v3557
      %v3583 = vadd.bf16 %v3311, %v3558
      %v3584 = vadd.bf16 %v3312, %v3558
      %v3585 = vadd.bf16 %v3313, %v3558
      %v3586 = vadd.bf16 %v3314, %v3558
      %v3587 = vadd.bf16 %v3315, %v3559
      %v3588 = vadd.bf16 %v3316, %v3559
      %v3589 = vadd.bf16 %v3317, %v3559
      %v3590 = vadd.bf16 %v3318, %v3559
      %v3591 = vadd.bf16 %v3319, %v3560
      %v3592 = vadd.bf16 %v3320, %v3560
      %v3593 = vadd.bf16 %v3321, %v3560
      %v3594 = vadd.bf16 %v3322, %v3560
      %v3595 = vadd.bf16 %v3323, %v3561
      %v3596 = vadd.bf16 %v3324, %v3561
      %v3597 = vadd.bf16 %v3325, %v3561
      %v3598 = vadd.bf16 %v3326, %v3561
      %v3599 = vadd.bf16 %v3327, %v3562
      %v3600 = vadd.bf16 %v3328, %v3562
      %v3601 = vadd.bf16 %v3329, %v3562
      %v3602 = vadd.bf16 %v3330, %v3562
      %v3603 = vmax.bf16 %v3571, 0
      %v3604 = vmax.bf16 %v3572, 0
      %v3605 = vmax.bf16 %v3573, 0
      %v3606 = vmax.bf16 %v3574, 0
      %v3607 = vmax.bf16 %v3575, 0
      %v3608 = vmax.bf16 %v3576, 0
      %v3609 = vmax.bf16 %v3577, 0
      %v3610 = vmax.bf16 %v3578, 0
      %v3611 = vmax.bf16 %v3579, 0
      %v3612 = vmax.bf16 %v3580, 0
      %v3613 = vmax.bf16 %v3581, 0
      %v3614 = vmax.bf16 %v3582, 0
      %v3615 = vmax.bf16 %v3583, 0
      %v3616 = vmax.bf16 %v3584, 0
      %v3617 = vmax.bf16 %v3585, 0
      %v3618 = vmax.bf16 %v3586, 0
      %v3619 = vmax.bf16 %v3587, 0
      %v3620 = vmax.bf16 %v3588, 0
      %v3621 = vmax.bf16 %v3589, 0
      %v3622 = vmax.bf16 %v3590, 0
      %v3623 = vmax.bf16 %v3591, 0
      %v3624 = vmax.bf16 %v3592, 0
      %v3625 = vmax.bf16 %v3593, 0
      %v3626 = vmax.bf16 %v3594, 0
      %v3627 = vmax.bf16 %v3595, 0
      %v3628 = vmax.bf16 %v3596, 0
      %v3629 = vmax.bf16 %v3597, 0
      %v3630 = vmax.bf16 %v3598, 0
      %v3631 = vmax.bf16 %v3599, 0
      %v3632 = vmax.bf16 %v3600, 0
      %v3633 = vmax.bf16 %v3601, 0
      %v3634 = vmax.bf16 %v3602, 0
      %3636 = vset.pattern.permute.xlu0 0
      %3637 = vperm.xlu0 %3636, %v524
      %v3638 = vpop.permute.xlu0 %3637
      %3640 = vmatprep.subr.bf16.mxu0 %v3604
      %3641 = vmatpush1.bf16.msra.mxu0 %v3603
      %3642 = vmatprep.subr.bf16.mxu0 %v3608
      %3643 = vmatpush1.bf16.msra.mxu0 %v3607
      %3644 = vmatprep.subr.bf16.mxu0 %v3612
      %3645 = vmatpush1.bf16.msra.mxu0 %v3611
      %3646 = vmatprep.subr.bf16.mxu0 %v3616
      %3647 = vmatpush1.bf16.msra.mxu0 %v3615
      %3648 = vmatprep.subr.bf16.mxu0 %v3620
      %3649 = vmatpush1.bf16.msra.mxu0 %v3619
      %3650 = vmatprep.subr.bf16.mxu0 %v3624
      %3651 = vmatpush1.bf16.msra.mxu0 %v3623
      %3652 = vmatprep.subr.bf16.mxu0 %v3628
      %3653 = vmatpush1.bf16.msra.mxu0 %v3627
      %3654 = vmatprep.subr.bf16.mxu0 %v3632
      %3655 = vmatpush1.bf16.msra.mxu0 %v3631
      %3656 = vmatprep.subr.bf16.mxu0 0
      %3657 = vmatpush1.bf16.msra.mxu0 0
      %3658 = vmatprep.subr.bf16.mxu0 0
      %3659 = vmatpush1.bf16.msra.mxu0 0
      %3660 = vmatprep.subr.bf16.mxu0 0
      %3661 = vmatpush1.bf16.msra.mxu0 0
      %3662 = vmatprep.subr.bf16.mxu0 0
      %3663 = vmatpush1.bf16.msra.mxu0 0
      %3664 = vmatprep.subr.bf16.mxu0 0
      %3665 = vmatpush1.bf16.msra.mxu0 0
      %3666 = vmatprep.subr.bf16.mxu0 0
      %3667 = vmatpush1.bf16.msra.mxu0 0
      %3668 = vmatprep.subr.bf16.mxu0 0
      %3669 = vmatpush1.bf16.msra.mxu0 0
      %3670 = vmatprep.subr.bf16.mxu0 0
      %3671 = vmatpush1.bf16.msra.mxu0 0
      %3672 = vmatprep.mubr.bf16.mxu0 0
      %3673 = vmatmul.mubr.bf16.gmra.mrb[0].mxu0 %v523
      %v3674 = vpop.f32.mrb[0].mxu0
      %v3675 = vadd.f32 %v3638, %v3674
      %v3676 = vpop.f32.mrb[0].mxu0
      %v3677 = vadd.f32 %v3638, %v3676
      %v3678 = vpop.f32.mrb[0].mxu0
      %v3679 = vpop.f32.mrb[0].mxu0
      %3680 = vdwg.mxu0
      %3681 = vmatprep.subr.bf16.mxu0 %v3606
      %3682 = vmatpush1.bf16.msra.mxu0 %v3605
      %3683 = vmatprep.subr.bf16.mxu0 %v3610
      %3684 = vmatpush1.bf16.msra.mxu0 %v3609
      %3685 = vmatprep.subr.bf16.mxu0 %v3614
      %3686 = vmatpush1.bf16.msra.mxu0 %v3613
      %3687 = vmatprep.subr.bf16.mxu0 %v3618
      %3688 = vmatpush1.bf16.msra.mxu0 %v3617
      %3689 = vmatprep.subr.bf16.mxu0 %v3622
      %3690 = vmatpush1.bf16.msra.mxu0 %v3621
      %3691 = vmatprep.subr.bf16.mxu0 %v3626
      %3692 = vmatpush1.bf16.msra.mxu0 %v3625
      %3693 = vmatprep.subr.bf16.mxu0 %v3630
      %3694 = vmatpush1.bf16.msra.mxu0 %v3629
      %3695 = vmatprep.subr.bf16.mxu0 %v3634
      %3696 = vmatpush1.bf16.msra.mxu0 %v3633
      %3697 = vmatprep.subr.bf16.mxu0 0
      %3698 = vmatpush1.bf16.msra.mxu0 0
      %3699 = vmatprep.subr.bf16.mxu0 0
      %3700 = vmatpush1.bf16.msra.mxu0 0
      %3701 = vmatprep.subr.bf16.mxu0 0
      %3702 = vmatpush1.bf16.msra.mxu0 0
      %3703 = vmatprep.subr.bf16.mxu0 0
      %3704 = vmatpush1.bf16.msra.mxu0 0
      %3705 = vmatprep.subr.bf16.mxu0 0
      %3706 = vmatpush1.bf16.msra.mxu0 0
      %3707 = vmatprep.subr.bf16.mxu0 0
      %3708 = vmatpush1.bf16.msra.mxu0 0
      %3709 = vmatprep.subr.bf16.mxu0 0
      %3710 = vmatpush1.bf16.msra.mxu0 0
      %3711 = vmatprep.subr.bf16.mxu0 0
      %3712 = vmatpush1.bf16.msra.mxu0 0
      %3713 = vmatprep.mubr.bf16.mxu0 0
      %3714 = vmatmul.mubr.bf16.gmra.mrb[0].mxu0 %v523
      %v3715 = vpop.f32.mrb[0].mxu0
      %v3716 = vadd.f32 %v3638, %v3715
      %v3717 = vpop.f32.mrb[0].mxu0
      %v3718 = vadd.f32 %v3638, %v3717
      %v3719 = vpop.f32.mrb[0].mxu0
      %v3720 = vpop.f32.mrb[0].mxu0
      %3721 = vdwg.mxu0
      %3722 = vst [vmem:[%s388] sm:$0xff] %v3675
      %3723 = vst [vmem:[%s388 + $0x8] sm:$0xff] %v3677
      %3724 = vst [vmem:[%s388 + $0x10] sm:$0xff] %v3716
      %3725 = vst [vmem:[%s388 + $0x18] sm:$0xff] %v3718
      %v3726 = vld [vmem:[%s382 + $0x8] sm:$0xff]
      %v3728 = vcombine.high %v3726, %v3726
      %v3730 = vunpack.c.l.s4 1983009808
      %v3731 = vunpack.c.0.s8 %v3730
      %v3732 = vlaneseq
      %v3733 = vshrl.u32 %v3732, 7
      %v3734 = vsub.s32 %v3731, %v3733
      %v3735 = vrot.slane %v3726, %v3734
      %v3737 = vunpack.c.l.s4 1983009808
      %v3738 = vunpack.c.0.s8 %v3737
      %v3739 = vlaneseq
      %v3740 = vshrl.u32 %v3739, 7
      %v3741 = vsub.s32 %v3738, %v3740
      %v3742 = vrot.slane %v3728, %v3741
      %v3743 = vcombine.high %v3735, %v3735
      %v3744 = vcombine.high %v3742, %v3742
      %v3746 = vpack.i.b16 %v3735, %v3735
      %v3748 = vlaneseq
      %v3749 = vshrl.u32 %v3748, 7
      %v3750 = vsub.s32 0, %v3749
      %v3751 = vrot.slane %v3746, %v3750
      %v3753 = vpack.i.b16 %v3743, %v3743
      %v3755 = vlaneseq
      %v3756 = vshrl.u32 %v3755, 7
      %v3757 = vsub.s32 0, %v3756
      %v3758 = vrot.slane %v3753, %v3757
      %v3760 = vpack.i.b16 %v3742, %v3742
      %v3762 = vlaneseq
      %v3763 = vshrl.u32 %v3762, 7
      %v3764 = vsub.s32 0, %v3763
      %v3765 = vrot.slane %v3760, %v3764
      %v3767 = vpack.i.b16 %v3744, %v3744
      %v3769 = vlaneseq
      %v3770 = vshrl.u32 %v3769, 7
      %v3771 = vsub.s32 0, %v3770
      %v3772 = vrot.slane %v3767, %v3771
      %v3777 = vunpack.c.l.b16 %v3751
      %v3778 = vunpack.c.l.b16 %v3758
      %v3779 = vunpack.c.l.b16 %v3765
      %v3780 = vunpack.c.l.b16 %v3772
      %v3781 = vpack.c.b16 %v3778, %v3777
      %v3782 = vpack.c.b16 %v3780, %v3779
      %v3785 = vmul.bf16 %v537, %v3781
      %v3786 = vmul.bf16 %v537, %v3782
      %v3787 = vmul.bf16 %v549, %v3781
      %v3788 = vmul.bf16 %v549, %v3782
      %v3789 = vmul.bf16 %v561, %v3781
      %v3790 = vmul.bf16 %v561, %v3782
      %v3791 = vmul.bf16 %v573, %v3781
      %v3792 = vmul.bf16 %v573, %v3782
      %v3793 = vmul.bf16 %v585, %v3781
      %v3794 = vmul.bf16 %v585, %v3782
      %v3795 = vmul.bf16 %v597, %v3781
      %v3796 = vmul.bf16 %v597, %v3782
      %v3797 = vmul.bf16 %v609, %v3781
      %v3798 = vmul.bf16 %v609, %v3782
      %v3799 = vmul.bf16 %v621, %v3781
      %v3800 = vmul.bf16 %v621, %v3782
      %v3801 = vadd.bf16 %v707, %v3785
      %v3802 = vadd.bf16 %v707, %v3786
      %v3803 = vadd.bf16 %v719, %v3787
      %v3804 = vadd.bf16 %v719, %v3788
      %v3805 = vadd.bf16 %v731, %v3789
      %v3806 = vadd.bf16 %v731, %v3790
      %v3807 = vadd.bf16 %v743, %v3791
      %v3808 = vadd.bf16 %v743, %v3792
      %v3809 = vadd.bf16 %v755, %v3793
      %v3810 = vadd.bf16 %v755, %v3794
      %v3811 = vadd.bf16 %v767, %v3795
      %v3812 = vadd.bf16 %v767, %v3796
      %v3813 = vadd.bf16 %v779, %v3797
      %v3814 = vadd.bf16 %v779, %v3798
      %v3815 = vadd.bf16 %v791, %v3799
      %v3816 = vadd.bf16 %v791, %v3800
      %v3817 = vshrl.u32 %v3735, 16
      %v3818 = vpack.i.b16 %v3817, %v3817
      %v3820 = vlaneseq
      %v3821 = vshrl.u32 %v3820, 7
      %v3822 = vsub.s32 0, %v3821
      %v3823 = vrot.slane %v3818, %v3822
      %v3824 = vshrl.u32 %v3743, 16
      %v3825 = vpack.i.b16 %v3824, %v3824
      %v3827 = vlaneseq
      %v3828 = vshrl.u32 %v3827, 7
      %v3829 = vsub.s32 0, %v3828
      %v3830 = vrot.slane %v3825, %v3829
      %v3831 = vshrl.u32 %v3742, 16
      %v3832 = vpack.i.b16 %v3831, %v3831
      %v3834 = vlaneseq
      %v3835 = vshrl.u32 %v3834, 7
      %v3836 = vsub.s32 0, %v3835
      %v3837 = vrot.slane %v3832, %v3836
      %v3838 = vshrl.u32 %v3744, 16
      %v3839 = vpack.i.b16 %v3838, %v3838
      %v3841 = vlaneseq
      %v3842 = vshrl.u32 %v3841, 7
      %v3843 = vsub.s32 0, %v3842
      %v3844 = vrot.slane %v3839, %v3843
      %v3849 = vunpack.c.l.b16 %v3823
      %v3850 = vunpack.c.l.b16 %v3830
      %v3851 = vunpack.c.l.b16 %v3837
      %v3852 = vunpack.c.l.b16 %v3844
      %v3853 = vpack.c.b16 %v3850, %v3849
      %v3854 = vpack.c.b16 %v3852, %v3851
      %v3857 = vmul.bf16 %v818, %v3853
      %v3858 = vmul.bf16 %v818, %v3854
      %v3859 = vmul.bf16 %v829, %v3853
      %v3860 = vmul.bf16 %v829, %v3854
      %v3861 = vmul.bf16 %v840, %v3853
      %v3862 = vmul.bf16 %v840, %v3854
      %v3863 = vmul.bf16 %v851, %v3853
      %v3864 = vmul.bf16 %v851, %v3854
      %v3865 = vmul.bf16 %v862, %v3853
      %v3866 = vmul.bf16 %v862, %v3854
      %v3867 = vmul.bf16 %v873, %v3853
      %v3868 = vmul.bf16 %v873, %v3854
      %v3869 = vmul.bf16 %v884, %v3853
      %v3870 = vmul.bf16 %v884, %v3854
      %v3871 = vmul.bf16 %v895, %v3853
      %v3872 = vmul.bf16 %v895, %v3854
      %v3873 = vadd.bf16 %v3801, %v3857
      %v3874 = vadd.bf16 %v3802, %v3858
      %v3875 = vadd.bf16 %v3803, %v3859
      %v3876 = vadd.bf16 %v3804, %v3860
      %v3877 = vadd.bf16 %v3805, %v3861
      %v3878 = vadd.bf16 %v3806, %v3862
      %v3879 = vadd.bf16 %v3807, %v3863
      %v3880 = vadd.bf16 %v3808, %v3864
      %v3881 = vadd.bf16 %v3809, %v3865
      %v3882 = vadd.bf16 %v3810, %v3866
      %v3883 = vadd.bf16 %v3811, %v3867
      %v3884 = vadd.bf16 %v3812, %v3868
      %v3885 = vadd.bf16 %v3813, %v3869
      %v3886 = vadd.bf16 %v3814, %v3870
      %v3887 = vadd.bf16 %v3815, %v3871
      %v3888 = vadd.bf16 %v3816, %v3872
      %v3889 = vlaneseq
      %v3890 = vshrl.u32 %v3889, 7
      %v3891 = vsub.s32 1, %v3890
      %v3892 = vrot.slane %v3746, %v3891
      %v3893 = vlaneseq
      %v3894 = vshrl.u32 %v3893, 7
      %v3895 = vsub.s32 1, %v3894
      %v3896 = vrot.slane %v3753, %v3895
      %v3897 = vlaneseq
      %v3898 = vshrl.u32 %v3897, 7
      %v3899 = vsub.s32 1, %v3898
      %v3900 = vrot.slane %v3760, %v3899
      %v3901 = vlaneseq
      %v3902 = vshrl.u32 %v3901, 7
      %v3903 = vsub.s32 1, %v3902
      %v3904 = vrot.slane %v3767, %v3903
      %v3909 = vunpack.c.l.b16 %v3892
      %v3910 = vunpack.c.l.b16 %v3896
      %v3911 = vunpack.c.l.b16 %v3900
      %v3912 = vunpack.c.l.b16 %v3904
      %v3913 = vpack.c.b16 %v3910, %v3909
      %v3914 = vpack.c.b16 %v3912, %v3911
      %v3917 = vmul.bf16 %v978, %v3913
      %v3918 = vmul.bf16 %v978, %v3914
      %v3919 = vmul.bf16 %v989, %v3913
      %v3920 = vmul.bf16 %v989, %v3914
      %v3921 = vmul.bf16 %v1000, %v3913
      %v3922 = vmul.bf16 %v1000, %v3914
      %v3923 = vmul.bf16 %v1011, %v3913
      %v3924 = vmul.bf16 %v1011, %v3914
      %v3925 = vmul.bf16 %v1022, %v3913
      %v3926 = vmul.bf16 %v1022, %v3914
      %v3927 = vmul.bf16 %v1033, %v3913
      %v3928 = vmul.bf16 %v1033, %v3914
      %v3929 = vmul.bf16 %v1044, %v3913
      %v3930 = vmul.bf16 %v1044, %v3914
      %v3931 = vmul.bf16 %v1055, %v3913
      %v3932 = vmul.bf16 %v1055, %v3914
      %v3933 = vadd.bf16 %v3873, %v3917
      %v3934 = vadd.bf16 %v3874, %v3918
      %v3935 = vadd.bf16 %v3875, %v3919
      %v3936 = vadd.bf16 %v3876, %v3920
      %v3937 = vadd.bf16 %v3877, %v3921
      %v3938 = vadd.bf16 %v3878, %v3922
      %v3939 = vadd.bf16 %v3879, %v3923
      %v3940 = vadd.bf16 %v3880, %v3924
      %v3941 = vadd.bf16 %v3881, %v3925
      %v3942 = vadd.bf16 %v3882, %v3926
      %v3943 = vadd.bf16 %v3883, %v3927
      %v3944 = vadd.bf16 %v3884, %v3928
      %v3945 = vadd.bf16 %v3885, %v3929
      %v3946 = vadd.bf16 %v3886, %v3930
      %v3947 = vadd.bf16 %v3887, %v3931
      %v3948 = vadd.bf16 %v3888, %v3932
      %v3949 = vlaneseq
      %v3950 = vshrl.u32 %v3949, 7
      %v3951 = vsub.s32 1, %v3950
      %v3952 = vrot.slane %v3818, %v3951
      %v3953 = vlaneseq
      %v3954 = vshrl.u32 %v3953, 7
      %v3955 = vsub.s32 1, %v3954
      %v3956 = vrot.slane %v3825, %v3955
      %v3957 = vlaneseq
      %v3958 = vshrl.u32 %v3957, 7
      %v3959 = vsub.s32 1, %v3958
      %v3960 = vrot.slane %v3832, %v3959
      %v3961 = vlaneseq
      %v3962 = vshrl.u32 %v3961, 7
      %v3963 = vsub.s32 1, %v3962
      %v3964 = vrot.slane %v3839, %v3963
      %v3969 = vunpack.c.l.b16 %v3952
      %v3970 = vunpack.c.l.b16 %v3956
      %v3971 = vunpack.c.l.b16 %v3960
      %v3972 = vunpack.c.l.b16 %v3964
      %v3973 = vpack.c.b16 %v3970, %v3969
      %v3974 = vpack.c.b16 %v3972, %v3971
      %v3977 = vmul.bf16 %v1126, %v3973
      %v3978 = vmul.bf16 %v1126, %v3974
      %v3979 = vmul.bf16 %v1137, %v3973
      %v3980 = vmul.bf16 %v1137, %v3974
      %v3981 = vmul.bf16 %v1148, %v3973
      %v3982 = vmul.bf16 %v1148, %v3974
      %v3983 = vmul.bf16 %v1159, %v3973
      %v3984 = vmul.bf16 %v1159, %v3974
      %v3985 = vmul.bf16 %v1170, %v3973
      %v3986 = vmul.bf16 %v1170, %v3974
      %v3987 = vmul.bf16 %v1181, %v3973
      %v3988 = vmul.bf16 %v1181, %v3974
      %v3989 = vmul.bf16 %v1192, %v3973
      %v3990 = vmul.bf16 %v1192, %v3974
      %v3991 = vmul.bf16 %v1203, %v3973
      %v3992 = vmul.bf16 %v1203, %v3974
      %v3993 = vadd.bf16 %v3933, %v3977
      %v3994 = vadd.bf16 %v3934, %v3978
      %v3995 = vadd.bf16 %v3935, %v3979
      %v3996 = vadd.bf16 %v3936, %v3980
      %v3997 = vadd.bf16 %v3937, %v3981
      %v3998 = vadd.bf16 %v3938, %v3982
      %v3999 = vadd.bf16 %v3939, %v3983
      %v4000 = vadd.bf16 %v3940, %v3984
      %v4001 = vadd.bf16 %v3941, %v3985
      %v4002 = vadd.bf16 %v3942, %v3986
      %v4003 = vadd.bf16 %v3943, %v3987
      %v4004 = vadd.bf16 %v3944, %v3988
      %v4005 = vadd.bf16 %v3945, %v3989
      %v4006 = vadd.bf16 %v3946, %v3990
      %v4007 = vadd.bf16 %v3947, %v3991
      %v4008 = vadd.bf16 %v3948, %v3992
      %v4009 = vmax.bf16 %v3993, 0
      %v4010 = vmax.bf16 %v3994, 0
      %v4011 = vmax.bf16 %v3995, 0
      %v4012 = vmax.bf16 %v3996, 0
      %v4013 = vmax.bf16 %v3997, 0
      %v4014 = vmax.bf16 %v3998, 0
      %v4015 = vmax.bf16 %v3999, 0
      %v4016 = vmax.bf16 %v4000, 0
      %v4017 = vmax.bf16 %v4001, 0
      %v4018 = vmax.bf16 %v4002, 0
      %v4019 = vmax.bf16 %v4003, 0
      %v4020 = vmax.bf16 %v4004, 0
      %v4021 = vmax.bf16 %v4005, 0
      %v4022 = vmax.bf16 %v4006, 0
      %v4023 = vmax.bf16 %v4007, 0
      %v4024 = vmax.bf16 %v4008, 0
      %v4041 = vunpack.c.l.b16 %v4009
      %v4042 = vunpack.c.h.b16 %v4009
      %v4043 = vunpack.c.l.b16 %v4010
      %v4044 = vunpack.c.h.b16 %v4010
      %v4045 = vunpack.c.l.b16 %v4011
      %v4046 = vunpack.c.h.b16 %v4011
      %v4047 = vunpack.c.l.b16 %v4012
      %v4048 = vunpack.c.h.b16 %v4012
      %v4049 = vunpack.c.l.b16 %v4013
      %v4050 = vunpack.c.h.b16 %v4013
      %v4051 = vunpack.c.l.b16 %v4014
      %v4052 = vunpack.c.h.b16 %v4014
      %v4053 = vunpack.c.l.b16 %v4015
      %v4054 = vunpack.c.h.b16 %v4015
      %v4055 = vunpack.c.l.b16 %v4016
      %v4056 = vunpack.c.h.b16 %v4016
      %v4057 = vunpack.c.l.b16 %v4017
      %v4058 = vunpack.c.h.b16 %v4017
      %v4059 = vunpack.c.l.b16 %v4018
      %v4060 = vunpack.c.h.b16 %v4018
      %v4061 = vunpack.c.l.b16 %v4019
      %v4062 = vunpack.c.h.b16 %v4019
      %v4063 = vunpack.c.l.b16 %v4020
      %v4064 = vunpack.c.h.b16 %v4020
      %v4065 = vunpack.c.l.b16 %v4021
      %v4066 = vunpack.c.h.b16 %v4021
      %v4067 = vunpack.c.l.b16 %v4022
      %v4068 = vunpack.c.h.b16 %v4022
      %v4069 = vunpack.c.l.b16 %v4023
      %v4070 = vunpack.c.h.b16 %v4023
      %v4071 = vunpack.c.l.b16 %v4024
      %v4072 = vunpack.c.h.b16 %v4024
      %v4073 = vpack.c.b16 %v4045, %v4041
      %v4074 = vpack.c.b16 %v4046, %v4042
      %v4075 = vpack.c.b16 %v4047, %v4043
      %v4076 = vpack.c.b16 %v4048, %v4044
      %v4077 = vpack.c.b16 %v4053, %v4049
      %v4078 = vpack.c.b16 %v4054, %v4050
      %v4079 = vpack.c.b16 %v4055, %v4051
      %v4080 = vpack.c.b16 %v4056, %v4052
      %v4081 = vpack.c.b16 %v4061, %v4057
      %v4082 = vpack.c.b16 %v4062, %v4058
      %v4083 = vpack.c.b16 %v4063, %v4059
      %v4084 = vpack.c.b16 %v4064, %v4060
      %v4085 = vpack.c.b16 %v4069, %v4065
      %v4086 = vpack.c.b16 %v4070, %v4066
      %v4087 = vpack.c.b16 %v4071, %v4067
      %v4088 = vpack.c.b16 %v4072, %v4068
      %4105 = vmatprep.subr.bf16.mxu0 %v4074
      %4106 = vmatpush1.bf16.msra.mxu0 %v4073
      %4107 = vmatprep.subr.bf16.mxu0 %v4078
      %4108 = vmatpush1.bf16.msra.mxu0 %v4077
      %4109 = vmatprep.subr.bf16.mxu0 %v4082
      %4110 = vmatpush1.bf16.msra.mxu0 %v4081
      %4111 = vmatprep.subr.bf16.mxu0 %v4086
      %4112 = vmatpush1.bf16.msra.mxu0 %v4085
      %4113 = vmatprep.subr.bf16.mxu0 0
      %4114 = vmatpush1.bf16.msra.mxu0 0
      %4115 = vmatprep.subr.bf16.mxu0 0
      %4116 = vmatpush1.bf16.msra.mxu0 0
      %4117 = vmatprep.subr.bf16.mxu0 0
      %4118 = vmatpush1.bf16.msra.mxu0 0
      %4119 = vmatprep.subr.bf16.mxu0 0
      %4120 = vmatpush1.bf16.msra.mxu0 0
      %4121 = vmatprep.subr.bf16.mxu0 0
      %4122 = vmatpush1.bf16.msra.mxu0 0
      %4123 = vmatprep.subr.bf16.mxu0 0
      %4124 = vmatpush1.bf16.msra.mxu0 0
      %4125 = vmatprep.subr.bf16.mxu0 0
      %4126 = vmatpush1.bf16.msra.mxu0 0
      %4127 = vmatprep.subr.bf16.mxu0 0
      %4128 = vmatpush1.bf16.msra.mxu0 0
      %4129 = vmatprep.subr.bf16.mxu0 0
      %4130 = vmatpush1.bf16.msra.mxu0 0
      %4131 = vmatprep.subr.bf16.mxu0 0
      %4132 = vmatpush1.bf16.msra.mxu0 0
      %4133 = vmatprep.subr.bf16.mxu0 0
      %4134 = vmatpush1.bf16.msra.mxu0 0
      %4135 = vmatprep.subr.bf16.mxu0 0
      %4136 = vmatpush1.bf16.msra.mxu0 0
      %4137 = vmatprep.mubr.bf16.mxu0 0
      %4138 = vmatmul.mubr.bf16.gmra.mrb[0].mxu0 %v1382
      %v4139 = vpop.f32.mrb[0].mxu0
      %v4140 = vadd.f32 0.0, %v4139
      %v4141 = vpop.f32.mrb[0].mxu0
      %v4142 = vadd.f32 0.0, %v4141
      %v4143 = vpop.f32.mrb[0].mxu0
      %v4144 = vadd.f32 0.0, %v4143
      %v4145 = vpop.f32.mrb[0].mxu0
      %v4146 = vadd.f32 0.0, %v4145
      %4147 = vmatprep.mubr.bf16.mxu0 0
      %4148 = vmatmul.mubr.bf16.gmra.mrb[0].mxu0 %v1385
      %v4149 = vpop.f32.mrb[0].mxu0
      %v4150 = vadd.f32 0.0, %v4149
      %v4151 = vpop.f32.mrb[0].mxu0
      %v4152 = vadd.f32 0.0, %v4151
      %v4153 = vpop.f32.mrb[0].mxu0
      %v4154 = vadd.f32 0.0, %v4153
      %v4155 = vpop.f32.mrb[0].mxu0
      %v4156 = vadd.f32 0.0, %v4155
      %4157 = vmatprep.mubr.bf16.mxu0 0
      %4158 = vmatmul.mubr.bf16.gmra.mrb[0].mxu0 %v1388
      %v4159 = vpop.f32.mrb[0].mxu0
      %v4160 = vadd.f32 0.0, %v4159
      %v4161 = vpop.f32.mrb[0].mxu0
      %v4162 = vadd.f32 0.0, %v4161
      %v4163 = vpop.f32.mrb[0].mxu0
      %v4164 = vadd.f32 0.0, %v4163
      %v4165 = vpop.f32.mrb[0].mxu0
      %v4166 = vadd.f32 0.0, %v4165
      %4167 = vmatprep.mubr.bf16.mxu0 0
      %4168 = vmatmul.mubr.bf16.gmra.mrb[0].mxu0 %v1391
      %v4169 = vpop.f32.mrb[0].mxu0
      %v4170 = vadd.f32 0.0, %v4169
      %v4171 = vpop.f32.mrb[0].mxu0
      %v4172 = vadd.f32 0.0, %v4171
      %v4173 = vpop.f32.mrb[0].mxu0
      %v4174 = vadd.f32 0.0, %v4173
      %v4175 = vpop.f32.mrb[0].mxu0
      %v4176 = vadd.f32 0.0, %v4175
      %4177 = vdwg.mxu0
      %4178 = vmatprep.subr.bf16.mxu0 %v4076
      %4179 = vmatpush1.bf16.msra.mxu0 %v4075
      %4180 = vmatprep.subr.bf16.mxu0 %v4080
      %4181 = vmatpush1.bf16.msra.mxu0 %v4079
      %4182 = vmatprep.subr.bf16.mxu0 %v4084
      %4183 = vmatpush1.bf16.msra.mxu0 %v4083
      %4184 = vmatprep.subr.bf16.mxu0 %v4088
      %4185 = vmatpush1.bf16.msra.mxu0 %v4087
      %4186 = vmatprep.subr.bf16.mxu0 0
      %4187 = vmatpush1.bf16.msra.mxu0 0
      %4188 = vmatprep.subr.bf16.mxu0 0
      %4189 = vmatpush1.bf16.msra.mxu0 0
      %4190 = vmatprep.subr.bf16.mxu0 0
      %4191 = vmatpush1.bf16.msra.mxu0 0
      %4192 = vmatprep.subr.bf16.mxu0 0
      %4193 = vmatpush1.bf16.msra.mxu0 0
      %4194 = vmatprep.subr.bf16.mxu0 0
      %4195 = vmatpush1.bf16.msra.mxu0 0
      %4196 = vmatprep.subr.bf16.mxu0 0
      %4197 = vmatpush1.bf16.msra.mxu0 0
      %4198 = vmatprep.subr.bf16.mxu0 0
      %4199 = vmatpush1.bf16.msra.mxu0 0
      %4200 = vmatprep.subr.bf16.mxu0 0
      %4201 = vmatpush1.bf16.msra.mxu0 0
      %4202 = vmatprep.subr.bf16.mxu0 0
      %4203 = vmatpush1.bf16.msra.mxu0 0
      %4204 = vmatprep.subr.bf16.mxu0 0
      %4205 = vmatpush1.bf16.msra.mxu0 0
      %4206 = vmatprep.subr.bf16.mxu0 0
      %4207 = vmatpush1.bf16.msra.mxu0 0
      %4208 = vmatprep.subr.bf16.mxu0 0
      %4209 = vmatpush1.bf16.msra.mxu0 0
      %4210 = vmatprep.mubr.bf16.mxu0 0
      %4211 = vmatmul.mubr.bf16.gmra.mrb[0].mxu0 %v1382
      %v4212 = vpop.f32.mrb[0].mxu0
      %v4213 = vadd.f32 0.0, %v4212
      %v4214 = vpop.f32.mrb[0].mxu0
      %v4215 = vadd.f32 0.0, %v4214
      %v4216 = vpop.f32.mrb[0].mxu0
      %v4217 = vadd.f32 0.0, %v4216
      %v4218 = vpop.f32.mrb[0].mxu0
      %v4219 = vadd.f32 0.0, %v4218
      %4220 = vmatprep.mubr.bf16.mxu0 0
      %4221 = vmatmul.mubr.bf16.gmra.mrb[0].mxu0 %v1385
      %v4222 = vpop.f32.mrb[0].mxu0
      %v4223 = vadd.f32 0.0, %v4222
      %v4224 = vpop.f32.mrb[0].mxu0
      %v4225 = vadd.f32 0.0, %v4224
      %v4226 = vpop.f32.mrb[0].mxu0
      %v4227 = vadd.f32 0.0, %v4226
      %v4228 = vpop.f32.mrb[0].mxu0
      %v4229 = vadd.f32 0.0, %v4228
      %4230 = vmatprep.mubr.bf16.mxu0 0
      %4231 = vmatmul.mubr.bf16.gmra.mrb[0].mxu0 %v1388
      %v4232 = vpop.f32.mrb[0].mxu0
      %v4233 = vadd.f32 0.0, %v4232
      %v4234 = vpop.f32.mrb[0].mxu0
      %v4235 = vadd.f32 0.0, %v4234
      %v4236 = vpop.f32.mrb[0].mxu0
      %v4237 = vadd.f32 0.0, %v4236
      %v4238 = vpop.f32.mrb[0].mxu0
      %v4239 = vadd.f32 0.0, %v4238
      %4240 = vmatprep.mubr.bf16.mxu0 0
      %4241 = vmatmul.mubr.bf16.gmra.mrb[0].mxu0 %v1391
      %v4242 = vpop.f32.mrb[0].mxu0
      %v4243 = vadd.f32 0.0, %v4242
      %v4244 = vpop.f32.mrb[0].mxu0
      %v4245 = vadd.f32 0.0, %v4244
      %v4246 = vpop.f32.mrb[0].mxu0
      %v4247 = vadd.f32 0.0, %v4246
      %v4248 = vpop.f32.mrb[0].mxu0
      %v4249 = vadd.f32 0.0, %v4248
      %4250 = vdwg.mxu0
      %v4251 = vpack.c.bf16 %v4144, %v4140
      %v4252 = vpack.c.bf16 %v4146, %v4142
      %v4253 = vpack.c.bf16 %v4217, %v4213
      %v4254 = vpack.c.bf16 %v4219, %v4215
      %v4255 = vpack.c.bf16 %v4154, %v4150
      %v4256 = vpack.c.bf16 %v4156, %v4152
      %v4257 = vpack.c.bf16 %v4227, %v4223
      %v4258 = vpack.c.bf16 %v4229, %v4225
      %v4259 = vpack.c.bf16 %v4164, %v4160
      %v4260 = vpack.c.bf16 %v4166, %v4162
      %v4261 = vpack.c.bf16 %v4237, %v4233
      %v4262 = vpack.c.bf16 %v4239, %v4235
      %v4263 = vpack.c.bf16 %v4174, %v4170
      %v4264 = vpack.c.bf16 %v4176, %v4172
      %v4265 = vpack.c.bf16 %v4247, %v4243
      %v4266 = vpack.c.bf16 %v4249, %v4245
      %v4267 = vadd.bf16 %v4251, %v1667
      %v4268 = vadd.bf16 %v4252, %v1667
      %v4269 = vadd.bf16 %v4253, %v1667
      %v4270 = vadd.bf16 %v4254, %v1667
      %v4271 = vadd.bf16 %v4255, %v1668
      %v4272 = vadd.bf16 %v4256, %v1668
      %v4273 = vadd.bf16 %v4257, %v1668
      %v4274 = vadd.bf16 %v4258, %v1668
      %v4275 = vadd.bf16 %v4259, %v1669
      %v4276 = vadd.bf16 %v4260, %v1669
      %v4277 = vadd.bf16 %v4261, %v1669
      %v4278 = vadd.bf16 %v4262, %v1669
      %v4279 = vadd.bf16 %v4263, %v1670
      %v4280 = vadd.bf16 %v4264, %v1670
      %v4281 = vadd.bf16 %v4265, %v1670
      %v4282 = vadd.bf16 %v4266, %v1670
      %v4283 = vmax.bf16 %v4267, 0
      %v4284 = vmax.bf16 %v4268, 0
      %v4285 = vmax.bf16 %v4269, 0
      %v4286 = vmax.bf16 %v4270, 0
      %v4287 = vmax.bf16 %v4271, 0
      %v4288 = vmax.bf16 %v4272, 0
      %v4289 = vmax.bf16 %v4273, 0
      %v4290 = vmax.bf16 %v4274, 0
      %v4291 = vmax.bf16 %v4275, 0
      %v4292 = vmax.bf16 %v4276, 0
      %v4293 = vmax.bf16 %v4277, 0
      %v4294 = vmax.bf16 %v4278, 0
      %v4295 = vmax.bf16 %v4279, 0
      %v4296 = vmax.bf16 %v4280, 0
      %v4297 = vmax.bf16 %v4281, 0
      %v4298 = vmax.bf16 %v4282, 0
      %4299 = vmatprep.subr.bf16.mxu0 %v4284
      %4300 = vmatpush1.bf16.msra.mxu0 %v4283
      %4301 = vmatprep.subr.bf16.mxu0 %v4288
      %4302 = vmatpush1.bf16.msra.mxu0 %v4287
      %4303 = vmatprep.subr.bf16.mxu0 %v4292
      %4304 = vmatpush1.bf16.msra.mxu0 %v4291
      %4305 = vmatprep.subr.bf16.mxu0 %v4296
      %4306 = vmatpush1.bf16.msra.mxu0 %v4295
      %4307 = vmatprep.subr.bf16.mxu0 0
      %4308 = vmatpush1.bf16.msra.mxu0 0
      %4309 = vmatprep.subr.bf16.mxu0 0
      %4310 = vmatpush1.bf16.msra.mxu0 0
      %4311 = vmatprep.subr.bf16.mxu0 0
      %4312 = vmatpush1.bf16.msra.mxu0 0
      %4313 = vmatprep.subr.bf16.mxu0 0
      %4314 = vmatpush1.bf16.msra.mxu0 0
      %4315 = vmatprep.subr.bf16.mxu0 0
      %4316 = vmatpush1.bf16.msra.mxu0 0
      %4317 = vmatprep.subr.bf16.mxu0 0
      %4318 = vmatpush1.bf16.msra.mxu0 0
      %4319 = vmatprep.subr.bf16.mxu0 0
      %4320 = vmatpush1.bf16.msra.mxu0 0
      %4321 = vmatprep.subr.bf16.mxu0 0
      %4322 = vmatpush1.bf16.msra.mxu0 0
      %4323 = vmatprep.subr.bf16.mxu0 0
      %4324 = vmatpush1.bf16.msra.mxu0 0
      %4325 = vmatprep.subr.bf16.mxu0 0
      %4326 = vmatpush1.bf16.msra.mxu0 0
      %4327 = vmatprep.subr.bf16.mxu0 0
      %4328 = vmatpush1.bf16.msra.mxu0 0
      %4329 = vmatprep.subr.bf16.mxu0 0
      %4330 = vmatpush1.bf16.msra.mxu0 0
      %4331 = vmatprep.mubr.bf16.mxu0 0
      %4332 = vmatmul.mubr.bf16.gmra.mrb[0].mxu0 %v1728
      %v4333 = vpop.f32.mrb[0].mxu0
      %v4334 = vadd.f32 0.0, %v4333
      %v4335 = vpop.f32.mrb[0].mxu0
      %v4336 = vadd.f32 0.0, %v4335
      %v4337 = vpop.f32.mrb[0].mxu0
      %v4338 = vadd.f32 0.0, %v4337
      %v4339 = vpop.f32.mrb[0].mxu0
      %v4340 = vadd.f32 0.0, %v4339
      %4341 = vmatprep.mubr.bf16.mxu0 0
      %4342 = vmatmul.mubr.bf16.gmra.mrb[0].mxu0 %v1731
      %v4343 = vpop.f32.mrb[0].mxu0
      %v4344 = vadd.f32 0.0, %v4343
      %v4345 = vpop.f32.mrb[0].mxu0
      %v4346 = vadd.f32 0.0, %v4345
      %v4347 = vpop.f32.mrb[0].mxu0
      %v4348 = vadd.f32 0.0, %v4347
      %v4349 = vpop.f32.mrb[0].mxu0
      %v4350 = vadd.f32 0.0, %v4349
      %4351 = vmatprep.mubr.bf16.mxu0 0
      %4352 = vmatmul.mubr.bf16.gmra.mrb[0].mxu0 %v1734
      %v4353 = vpop.f32.mrb[0].mxu0
      %v4354 = vadd.f32 0.0, %v4353
      %v4355 = vpop.f32.mrb[0].mxu0
      %v4356 = vadd.f32 0.0, %v4355
      %v4357 = vpop.f32.mrb[0].mxu0
      %v4358 = vadd.f32 0.0, %v4357
      %v4359 = vpop.f32.mrb[0].mxu0
      %v4360 = vadd.f32 0.0, %v4359
      %4361 = vmatprep.mubr.bf16.mxu0 0
      %4362 = vmatmul.mubr.bf16.gmra.mrb[0].mxu0 %v1737
      %v4363 = vpop.f32.mrb[0].mxu0
      %v4364 = vadd.f32 0.0, %v4363
      %v4365 = vpop.f32.mrb[0].mxu0
      %v4366 = vadd.f32 0.0, %v4365
      %v4367 = vpop.f32.mrb[0].mxu0
      %v4368 = vadd.f32 0.0, %v4367
      %v4369 = vpop.f32.mrb[0].mxu0
      %v4370 = vadd.f32 0.0, %v4369
      %4371 = vdwg.mxu0
      %4372 = vmatprep.subr.bf16.mxu0 %v4286
      %4373 = vmatpush1.bf16.msra.mxu0 %v4285
      %4374 = vmatprep.subr.bf16.mxu0 %v4290
      %4375 = vmatpush1.bf16.msra.mxu0 %v4289
      %4376 = vmatprep.subr.bf16.mxu0 %v4294
      %4377 = vmatpush1.bf16.msra.mxu0 %v4293
      %4378 = vmatprep.subr.bf16.mxu0 %v4298
      %4379 = vmatpush1.bf16.msra.mxu0 %v4297
      %4380 = vmatprep.subr.bf16.mxu0 0
      %4381 = vmatpush1.bf16.msra.mxu0 0
      %4382 = vmatprep.subr.bf16.mxu0 0
      %4383 = vmatpush1.bf16.msra.mxu0 0
      %4384 = vmatprep.subr.bf16.mxu0 0
      %4385 = vmatpush1.bf16.msra.mxu0 0
      %4386 = vmatprep.subr.bf16.mxu0 0
      %4387 = vmatpush1.bf16.msra.mxu0 0
      %4388 = vmatprep.subr.bf16.mxu0 0
      %4389 = vmatpush1.bf16.msra.mxu0 0
      %4390 = vmatprep.subr.bf16.mxu0 0
      %4391 = vmatpush1.bf16.msra.mxu0 0
      %4392 = vmatprep.subr.bf16.mxu0 0
      %4393 = vmatpush1.bf16.msra.mxu0 0
      %4394 = vmatprep.subr.bf16.mxu0 0
      %4395 = vmatpush1.bf16.msra.mxu0 0
      %4396 = vmatprep.subr.bf16.mxu0 0
      %4397 = vmatpush1.bf16.msra.mxu0 0
      %4398 = vmatprep.subr.bf16.mxu0 0
      %4399 = vmatpush1.bf16.msra.mxu0 0
      %4400 = vmatprep.subr.bf16.mxu0 0
      %4401 = vmatpush1.bf16.msra.mxu0 0
      %4402 = vmatprep.subr.bf16.mxu0 0
      %4403 = vmatpush1.bf16.msra.mxu0 0
      %4404 = vmatprep.mubr.bf16.mxu0 0
      %4405 = vmatmul.mubr.bf16.gmra.mrb[0].mxu0 %v1728
      %v4406 = vpop.f32.mrb[0].mxu0
      %v4407 = vadd.f32 0.0, %v4406
      %v4408 = vpop.f32.mrb[0].mxu0
      %v4409 = vadd.f32 0.0, %v4408
      %v4410 = vpop.f32.mrb[0].mxu0
      %v4411 = vadd.f32 0.0, %v4410
      %v4412 = vpop.f32.mrb[0].mxu0
      %v4413 = vadd.f32 0.0, %v4412
      %4414 = vmatprep.mubr.bf16.mxu0 0
      %4415 = vmatmul.mubr.bf16.gmra.mrb[0].mxu0 %v1731
      %v4416 = vpop.f32.mrb[0].mxu0
      %v4417 = vadd.f32 0.0, %v4416
      %v4418 = vpop.f32.mrb[0].mxu0
      %v4419 = vadd.f32 0.0, %v4418
      %v4420 = vpop.f32.mrb[0].mxu0
      %v4421 = vadd.f32 0.0, %v4420
      %v4422 = vpop.f32.mrb[0].mxu0
      %v4423 = vadd.f32 0.0, %v4422
      %4424 = vmatprep.mubr.bf16.mxu0 0
      %4425 = vmatmul.mubr.bf16.gmra.mrb[0].mxu0 %v1734
      %v4426 = vpop.f32.mrb[0].mxu0
      %v4427 = vadd.f32 0.0, %v4426
      %v4428 = vpop.f32.mrb[0].mxu0
      %v4429 = vadd.f32 0.0, %v4428
      %v4430 = vpop.f32.mrb[0].mxu0
      %v4431 = vadd.f32 0.0, %v4430
      %v4432 = vpop.f32.mrb[0].mxu0
      %v4433 = vadd.f32 0.0, %v4432
      %4434 = vmatprep.mubr.bf16.mxu0 0
      %4435 = vmatmul.mubr.bf16.gmra.mrb[0].mxu0 %v1737
      %v4436 = vpop.f32.mrb[0].mxu0
      %v4437 = vadd.f32 0.0, %v4436
      %v4438 = vpop.f32.mrb[0].mxu0
      %v4439 = vadd.f32 0.0, %v4438
      %v4440 = vpop.f32.mrb[0].mxu0
      %v4441 = vadd.f32 0.0, %v4440
      %v4442 = vpop.f32.mrb[0].mxu0
      %v4443 = vadd.f32 0.0, %v4442
      %4444 = vdwg.mxu0
      %v4445 = vpack.c.bf16 %v4338, %v4334
      %v4446 = vpack.c.bf16 %v4340, %v4336
      %v4447 = vpack.c.bf16 %v4411, %v4407
      %v4448 = vpack.c.bf16 %v4413, %v4409
      %v4449 = vpack.c.bf16 %v4348, %v4344
      %v4450 = vpack.c.bf16 %v4350, %v4346
      %v4451 = vpack.c.bf16 %v4421, %v4417
      %v4452 = vpack.c.bf16 %v4423, %v4419
      %v4453 = vpack.c.bf16 %v4358, %v4354
      %v4454 = vpack.c.bf16 %v4360, %v4356
      %v4455 = vpack.c.bf16 %v4431, %v4427
      %v4456 = vpack.c.bf16 %v4433, %v4429
      %v4457 = vpack.c.bf16 %v4368, %v4364
      %v4458 = vpack.c.bf16 %v4370, %v4366
      %v4459 = vpack.c.bf16 %v4441, %v4437
      %v4460 = vpack.c.bf16 %v4443, %v4439
      %v4461 = vadd.bf16 %v4445, %v2013
      %v4462 = vadd.bf16 %v4446, %v2013
      %v4463 = vadd.bf16 %v4447, %v2013
      %v4464 = vadd.bf16 %v4448, %v2013
      %v4465 = vadd.bf16 %v4449, %v2014
      %v4466 = vadd.bf16 %v4450, %v2014
      %v4467 = vadd.bf16 %v4451, %v2014
      %v4468 = vadd.bf16 %v4452, %v2014
      %v4469 = vadd.bf16 %v4453, %v2015
      %v4470 = vadd.bf16 %v4454, %v2015
      %v4471 = vadd.bf16 %v4455, %v2015
      %v4472 = vadd.bf16 %v4456, %v2015
      %v4473 = vadd.bf16 %v4457, %v2016
      %v4474 = vadd.bf16 %v4458, %v2016
      %v4475 = vadd.bf16 %v4459, %v2016
      %v4476 = vadd.bf16 %v4460, %v2016
      %v4477 = vmax.bf16 %v4461, 0
      %v4478 = vmax.bf16 %v4462, 0
      %v4479 = vmax.bf16 %v4463, 0
      %v4480 = vmax.bf16 %v4464, 0
      %v4481 = vmax.bf16 %v4465, 0
      %v4482 = vmax.bf16 %v4466, 0
      %v4483 = vmax.bf16 %v4467, 0
      %v4484 = vmax.bf16 %v4468, 0
      %v4485 = vmax.bf16 %v4469, 0
      %v4486 = vmax.bf16 %v4470, 0
      %v4487 = vmax.bf16 %v4471, 0
      %v4488 = vmax.bf16 %v4472, 0
      %v4489 = vmax.bf16 %v4473, 0
      %v4490 = vmax.bf16 %v4474, 0
      %v4491 = vmax.bf16 %v4475, 0
      %v4492 = vmax.bf16 %v4476, 0
      %4493 = vmatprep.subr.bf16.mxu0 %v4478
      %4494 = vmatpush1.bf16.msra.mxu0 %v4477
      %4495 = vmatprep.subr.bf16.mxu0 %v4482
      %4496 = vmatpush1.bf16.msra.mxu0 %v4481
      %4497 = vmatprep.subr.bf16.mxu0 %v4486
      %4498 = vmatpush1.bf16.msra.mxu0 %v4485
      %4499 = vmatprep.subr.bf16.mxu0 %v4490
      %4500 = vmatpush1.bf16.msra.mxu0 %v4489
      %4501 = vmatprep.subr.bf16.mxu0 0
      %4502 = vmatpush1.bf16.msra.mxu0 0
      %4503 = vmatprep.subr.bf16.mxu0 0
      %4504 = vmatpush1.bf16.msra.mxu0 0
      %4505 = vmatprep.subr.bf16.mxu0 0
      %4506 = vmatpush1.bf16.msra.mxu0 0
      %4507 = vmatprep.subr.bf16.mxu0 0
      %4508 = vmatpush1.bf16.msra.mxu0 0
      %4509 = vmatprep.subr.bf16.mxu0 0
      %4510 = vmatpush1.bf16.msra.mxu0 0
      %4511 = vmatprep.subr.bf16.mxu0 0
      %4512 = vmatpush1.bf16.msra.mxu0 0
      %4513 = vmatprep.subr.bf16.mxu0 0
      %4514 = vmatpush1.bf16.msra.mxu0 0
      %4515 = vmatprep.subr.bf16.mxu0 0
      %4516 = vmatpush1.bf16.msra.mxu0 0
      %4517 = vmatprep.subr.bf16.mxu0 0
      %4518 = vmatpush1.bf16.msra.mxu0 0
      %4519 = vmatprep.subr.bf16.mxu0 0
      %4520 = vmatpush1.bf16.msra.mxu0 0
      %4521 = vmatprep.subr.bf16.mxu0 0
      %4522 = vmatpush1.bf16.msra.mxu0 0
      %4523 = vmatprep.subr.bf16.mxu0 0
      %4524 = vmatpush1.bf16.msra.mxu0 0
      %4525 = vmatprep.mubr.bf16.mxu0 0
      %4526 = vmatmul.mubr.bf16.gmra.mrb[0].mxu0 %v2074
      %v4527 = vpop.f32.mrb[0].mxu0
      %v4528 = vadd.f32 0.0, %v4527
      %v4529 = vpop.f32.mrb[0].mxu0
      %v4530 = vadd.f32 0.0, %v4529
      %v4531 = vpop.f32.mrb[0].mxu0
      %v4532 = vadd.f32 0.0, %v4531
      %v4533 = vpop.f32.mrb[0].mxu0
      %v4534 = vadd.f32 0.0, %v4533
      %4535 = vmatprep.mubr.bf16.mxu0 0
      %4536 = vmatmul.mubr.bf16.gmra.mrb[0].mxu0 %v2077
      %v4537 = vpop.f32.mrb[0].mxu0
      %v4538 = vadd.f32 0.0, %v4537
      %v4539 = vpop.f32.mrb[0].mxu0
      %v4540 = vadd.f32 0.0, %v4539
      %v4541 = vpop.f32.mrb[0].mxu0
      %v4542 = vadd.f32 0.0, %v4541
      %v4543 = vpop.f32.mrb[0].mxu0
      %v4544 = vadd.f32 0.0, %v4543
      %4545 = vmatprep.mubr.bf16.mxu0 0
      %4546 = vmatmul.mubr.bf16.gmra.mrb[0].mxu0 %v2080
      %v4547 = vpop.f32.mrb[0].mxu0
      %v4548 = vadd.f32 0.0, %v4547
      %v4549 = vpop.f32.mrb[0].mxu0
      %v4550 = vadd.f32 0.0, %v4549
      %v4551 = vpop.f32.mrb[0].mxu0
      %v4552 = vadd.f32 0.0, %v4551
      %v4553 = vpop.f32.mrb[0].mxu0
      %v4554 = vadd.f32 0.0, %v4553
      %4555 = vmatprep.mubr.bf16.mxu0 0
      %4556 = vmatmul.mubr.bf16.gmra.mrb[0].mxu0 %v2083
      %v4557 = vpop.f32.mrb[0].mxu0
      %v4558 = vadd.f32 0.0, %v4557
      %v4559 = vpop.f32.mrb[0].mxu0
      %v4560 = vadd.f32 0.0, %v4559
      %v4561 = vpop.f32.mrb[0].mxu0
      %v4562 = vadd.f32 0.0, %v4561
      %v4563 = vpop.f32.mrb[0].mxu0
      %v4564 = vadd.f32 0.0, %v4563
      %4565 = vdwg.mxu0
      %4566 = vmatprep.subr.bf16.mxu0 %v4480
      %4567 = vmatpush1.bf16.msra.mxu0 %v4479
      %4568 = vmatprep.subr.bf16.mxu0 %v4484
      %4569 = vmatpush1.bf16.msra.mxu0 %v4483
      %4570 = vmatprep.subr.bf16.mxu0 %v4488
      %4571 = vmatpush1.bf16.msra.mxu0 %v4487
      %4572 = vmatprep.subr.bf16.mxu0 %v4492
      %4573 = vmatpush1.bf16.msra.mxu0 %v4491
      %4574 = vmatprep.subr.bf16.mxu0 0
      %4575 = vmatpush1.bf16.msra.mxu0 0
      %4576 = vmatprep.subr.bf16.mxu0 0
      %4577 = vmatpush1.bf16.msra.mxu0 0
      %4578 = vmatprep.subr.bf16.mxu0 0
      %4579 = vmatpush1.bf16.msra.mxu0 0
      %4580 = vmatprep.subr.bf16.mxu0 0
      %4581 = vmatpush1.bf16.msra.mxu0 0
      %4582 = vmatprep.subr.bf16.mxu0 0
      %4583 = vmatpush1.bf16.msra.mxu0 0
      %4584 = vmatprep.subr.bf16.mxu0 0
      %4585 = vmatpush1.bf16.msra.mxu0 0
      %4586 = vmatprep.subr.bf16.mxu0 0
      %4587 = vmatpush1.bf16.msra.mxu0 0
      %4588 = vmatprep.subr.bf16.mxu0 0
      %4589 = vmatpush1.bf16.msra.mxu0 0
      %4590 = vmatprep.subr.bf16.mxu0 0
      %4591 = vmatpush1.bf16.msra.mxu0 0
      %4592 = vmatprep.subr.bf16.mxu0 0
      %4593 = vmatpush1.bf16.msra.mxu0 0
      %4594 = vmatprep.subr.bf16.mxu0 0
      %4595 = vmatpush1.bf16.msra.mxu0 0
      %4596 = vmatprep.subr.bf16.mxu0 0
      %4597 = vmatpush1.bf16.msra.mxu0 0
      %4598 = vmatprep.mubr.bf16.mxu0 0
      %4599 = vmatmul.mubr.bf16.gmra.mrb[0].mxu0 %v2074
      %v4600 = vpop.f32.mrb[0].mxu0
      %v4601 = vadd.f32 0.0, %v4600
      %v4602 = vpop.f32.mrb[0].mxu0
      %v4603 = vadd.f32 0.0, %v4602
      %v4604 = vpop.f32.mrb[0].mxu0
      %v4605 = vadd.f32 0.0, %v4604
      %v4606 = vpop.f32.mrb[0].mxu0
      %v4607 = vadd.f32 0.0, %v4606
      %4608 = vmatprep.mubr.bf16.mxu0 0
      %4609 = vmatmul.mubr.bf16.gmra.mrb[0].mxu0 %v2077
      %v4610 = vpop.f32.mrb[0].mxu0
      %v4611 = vadd.f32 0.0, %v4610
      %v4612 = vpop.f32.mrb[0].mxu0
      %v4613 = vadd.f32 0.0, %v4612
      %v4614 = vpop.f32.mrb[0].mxu0
      %v4615 = vadd.f32 0.0, %v4614
      %v4616 = vpop.f32.mrb[0].mxu0
      %v4617 = vadd.f32 0.0, %v4616
      %4618 = vmatprep.mubr.bf16.mxu0 0
      %4619 = vmatmul.mubr.bf16.gmra.mrb[0].mxu0 %v2080
      %v4620 = vpop.f32.mrb[0].mxu0
      %v4621 = vadd.f32 0.0, %v4620
      %v4622 = vpop.f32.mrb[0].mxu0
      %v4623 = vadd.f32 0.0, %v4622
      %v4624 = vpop.f32.mrb[0].mxu0
      %v4625 = vadd.f32 0.0, %v4624
      %v4626 = vpop.f32.mrb[0].mxu0
      %v4627 = vadd.f32 0.0, %v4626
      %4628 = vmatprep.mubr.bf16.mxu0 0
      %4629 = vmatmul.mubr.bf16.gmra.mrb[0].mxu0 %v2083
      %v4630 = vpop.f32.mrb[0].mxu0
      %v4631 = vadd.f32 0.0, %v4630
      %v4632 = vpop.f32.mrb[0].mxu0
      %v4633 = vadd.f32 0.0, %v4632
      %v4634 = vpop.f32.mrb[0].mxu0
      %v4635 = vadd.f32 0.0, %v4634
      %v4636 = vpop.f32.mrb[0].mxu0
      %v4637 = vadd.f32 0.0, %v4636
      %4638 = vdwg.mxu0
      %v4639 = vpack.c.bf16 %v4532, %v4528
      %v4640 = vpack.c.bf16 %v4534, %v4530
      %v4641 = vpack.c.bf16 %v4605, %v4601
      %v4642 = vpack.c.bf16 %v4607, %v4603
      %v4643 = vpack.c.bf16 %v4542, %v4538
      %v4644 = vpack.c.bf16 %v4544, %v4540
      %v4645 = vpack.c.bf16 %v4615, %v4611
      %v4646 = vpack.c.bf16 %v4617, %v4613
      %v4647 = vpack.c.bf16 %v4552, %v4548
      %v4648 = vpack.c.bf16 %v4554, %v4550
      %v4649 = vpack.c.bf16 %v4625, %v4621
      %v4650 = vpack.c.bf16 %v4627, %v4623
      %v4651 = vpack.c.bf16 %v4562, %v4558
      %v4652 = vpack.c.bf16 %v4564, %v4560
      %v4653 = vpack.c.bf16 %v4635, %v4631
      %v4654 = vpack.c.bf16 %v4637, %v4633
      %v4655 = vadd.bf16 %v4639, %v2359
      %v4656 = vadd.bf16 %v4640, %v2359
      %v4657 = vadd.bf16 %v4641, %v2359
      %v4658 = vadd.bf16 %v4642, %v2359
      %v4659 = vadd.bf16 %v4643, %v2360
      %v4660 = vadd.bf16 %v4644, %v2360
      %v4661 = vadd.bf16 %v4645, %v2360
      %v4662 = vadd.bf16 %v4646, %v2360
      %v4663 = vadd.bf16 %v4647, %v2361
      %v4664 = vadd.bf16 %v4648, %v2361
      %v4665 = vadd.bf16 %v4649, %v2361
      %v4666 = vadd.bf16 %v4650, %v2361
      %v4667 = vadd.bf16 %v4651, %v2362
      %v4668 = vadd.bf16 %v4652, %v2362
      %v4669 = vadd.bf16 %v4653, %v2362
      %v4670 = vadd.bf16 %v4654, %v2362
      %v4671 = vmax.bf16 %v4655, 0
      %v4672 = vmax.bf16 %v4656, 0
      %v4673 = vmax.bf16 %v4657, 0
      %v4674 = vmax.bf16 %v4658, 0
      %v4675 = vmax.bf16 %v4659, 0
      %v4676 = vmax.bf16 %v4660, 0
      %v4677 = vmax.bf16 %v4661, 0
      %v4678 = vmax.bf16 %v4662, 0
      %v4679 = vmax.bf16 %v4663, 0
      %v4680 = vmax.bf16 %v4664, 0
      %v4681 = vmax.bf16 %v4665, 0
      %v4682 = vmax.bf16 %v4666, 0
      %v4683 = vmax.bf16 %v4667, 0
      %v4684 = vmax.bf16 %v4668, 0
      %v4685 = vmax.bf16 %v4669, 0
      %v4686 = vmax.bf16 %v4670, 0
      %4687 = vmatprep.subr.bf16.mxu0 %v4672
      %4688 = vmatpush1.bf16.msra.mxu0 %v4671
      %4689 = vmatprep.subr.bf16.mxu0 %v4676
      %4690 = vmatpush1.bf16.msra.mxu0 %v4675
      %4691 = vmatprep.subr.bf16.mxu0 %v4680
      %4692 = vmatpush1.bf16.msra.mxu0 %v4679
      %4693 = vmatprep.subr.bf16.mxu0 %v4684
      %4694 = vmatpush1.bf16.msra.mxu0 %v4683
      %4695 = vmatprep.subr.bf16.mxu0 0
      %4696 = vmatpush1.bf16.msra.mxu0 0
      %4697 = vmatprep.subr.bf16.mxu0 0
      %4698 = vmatpush1.bf16.msra.mxu0 0
      %4699 = vmatprep.subr.bf16.mxu0 0
      %4700 = vmatpush1.bf16.msra.mxu0 0
      %4701 = vmatprep.subr.bf16.mxu0 0
      %4702 = vmatpush1.bf16.msra.mxu0 0
      %4703 = vmatprep.subr.bf16.mxu0 0
      %4704 = vmatpush1.bf16.msra.mxu0 0
      %4705 = vmatprep.subr.bf16.mxu0 0
      %4706 = vmatpush1.bf16.msra.mxu0 0
      %4707 = vmatprep.subr.bf16.mxu0 0
      %4708 = vmatpush1.bf16.msra.mxu0 0
      %4709 = vmatprep.subr.bf16.mxu0 0
      %4710 = vmatpush1.bf16.msra.mxu0 0
      %4711 = vmatprep.subr.bf16.mxu0 0
      %4712 = vmatpush1.bf16.msra.mxu0 0
      %4713 = vmatprep.subr.bf16.mxu0 0
      %4714 = vmatpush1.bf16.msra.mxu0 0
      %4715 = vmatprep.subr.bf16.mxu0 0
      %4716 = vmatpush1.bf16.msra.mxu0 0
      %4717 = vmatprep.subr.bf16.mxu0 0
      %4718 = vmatpush1.bf16.msra.mxu0 0
      %4719 = vmatprep.mubr.bf16.mxu0 0
      %4720 = vmatmul.mubr.bf16.gmra.mrb[0].mxu0 %v2440
      %v4721 = vpop.f32.mrb[0].mxu0
      %v4722 = vadd.f32 0.0, %v4721
      %v4723 = vpop.f32.mrb[0].mxu0
      %v4724 = vadd.f32 0.0, %v4723
      %v4725 = vpop.f32.mrb[0].mxu0
      %v4726 = vadd.f32 0.0, %v4725
      %v4727 = vpop.f32.mrb[0].mxu0
      %v4728 = vadd.f32 0.0, %v4727
      %4729 = vmatprep.mubr.bf16.mxu0 0
      %4730 = vmatmul.mubr.bf16.gmra.mrb[0].mxu0 %v2443
      %v4731 = vpop.f32.mrb[0].mxu0
      %v4732 = vadd.f32 0.0, %v4731
      %v4733 = vpop.f32.mrb[0].mxu0
      %v4734 = vadd.f32 0.0, %v4733
      %v4735 = vpop.f32.mrb[0].mxu0
      %v4736 = vadd.f32 0.0, %v4735
      %v4737 = vpop.f32.mrb[0].mxu0
      %v4738 = vadd.f32 0.0, %v4737
      %4739 = vmatprep.mubr.bf16.mxu0 0
      %4740 = vmatmul.mubr.bf16.gmra.mrb[0].mxu0 %v2446
      %v4741 = vpop.f32.mrb[0].mxu0
      %v4742 = vadd.f32 0.0, %v4741
      %v4743 = vpop.f32.mrb[0].mxu0
      %v4744 = vadd.f32 0.0, %v4743
      %v4745 = vpop.f32.mrb[0].mxu0
      %v4746 = vadd.f32 0.0, %v4745
      %v4747 = vpop.f32.mrb[0].mxu0
      %v4748 = vadd.f32 0.0, %v4747
      %4749 = vmatprep.mubr.bf16.mxu0 0
      %4750 = vmatmul.mubr.bf16.gmra.mrb[0].mxu0 %v2449
      %v4751 = vpop.f32.mrb[0].mxu0
      %v4752 = vadd.f32 0.0, %v4751
      %v4753 = vpop.f32.mrb[0].mxu0
      %v4754 = vadd.f32 0.0, %v4753
      %v4755 = vpop.f32.mrb[0].mxu0
      %v4756 = vadd.f32 0.0, %v4755
      %v4757 = vpop.f32.mrb[0].mxu0
      %v4758 = vadd.f32 0.0, %v4757
      %4759 = vmatprep.mubr.bf16.mxu0 0
      %4760 = vmatmul.mubr.bf16.gmra.mrb[0].mxu0 %v2452
      %v4761 = vpop.f32.mrb[0].mxu0
      %v4762 = vadd.f32 0.0, %v4761
      %v4763 = vpop.f32.mrb[0].mxu0
      %v4764 = vadd.f32 0.0, %v4763
      %v4765 = vpop.f32.mrb[0].mxu0
      %v4766 = vadd.f32 0.0, %v4765
      %v4767 = vpop.f32.mrb[0].mxu0
      %v4768 = vadd.f32 0.0, %v4767
      %4769 = vmatprep.mubr.bf16.mxu0 0
      %4770 = vmatmul.mubr.bf16.gmra.mrb[0].mxu0 %v2455
      %v4771 = vpop.f32.mrb[0].mxu0
      %v4772 = vadd.f32 0.0, %v4771
      %v4773 = vpop.f32.mrb[0].mxu0
      %v4774 = vadd.f32 0.0, %v4773
      %v4775 = vpop.f32.mrb[0].mxu0
      %v4776 = vadd.f32 0.0, %v4775
      %v4777 = vpop.f32.mrb[0].mxu0
      %v4778 = vadd.f32 0.0, %v4777
      %4779 = vmatprep.mubr.bf16.mxu0 0
      %4780 = vmatmul.mubr.bf16.gmra.mrb[0].mxu0 %v2458
      %v4781 = vpop.f32.mrb[0].mxu0
      %v4782 = vadd.f32 0.0, %v4781
      %v4783 = vpop.f32.mrb[0].mxu0
      %v4784 = vadd.f32 0.0, %v4783
      %v4785 = vpop.f32.mrb[0].mxu0
      %v4786 = vadd.f32 0.0, %v4785
      %v4787 = vpop.f32.mrb[0].mxu0
      %v4788 = vadd.f32 0.0, %v4787
      %4789 = vmatprep.mubr.bf16.mxu0 0
      %4790 = vmatmul.mubr.bf16.gmra.mrb[0].mxu0 %v2461
      %v4791 = vpop.f32.mrb[0].mxu0
      %v4792 = vadd.f32 0.0, %v4791
      %v4793 = vpop.f32.mrb[0].mxu0
      %v4794 = vadd.f32 0.0, %v4793
      %v4795 = vpop.f32.mrb[0].mxu0
      %v4796 = vadd.f32 0.0, %v4795
      %v4797 = vpop.f32.mrb[0].mxu0
      %v4798 = vadd.f32 0.0, %v4797
      %4799 = vdwg.mxu0
      %4800 = vmatprep.subr.bf16.mxu0 %v4674
      %4801 = vmatpush1.bf16.msra.mxu0 %v4673
      %4802 = vmatprep.subr.bf16.mxu0 %v4678
      %4803 = vmatpush1.bf16.msra.mxu0 %v4677
      %4804 = vmatprep.subr.bf16.mxu0 %v4682
      %4805 = vmatpush1.bf16.msra.mxu0 %v4681
      %4806 = vmatprep.subr.bf16.mxu0 %v4686
      %4807 = vmatpush1.bf16.msra.mxu0 %v4685
      %4808 = vmatprep.subr.bf16.mxu0 0
      %4809 = vmatpush1.bf16.msra.mxu0 0
      %4810 = vmatprep.subr.bf16.mxu0 0
      %4811 = vmatpush1.bf16.msra.mxu0 0
      %4812 = vmatprep.subr.bf16.mxu0 0
      %4813 = vmatpush1.bf16.msra.mxu0 0
      %4814 = vmatprep.subr.bf16.mxu0 0
      %4815 = vmatpush1.bf16.msra.mxu0 0
      %4816 = vmatprep.subr.bf16.mxu0 0
      %4817 = vmatpush1.bf16.msra.mxu0 0
      %4818 = vmatprep.subr.bf16.mxu0 0
      %4819 = vmatpush1.bf16.msra.mxu0 0
      %4820 = vmatprep.subr.bf16.mxu0 0
      %4821 = vmatpush1.bf16.msra.mxu0 0
      %4822 = vmatprep.subr.bf16.mxu0 0
      %4823 = vmatpush1.bf16.msra.mxu0 0
      %4824 = vmatprep.subr.bf16.mxu0 0
      %4825 = vmatpush1.bf16.msra.mxu0 0
      %4826 = vmatprep.subr.bf16.mxu0 0
      %4827 = vmatpush1.bf16.msra.mxu0 0
      %4828 = vmatprep.subr.bf16.mxu0 0
      %4829 = vmatpush1.bf16.msra.mxu0 0
      %4830 = vmatprep.subr.bf16.mxu0 0
      %4831 = vmatpush1.bf16.msra.mxu0 0
      %4832 = vmatprep.mubr.bf16.mxu0 0
      %4833 = vmatmul.mubr.bf16.gmra.mrb[0].mxu0 %v2440
      %v4834 = vpop.f32.mrb[0].mxu0
      %v4835 = vadd.f32 0.0, %v4834
      %v4836 = vpop.f32.mrb[0].mxu0
      %v4837 = vadd.f32 0.0, %v4836
      %v4838 = vpop.f32.mrb[0].mxu0
      %v4839 = vadd.f32 0.0, %v4838
      %v4840 = vpop.f32.mrb[0].mxu0
      %v4841 = vadd.f32 0.0, %v4840
      %4842 = vmatprep.mubr.bf16.mxu0 0
      %4843 = vmatmul.mubr.bf16.gmra.mrb[0].mxu0 %v2443
      %v4844 = vpop.f32.mrb[0].mxu0
      %v4845 = vadd.f32 0.0, %v4844
      %v4846 = vpop.f32.mrb[0].mxu0
      %v4847 = vadd.f32 0.0, %v4846
      %v4848 = vpop.f32.mrb[0].mxu0
      %v4849 = vadd.f32 0.0, %v4848
      %v4850 = vpop.f32.mrb[0].mxu0
      %v4851 = vadd.f32 0.0, %v4850
      %4852 = vmatprep.mubr.bf16.mxu0 0
      %4853 = vmatmul.mubr.bf16.gmra.mrb[0].mxu0 %v2446
      %v4854 = vpop.f32.mrb[0].mxu0
      %v4855 = vadd.f32 0.0, %v4854
      %v4856 = vpop.f32.mrb[0].mxu0
      %v4857 = vadd.f32 0.0, %v4856
      %v4858 = vpop.f32.mrb[0].mxu0
      %v4859 = vadd.f32 0.0, %v4858
      %v4860 = vpop.f32.mrb[0].mxu0
      %v4861 = vadd.f32 0.0, %v4860
      %4862 = vmatprep.mubr.bf16.mxu0 0
      %4863 = vmatmul.mubr.bf16.gmra.mrb[0].mxu0 %v2449
      %v4864 = vpop.f32.mrb[0].mxu0
      %v4865 = vadd.f32 0.0, %v4864
      %v4866 = vpop.f32.mrb[0].mxu0
      %v4867 = vadd.f32 0.0, %v4866
      %v4868 = vpop.f32.mrb[0].mxu0
      %v4869 = vadd.f32 0.0, %v4868
      %v4870 = vpop.f32.mrb[0].mxu0
      %v4871 = vadd.f32 0.0, %v4870
      %4872 = vmatprep.mubr.bf16.mxu0 0
      %4873 = vmatmul.mubr.bf16.gmra.mrb[0].mxu0 %v2452
      %v4874 = vpop.f32.mrb[0].mxu0
      %v4875 = vadd.f32 0.0, %v4874
      %v4876 = vpop.f32.mrb[0].mxu0
      %v4877 = vadd.f32 0.0, %v4876
      %v4878 = vpop.f32.mrb[0].mxu0
      %v4879 = vadd.f32 0.0, %v4878
      %v4880 = vpop.f32.mrb[0].mxu0
      %v4881 = vadd.f32 0.0, %v4880
      %4882 = vmatprep.mubr.bf16.mxu0 0
      %4883 = vmatmul.mubr.bf16.gmra.mrb[0].mxu0 %v2455
      %v4884 = vpop.f32.mrb[0].mxu0
      %v4885 = vadd.f32 0.0, %v4884
      %v4886 = vpop.f32.mrb[0].mxu0
      %v4887 = vadd.f32 0.0, %v4886
      %v4888 = vpop.f32.mrb[0].mxu0
      %v4889 = vadd.f32 0.0, %v4888
      %v4890 = vpop.f32.mrb[0].mxu0
      %v4891 = vadd.f32 0.0, %v4890
      %4892 = vmatprep.mubr.bf16.mxu0 0
      %4893 = vmatmul.mubr.bf16.gmra.mrb[0].mxu0 %v2458
      %v4894 = vpop.f32.mrb[0].mxu0
      %v4895 = vadd.f32 0.0, %v4894
      %v4896 = vpop.f32.mrb[0].mxu0
      %v4897 = vadd.f32 0.0, %v4896
      %v4898 = vpop.f32.mrb[0].mxu0
      %v4899 = vadd.f32 0.0, %v4898
      %v4900 = vpop.f32.mrb[0].mxu0
      %v4901 = vadd.f32 0.0, %v4900
      %4902 = vmatprep.mubr.bf16.mxu0 0
      %4903 = vmatmul.mubr.bf16.gmra.mrb[0].mxu0 %v2461
      %v4904 = vpop.f32.mrb[0].mxu0
      %v4905 = vadd.f32 0.0, %v4904
      %v4906 = vpop.f32.mrb[0].mxu0
      %v4907 = vadd.f32 0.0, %v4906
      %v4908 = vpop.f32.mrb[0].mxu0
      %v4909 = vadd.f32 0.0, %v4908
      %v4910 = vpop.f32.mrb[0].mxu0
      %v4911 = vadd.f32 0.0, %v4910
      %4912 = vdwg.mxu0
      %v4913 = vpack.c.bf16 %v4726, %v4722
      %v4914 = vpack.c.bf16 %v4728, %v4724
      %v4915 = vpack.c.bf16 %v4839, %v4835
      %v4916 = vpack.c.bf16 %v4841, %v4837
      %v4917 = vpack.c.bf16 %v4736, %v4732
      %v4918 = vpack.c.bf16 %v4738, %v4734
      %v4919 = vpack.c.bf16 %v4849, %v4845
      %v4920 = vpack.c.bf16 %v4851, %v4847
      %v4921 = vpack.c.bf16 %v4746, %v4742
      %v4922 = vpack.c.bf16 %v4748, %v4744
      %v4923 = vpack.c.bf16 %v4859, %v4855
      %v4924 = vpack.c.bf16 %v4861, %v4857
      %v4925 = vpack.c.bf16 %v4756, %v4752
      %v4926 = vpack.c.bf16 %v4758, %v4754
      %v4927 = vpack.c.bf16 %v4869, %v4865
      %v4928 = vpack.c.bf16 %v4871, %v4867
      %v4929 = vpack.c.bf16 %v4766, %v4762
      %v4930 = vpack.c.bf16 %v4768, %v4764
      %v4931 = vpack.c.bf16 %v4879, %v4875
      %v4932 = vpack.c.bf16 %v4881, %v4877
      %v4933 = vpack.c.bf16 %v4776, %v4772
      %v4934 = vpack.c.bf16 %v4778, %v4774
      %v4935 = vpack.c.bf16 %v4889, %v4885
      %v4936 = vpack.c.bf16 %v4891, %v4887
      %v4937 = vpack.c.bf16 %v4786, %v4782
      %v4938 = vpack.c.bf16 %v4788, %v4784
      %v4939 = vpack.c.bf16 %v4899, %v4895
      %v4940 = vpack.c.bf16 %v4901, %v4897
      %v4941 = vpack.c.bf16 %v4796, %v4792
      %v4942 = vpack.c.bf16 %v4798, %v4794
      %v4943 = vpack.c.bf16 %v4909, %v4905
      %v4944 = vpack.c.bf16 %v4911, %v4907
      %v4945 = vadd.bf16 %v4913, %v2945
      %v4946 = vadd.bf16 %v4914, %v2945
      %v4947 = vadd.bf16 %v4915, %v2945
      %v4948 = vadd.bf16 %v4916, %v2945
      %v4949 = vadd.bf16 %v4917, %v2946
      %v4950 = vadd.bf16 %v4918, %v2946
      %v4951 = vadd.bf16 %v4919, %v2946
      %v4952 = vadd.bf16 %v4920, %v2946
      %v4953 = vadd.bf16 %v4921, %v2947
      %v4954 = vadd.bf16 %v4922, %v2947
      %v4955 = vadd.bf16 %v4923, %v2947
      %v4956 = vadd.bf16 %v4924, %v2947
      %v4957 = vadd.bf16 %v4925, %v2948
      %v4958 = vadd.bf16 %v4926, %v2948
      %v4959 = vadd.bf16 %v4927, %v2948
      %v4960 = vadd.bf16 %v4928, %v2948
      %v4961 = vadd.bf16 %v4929, %v2949
      %v4962 = vadd.bf16 %v4930, %v2949
      %v4963 = vadd.bf16 %v4931, %v2949
      %v4964 = vadd.bf16 %v4932, %v2949
      %v4965 = vadd.bf16 %v4933, %v2950
      %v4966 = vadd.bf16 %v4934, %v2950
      %v4967 = vadd.bf16 %v4935, %v2950
      %v4968 = vadd.bf16 %v4936, %v2950
      %v4969 = vadd.bf16 %v4937, %v2951
      %v4970 = vadd.bf16 %v4938, %v2951
      %v4971 = vadd.bf16 %v4939, %v2951
      %v4972 = vadd.bf16 %v4940, %v2951
      %v4973 = vadd.bf16 %v4941, %v2952
      %v4974 = vadd.bf16 %v4942, %v2952
      %v4975 = vadd.bf16 %v4943, %v2952
      %v4976 = vadd.bf16 %v4944, %v2952
      %v4977 = vmax.bf16 %v4945, 0
      %v4978 = vmax.bf16 %v4946, 0
      %v4979 = vmax.bf16 %v4947, 0
      %v4980 = vmax.bf16 %v4948, 0
      %v4981 = vmax.bf16 %v4949, 0
      %v4982 = vmax.bf16 %v4950, 0
      %v4983 = vmax.bf16 %v4951, 0
      %v4984 = vmax.bf16 %v4952, 0
      %v4985 = vmax.bf16 %v4953, 0
      %v4986 = vmax.bf16 %v4954, 0
      %v4987 = vmax.bf16 %v4955, 0
      %v4988 = vmax.bf16 %v4956, 0
      %v4989 = vmax.bf16 %v4957, 0
      %v4990 = vmax.bf16 %v4958, 0
      %v4991 = vmax.bf16 %v4959, 0
      %v4992 = vmax.bf16 %v4960, 0
      %v4993 = vmax.bf16 %v4961, 0
      %v4994 = vmax.bf16 %v4962, 0
      %v4995 = vmax.bf16 %v4963, 0
      %v4996 = vmax.bf16 %v4964, 0
      %v4997 = vmax.bf16 %v4965, 0
      %v4998 = vmax.bf16 %v4966, 0
      %v4999 = vmax.bf16 %v4967, 0
      %v5000 = vmax.bf16 %v4968, 0
      %v5001 = vmax.bf16 %v4969, 0
      %v5002 = vmax.bf16 %v4970, 0
      %v5003 = vmax.bf16 %v4971, 0
      %v5004 = vmax.bf16 %v4972, 0
      %v5005 = vmax.bf16 %v4973, 0
      %v5006 = vmax.bf16 %v4974, 0
      %v5007 = vmax.bf16 %v4975, 0
      %v5008 = vmax.bf16 %v4976, 0
      %5009 = vmatprep.subr.bf16.mxu0 %v4978
      %5010 = vmatpush1.bf16.msra.mxu0 %v4977
      %5011 = vmatprep.subr.bf16.mxu0 %v4982
      %5012 = vmatpush1.bf16.msra.mxu0 %v4981
      %5013 = vmatprep.subr.bf16.mxu0 %v4986
      %5014 = vmatpush1.bf16.msra.mxu0 %v4985
      %5015 = vmatprep.subr.bf16.mxu0 %v4990
      %5016 = vmatpush1.bf16.msra.mxu0 %v4989
      %5017 = vmatprep.subr.bf16.mxu0 %v4994
      %5018 = vmatpush1.bf16.msra.mxu0 %v4993
      %5019 = vmatprep.subr.bf16.mxu0 %v4998
      %5020 = vmatpush1.bf16.msra.mxu0 %v4997
      %5021 = vmatprep.subr.bf16.mxu0 %v5002
      %5022 = vmatpush1.bf16.msra.mxu0 %v5001
      %5023 = vmatprep.subr.bf16.mxu0 %v5006
      %5024 = vmatpush1.bf16.msra.mxu0 %v5005
      %5025 = vmatprep.subr.bf16.mxu0 0
      %5026 = vmatpush1.bf16.msra.mxu0 0
      %5027 = vmatprep.subr.bf16.mxu0 0
      %5028 = vmatpush1.bf16.msra.mxu0 0
      %5029 = vmatprep.subr.bf16.mxu0 0
      %5030 = vmatpush1.bf16.msra.mxu0 0
      %5031 = vmatprep.subr.bf16.mxu0 0
      %5032 = vmatpush1.bf16.msra.mxu0 0
      %5033 = vmatprep.subr.bf16.mxu0 0
      %5034 = vmatpush1.bf16.msra.mxu0 0
      %5035 = vmatprep.subr.bf16.mxu0 0
      %5036 = vmatpush1.bf16.msra.mxu0 0
      %5037 = vmatprep.subr.bf16.mxu0 0
      %5038 = vmatpush1.bf16.msra.mxu0 0
      %5039 = vmatprep.subr.bf16.mxu0 0
      %5040 = vmatpush1.bf16.msra.mxu0 0
      %5041 = vmatprep.mubr.bf16.mxu0 0
      %5042 = vmatmul.mubr.bf16.gmra.mrb[0].mxu0 %v3057
      %v5043 = vpop.f32.mrb[0].mxu0
      %v5044 = vadd.f32 0.0, %v5043
      %v5045 = vpop.f32.mrb[0].mxu0
      %v5046 = vadd.f32 0.0, %v5045
      %v5047 = vpop.f32.mrb[0].mxu0
      %v5048 = vadd.f32 0.0, %v5047
      %v5049 = vpop.f32.mrb[0].mxu0
      %v5050 = vadd.f32 0.0, %v5049
      %5051 = vmatprep.mubr.bf16.mxu0 0
      %5052 = vmatmul.mubr.bf16.gmra.mrb[0].mxu0 %v3058
      %v5053 = vpop.f32.mrb[0].mxu0
      %v5054 = vadd.f32 0.0, %v5053
      %v5055 = vpop.f32.mrb[0].mxu0
      %v5056 = vadd.f32 0.0, %v5055
      %v5057 = vpop.f32.mrb[0].mxu0
      %v5058 = vadd.f32 0.0, %v5057
      %v5059 = vpop.f32.mrb[0].mxu0
      %v5060 = vadd.f32 0.0, %v5059
      %5061 = vmatprep.mubr.bf16.mxu0 0
      %5062 = vmatmul.mubr.bf16.gmra.mrb[0].mxu0 %v3059
      %v5063 = vpop.f32.mrb[0].mxu0
      %v5064 = vadd.f32 0.0, %v5063
      %v5065 = vpop.f32.mrb[0].mxu0
      %v5066 = vadd.f32 0.0, %v5065
      %v5067 = vpop.f32.mrb[0].mxu0
      %v5068 = vadd.f32 0.0, %v5067
      %v5069 = vpop.f32.mrb[0].mxu0
      %v5070 = vadd.f32 0.0, %v5069
      %5071 = vmatprep.mubr.bf16.mxu0 0
      %5072 = vmatmul.mubr.bf16.gmra.mrb[0].mxu0 %v3060
      %v5073 = vpop.f32.mrb[0].mxu0
      %v5074 = vadd.f32 0.0, %v5073
      %v5075 = vpop.f32.mrb[0].mxu0
      %v5076 = vadd.f32 0.0, %v5075
      %v5077 = vpop.f32.mrb[0].mxu0
      %v5078 = vadd.f32 0.0, %v5077
      %v5079 = vpop.f32.mrb[0].mxu0
      %v5080 = vadd.f32 0.0, %v5079
      %5081 = vmatprep.mubr.bf16.mxu0 0
      %5082 = vmatmul.mubr.bf16.gmra.mrb[0].mxu0 %v3061
      %v5083 = vpop.f32.mrb[0].mxu0
      %v5084 = vadd.f32 0.0, %v5083
      %v5085 = vpop.f32.mrb[0].mxu0
      %v5086 = vadd.f32 0.0, %v5085
      %v5087 = vpop.f32.mrb[0].mxu0
      %v5088 = vadd.f32 0.0, %v5087
      %v5089 = vpop.f32.mrb[0].mxu0
      %v5090 = vadd.f32 0.0, %v5089
      %5091 = vmatprep.mubr.bf16.mxu0 0
      %5092 = vmatmul.mubr.bf16.gmra.mrb[0].mxu0 %v3062
      %v5093 = vpop.f32.mrb[0].mxu0
      %v5094 = vadd.f32 0.0, %v5093
      %v5095 = vpop.f32.mrb[0].mxu0
      %v5096 = vadd.f32 0.0, %v5095
      %v5097 = vpop.f32.mrb[0].mxu0
      %v5098 = vadd.f32 0.0, %v5097
      %v5099 = vpop.f32.mrb[0].mxu0
      %v5100 = vadd.f32 0.0, %v5099
      %5101 = vmatprep.mubr.bf16.mxu0 0
      %5102 = vmatmul.mubr.bf16.gmra.mrb[0].mxu0 %v3063
      %v5103 = vpop.f32.mrb[0].mxu0
      %v5104 = vadd.f32 0.0, %v5103
      %v5105 = vpop.f32.mrb[0].mxu0
      %v5106 = vadd.f32 0.0, %v5105
      %v5107 = vpop.f32.mrb[0].mxu0
      %v5108 = vadd.f32 0.0, %v5107
      %v5109 = vpop.f32.mrb[0].mxu0
      %v5110 = vadd.f32 0.0, %v5109
      %5111 = vmatprep.mubr.bf16.mxu0 0
      %5112 = vmatmul.mubr.bf16.gmra.mrb[0].mxu0 %v3064
      %v5113 = vpop.f32.mrb[0].mxu0
      %v5114 = vadd.f32 0.0, %v5113
      %v5115 = vpop.f32.mrb[0].mxu0
      %v5116 = vadd.f32 0.0, %v5115
      %v5117 = vpop.f32.mrb[0].mxu0
      %v5118 = vadd.f32 0.0, %v5117
      %v5119 = vpop.f32.mrb[0].mxu0
      %v5120 = vadd.f32 0.0, %v5119
      %5121 = vdwg.mxu0
      %5122 = vmatprep.subr.bf16.mxu0 %v4980
      %5123 = vmatpush1.bf16.msra.mxu0 %v4979
      %5124 = vmatprep.subr.bf16.mxu0 %v4984
      %5125 = vmatpush1.bf16.msra.mxu0 %v4983
      %5126 = vmatprep.subr.bf16.mxu0 %v4988
      %5127 = vmatpush1.bf16.msra.mxu0 %v4987
      %5128 = vmatprep.subr.bf16.mxu0 %v4992
      %5129 = vmatpush1.bf16.msra.mxu0 %v4991
      %5130 = vmatprep.subr.bf16.mxu0 %v4996
      %5131 = vmatpush1.bf16.msra.mxu0 %v4995
      %5132 = vmatprep.subr.bf16.mxu0 %v5000
      %5133 = vmatpush1.bf16.msra.mxu0 %v4999
      %5134 = vmatprep.subr.bf16.mxu0 %v5004
      %5135 = vmatpush1.bf16.msra.mxu0 %v5003
      %5136 = vmatprep.subr.bf16.mxu0 %v5008
      %5137 = vmatpush1.bf16.msra.mxu0 %v5007
      %5138 = vmatprep.subr.bf16.mxu0 0
      %5139 = vmatpush1.bf16.msra.mxu0 0
      %5140 = vmatprep.subr.bf16.mxu0 0
      %5141 = vmatpush1.bf16.msra.mxu0 0
      %5142 = vmatprep.subr.bf16.mxu0 0
      %5143 = vmatpush1.bf16.msra.mxu0 0
      %5144 = vmatprep.subr.bf16.mxu0 0
      %5145 = vmatpush1.bf16.msra.mxu0 0
      %5146 = vmatprep.subr.bf16.mxu0 0
      %5147 = vmatpush1.bf16.msra.mxu0 0
      %5148 = vmatprep.subr.bf16.mxu0 0
      %5149 = vmatpush1.bf16.msra.mxu0 0
      %5150 = vmatprep.subr.bf16.mxu0 0
      %5151 = vmatpush1.bf16.msra.mxu0 0
      %5152 = vmatprep.subr.bf16.mxu0 0
      %5153 = vmatpush1.bf16.msra.mxu0 0
      %5154 = vmatprep.mubr.bf16.mxu0 0
      %5155 = vmatmul.mubr.bf16.gmra.mrb[0].mxu0 %v3057
      %v5156 = vpop.f32.mrb[0].mxu0
      %v5157 = vadd.f32 0.0, %v5156
      %v5158 = vpop.f32.mrb[0].mxu0
      %v5159 = vadd.f32 0.0, %v5158
      %v5160 = vpop.f32.mrb[0].mxu0
      %v5161 = vadd.f32 0.0, %v5160
      %v5162 = vpop.f32.mrb[0].mxu0
      %v5163 = vadd.f32 0.0, %v5162
      %5164 = vmatprep.mubr.bf16.mxu0 0
      %5165 = vmatmul.mubr.bf16.gmra.mrb[0].mxu0 %v3058
      %v5166 = vpop.f32.mrb[0].mxu0
      %v5167 = vadd.f32 0.0, %v5166
      %v5168 = vpop.f32.mrb[0].mxu0
      %v5169 = vadd.f32 0.0, %v5168
      %v5170 = vpop.f32.mrb[0].mxu0
      %v5171 = vadd.f32 0.0, %v5170
      %v5172 = vpop.f32.mrb[0].mxu0
      %v5173 = vadd.f32 0.0, %v5172
      %5174 = vmatprep.mubr.bf16.mxu0 0
      %5175 = vmatmul.mubr.bf16.gmra.mrb[0].mxu0 %v3059
      %v5176 = vpop.f32.mrb[0].mxu0
      %v5177 = vadd.f32 0.0, %v5176
      %v5178 = vpop.f32.mrb[0].mxu0
      %v5179 = vadd.f32 0.0, %v5178
      %v5180 = vpop.f32.mrb[0].mxu0
      %v5181 = vadd.f32 0.0, %v5180
      %v5182 = vpop.f32.mrb[0].mxu0
      %v5183 = vadd.f32 0.0, %v5182
      %5184 = vmatprep.mubr.bf16.mxu0 0
      %5185 = vmatmul.mubr.bf16.gmra.mrb[0].mxu0 %v3060
      %v5186 = vpop.f32.mrb[0].mxu0
      %v5187 = vadd.f32 0.0, %v5186
      %v5188 = vpop.f32.mrb[0].mxu0
      %v5189 = vadd.f32 0.0, %v5188
      %v5190 = vpop.f32.mrb[0].mxu0
      %v5191 = vadd.f32 0.0, %v5190
      %v5192 = vpop.f32.mrb[0].mxu0
      %v5193 = vadd.f32 0.0, %v5192
      %5194 = vmatprep.mubr.bf16.mxu0 0
      %5195 = vmatmul.mubr.bf16.gmra.mrb[0].mxu0 %v3061
      %v5196 = vpop.f32.mrb[0].mxu0
      %v5197 = vadd.f32 0.0, %v5196
      %v5198 = vpop.f32.mrb[0].mxu0
      %v5199 = vadd.f32 0.0, %v5198
      %v5200 = vpop.f32.mrb[0].mxu0
      %v5201 = vadd.f32 0.0, %v5200
      %v5202 = vpop.f32.mrb[0].mxu0
      %v5203 = vadd.f32 0.0, %v5202
      %5204 = vmatprep.mubr.bf16.mxu0 0
      %5205 = vmatmul.mubr.bf16.gmra.mrb[0].mxu0 %v3062
      %v5206 = vpop.f32.mrb[0].mxu0
      %v5207 = vadd.f32 0.0, %v5206
      %v5208 = vpop.f32.mrb[0].mxu0
      %v5209 = vadd.f32 0.0, %v5208
      %v5210 = vpop.f32.mrb[0].mxu0
      %v5211 = vadd.f32 0.0, %v5210
      %v5212 = vpop.f32.mrb[0].mxu0
      %v5213 = vadd.f32 0.0, %v5212
      %5214 = vmatprep.mubr.bf16.mxu0 0
      %5215 = vmatmul.mubr.bf16.gmra.mrb[0].mxu0 %v3063
      %v5216 = vpop.f32.mrb[0].mxu0
      %v5217 = vadd.f32 0.0, %v5216
      %v5218 = vpop.f32.mrb[0].mxu0
      %v5219 = vadd.f32 0.0, %v5218
      %v5220 = vpop.f32.mrb[0].mxu0
      %v5221 = vadd.f32 0.0, %v5220
      %v5222 = vpop.f32.mrb[0].mxu0
      %v5223 = vadd.f32 0.0, %v5222
      %5224 = vmatprep.mubr.bf16.mxu0 0
      %5225 = vmatmul.mubr.bf16.gmra.mrb[0].mxu0 %v3064
      %v5226 = vpop.f32.mrb[0].mxu0
      %v5227 = vadd.f32 0.0, %v5226
      %v5228 = vpop.f32.mrb[0].mxu0
      %v5229 = vadd.f32 0.0, %v5228
      %v5230 = vpop.f32.mrb[0].mxu0
      %v5231 = vadd.f32 0.0, %v5230
      %v5232 = vpop.f32.mrb[0].mxu0
      %v5233 = vadd.f32 0.0, %v5232
      %5234 = vdwg.mxu0
      %v5235 = vpack.c.bf16 %v5048, %v5044
      %v5236 = vpack.c.bf16 %v5050, %v5046
      %v5237 = vpack.c.bf16 %v5161, %v5157
      %v5238 = vpack.c.bf16 %v5163, %v5159
      %v5239 = vpack.c.bf16 %v5058, %v5054
      %v5240 = vpack.c.bf16 %v5060, %v5056
      %v5241 = vpack.c.bf16 %v5171, %v5167
      %v5242 = vpack.c.bf16 %v5173, %v5169
      %v5243 = vpack.c.bf16 %v5068, %v5064
      %v5244 = vpack.c.bf16 %v5070, %v5066
      %v5245 = vpack.c.bf16 %v5181, %v5177
      %v5246 = vpack.c.bf16 %v5183, %v5179
      %v5247 = vpack.c.bf16 %v5078, %v5074
      %v5248 = vpack.c.bf16 %v5080, %v5076
      %v5249 = vpack.c.bf16 %v5191, %v5187
      %v5250 = vpack.c.bf16 %v5193, %v5189
      %v5251 = vpack.c.bf16 %v5088, %v5084
      %v5252 = vpack.c.bf16 %v5090, %v5086
      %v5253 = vpack.c.bf16 %v5201, %v5197
      %v5254 = vpack.c.bf16 %v5203, %v5199
      %v5255 = vpack.c.bf16 %v5098, %v5094
      %v5256 = vpack.c.bf16 %v5100, %v5096
      %v5257 = vpack.c.bf16 %v5211, %v5207
      %v5258 = vpack.c.bf16 %v5213, %v5209
      %v5259 = vpack.c.bf16 %v5108, %v5104
      %v5260 = vpack.c.bf16 %v5110, %v5106
      %v5261 = vpack.c.bf16 %v5221, %v5217
      %v5262 = vpack.c.bf16 %v5223, %v5219
      %v5263 = vpack.c.bf16 %v5118, %v5114
      %v5264 = vpack.c.bf16 %v5120, %v5116
      %v5265 = vpack.c.bf16 %v5231, %v5227
      %v5266 = vpack.c.bf16 %v5233, %v5229
      %v5267 = vadd.bf16 %v5235, %v3555
      %v5268 = vadd.bf16 %v5236, %v3555
      %v5269 = vadd.bf16 %v5237, %v3555
      %v5270 = vadd.bf16 %v5238, %v3555
      %v5271 = vadd.bf16 %v5239, %v3556
      %v5272 = vadd.bf16 %v5240, %v3556
      %v5273 = vadd.bf16 %v5241, %v3556
      %v5274 = vadd.bf16 %v5242, %v3556
      %v5275 = vadd.bf16 %v5243, %v3557
      %v5276 = vadd.bf16 %v5244, %v3557
      %v5277 = vadd.bf16 %v5245, %v3557
      %v5278 = vadd.bf16 %v5246, %v3557
      %v5279 = vadd.bf16 %v5247, %v3558
      %v5280 = vadd.bf16 %v5248, %v3558
      %v5281 = vadd.bf16 %v5249, %v3558
      %v5282 = vadd.bf16 %v5250, %v3558
      %v5283 = vadd.bf16 %v5251, %v3559
      %v5284 = vadd.bf16 %v5252, %v3559
      %v5285 = vadd.bf16 %v5253, %v3559
      %v5286 = vadd.bf16 %v5254, %v3559
      %v5287 = vadd.bf16 %v5255, %v3560
      %v5288 = vadd.bf16 %v5256, %v3560
      %v5289 = vadd.bf16 %v5257, %v3560
      %v5290 = vadd.bf16 %v5258, %v3560
      %v5291 = vadd.bf16 %v5259, %v3561
      %v5292 = vadd.bf16 %v5260, %v3561
      %v5293 = vadd.bf16 %v5261, %v3561
      %v5294 = vadd.bf16 %v5262, %v3561
      %v5295 = vadd.bf16 %v5263, %v3562
      %v5296 = vadd.bf16 %v5264, %v3562
      %v5297 = vadd.bf16 %v5265, %v3562
      %v5298 = vadd.bf16 %v5266, %v3562
      %v5299 = vmax.bf16 %v5267, 0
      %v5300 = vmax.bf16 %v5268, 0
      %v5301 = vmax.bf16 %v5269, 0
      %v5302 = vmax.bf16 %v5270, 0
      %v5303 = vmax.bf16 %v5271, 0
      %v5304 = vmax.bf16 %v5272, 0
      %v5305 = vmax.bf16 %v5273, 0
      %v5306 = vmax.bf16 %v5274, 0
      %v5307 = vmax.bf16 %v5275, 0
      %v5308 = vmax.bf16 %v5276, 0
      %v5309 = vmax.bf16 %v5277, 0
      %v5310 = vmax.bf16 %v5278, 0
      %v5311 = vmax.bf16 %v5279, 0
      %v5312 = vmax.bf16 %v5280, 0
      %v5313 = vmax.bf16 %v5281, 0
      %v5314 = vmax.bf16 %v5282, 0
      %v5315 = vmax.bf16 %v5283, 0
      %v5316 = vmax.bf16 %v5284, 0
      %v5317 = vmax.bf16 %v5285, 0
      %v5318 = vmax.bf16 %v5286, 0
      %v5319 = vmax.bf16 %v5287, 0
      %v5320 = vmax.bf16 %v5288, 0
      %v5321 = vmax.bf16 %v5289, 0
      %v5322 = vmax.bf16 %v5290, 0
      %v5323 = vmax.bf16 %v5291, 0
      %v5324 = vmax.bf16 %v5292, 0
      %v5325 = vmax.bf16 %v5293, 0
      %v5326 = vmax.bf16 %v5294, 0
      %v5327 = vmax.bf16 %v5295, 0
      %v5328 = vmax.bf16 %v5296, 0
      %v5329 = vmax.bf16 %v5297, 0
      %v5330 = vmax.bf16 %v5298, 0
      %5331 = vmatprep.subr.bf16.mxu0 %v5300
      %5332 = vmatpush1.bf16.msra.mxu0 %v5299
      %5333 = vmatprep.subr.bf16.mxu0 %v5304
      %5334 = vmatpush1.bf16.msra.mxu0 %v5303
      %5335 = vmatprep.subr.bf16.mxu0 %v5308
      %5336 = vmatpush1.bf16.msra.mxu0 %v5307
      %5337 = vmatprep.subr.bf16.mxu0 %v5312
      %5338 = vmatpush1.bf16.msra.mxu0 %v5311
      %5339 = vmatprep.subr.bf16.mxu0 %v5316
      %5340 = vmatpush1.bf16.msra.mxu0 %v5315
      %5341 = vmatprep.subr.bf16.mxu0 %v5320
      %5342 = vmatpush1.bf16.msra.mxu0 %v5319
      %5343 = vmatprep.subr.bf16.mxu0 %v5324
      %5344 = vmatpush1.bf16.msra.mxu0 %v5323
      %5345 = vmatprep.subr.bf16.mxu0 %v5328
      %5346 = vmatpush1.bf16.msra.mxu0 %v5327
      %5347 = vmatprep.subr.bf16.mxu0 0
      %5348 = vmatpush1.bf16.msra.mxu0 0
      %5349 = vmatprep.subr.bf16.mxu0 0
      %5350 = vmatpush1.bf16.msra.mxu0 0
      %5351 = vmatprep.subr.bf16.mxu0 0
      %5352 = vmatpush1.bf16.msra.mxu0 0
      %5353 = vmatprep.subr.bf16.mxu0 0
      %5354 = vmatpush1.bf16.msra.mxu0 0
      %5355 = vmatprep.subr.bf16.mxu0 0
      %5356 = vmatpush1.bf16.msra.mxu0 0
      %5357 = vmatprep.subr.bf16.mxu0 0
      %5358 = vmatpush1.bf16.msra.mxu0 0
      %5359 = vmatprep.subr.bf16.mxu0 0
      %5360 = vmatpush1.bf16.msra.mxu0 0
      %5361 = vmatprep.subr.bf16.mxu0 0
      %5362 = vmatpush1.bf16.msra.mxu0 0
      %5363 = vmatprep.mubr.bf16.mxu0 0
      %5364 = vmatmul.mubr.bf16.gmra.mrb[0].mxu0 %v523
      %v5365 = vpop.f32.mrb[0].mxu0
      %v5366 = vadd.f32 %v3638, %v5365
      %v5367 = vpop.f32.mrb[0].mxu0
      %v5368 = vadd.f32 %v3638, %v5367
      %v5369 = vpop.f32.mrb[0].mxu0
      %v5370 = vpop.f32.mrb[0].mxu0
      %5371 = vdwg.mxu0
      %5372 = vmatprep.subr.bf16.mxu0 %v5302
      %5373 = vmatpush1.bf16.msra.mxu0 %v5301
      %5374 = vmatprep.subr.bf16.mxu0 %v5306
      %5375 = vmatpush1.bf16.msra.mxu0 %v5305
      %5376 = vmatprep.subr.bf16.mxu0 %v5310
      %5377 = vmatpush1.bf16.msra.mxu0 %v5309
      %5378 = vmatprep.subr.bf16.mxu0 %v5314
      %5379 = vmatpush1.bf16.msra.mxu0 %v5313
      %5380 = vmatprep.subr.bf16.mxu0 %v5318
      %5381 = vmatpush1.bf16.msra.mxu0 %v5317
      %5382 = vmatprep.subr.bf16.mxu0 %v5322
      %5383 = vmatpush1.bf16.msra.mxu0 %v5321
      %5384 = vmatprep.subr.bf16.mxu0 %v5326
      %5385 = vmatpush1.bf16.msra.mxu0 %v5325
      %5386 = vmatprep.subr.bf16.mxu0 %v5330
      %5387 = vmatpush1.bf16.msra.mxu0 %v5329
      %5388 = vmatprep.subr.bf16.mxu0 0
      %5389 = vmatpush1.bf16.msra.mxu0 0
      %5390 = vmatprep.subr.bf16.mxu0 0
      %5391 = vmatpush1.bf16.msra.mxu0 0
      %5392 = vmatprep.subr.bf16.mxu0 0
      %5393 = vmatpush1.bf16.msra.mxu0 0
      %5394 = vmatprep.subr.bf16.mxu0 0
      %5395 = vmatpush1.bf16.msra.mxu0 0
      %5396 = vmatprep.subr.bf16.mxu0 0
      %5397 = vmatpush1.bf16.msra.mxu0 0
      %5398 = vmatprep.subr.bf16.mxu0 0
      %5399 = vmatpush1.bf16.msra.mxu0 0
      %5400 = vmatprep.subr.bf16.mxu0 0
      %5401 = vmatpush1.bf16.msra.mxu0 0
      %5402 = vmatprep.subr.bf16.mxu0 0
      %5403 = vmatpush1.bf16.msra.mxu0 0
      %5404 = vmatprep.mubr.bf16.mxu0 0
      %5405 = vmatmul.mubr.bf16.gmra.mrb[0].mxu0 %v523
      %v5406 = vpop.f32.mrb[0].mxu0
      %v5407 = vadd.f32 %v3638, %v5406
      %v5408 = vpop.f32.mrb[0].mxu0
      %v5409 = vadd.f32 %v3638, %v5408
      %v5410 = vpop.f32.mrb[0].mxu0
      %v5411 = vpop.f32.mrb[0].mxu0
      %5412 = vdwg.mxu0
      %5413 = vst [vmem:[%s388 + $0x20] sm:$0xff] %v5366
      %5414 = vst [vmem:[%s388 + $0x28] sm:$0xff] %v5368
      %5415 = vst [vmem:[%s388 + $0x30] sm:$0xff] %v5407
      %5416 = vst [vmem:[%s388 + $0x38] sm:$0xff] %v5409
      %s5417 = smul.u32 8, %s22
      %p5418 = scmp.lt.s32.totalorder %s5417, 15
      %s5419 = scalar_select %p5418, %s5417, 15
      %s5420 = smul.addr %s5419, 8
      %s5421 = scalar_lea.vmem %s11, %s5420
      // Predicated region
      $region65: #{_lambda_.1} parent=63 // pred_check
        %p5422 = pneg %p276
      $region66: #{_lambda_.1} parent=63 // pred_check_branch
        %5424 = sbr.rel (%p5422) target = $region68
      $region67: #{_lambda_.1} parent=63 // pred_region
        %s5425 = smul.u32 8, %s22
      $region68: #{_lambda_.1} parent=63 // pred_fallthru
        _
    $region64: #{_lambda_.1} parent=5 // pred_fallthru
      _
    %p5426 = scmp.le.s32.totalorder 2, %s17
    // Predicated region
    $region69: #{_lambda_.1} parent=5 // pred_check
      %p5427 = pneg %p5426
    $region70: #{_lambda_.1} parent=5 // pred_check_branch
      %5429 = sbr.rel (%p5427) target = $region72
    $region71: #{_lambda_.1} parent=5 // pred_region
      %s5430 = ssub.s32 %s17, 2
      // Predicated region
      $region73: #{_lambda_.1} parent=71 // pred_check
        %p5431 = pneg %p282
      $region74: #{_lambda_.1} parent=71 // pred_check_branch
        %5433 = sbr.rel (%p5431) target = $region76
      $region75: #{_lambda_.1} parent=71 // pred_region
        %s5434 = smul.u32 8, %s23
        %p5435 = scmp.lt.s32.totalorder %s5434, 15
        %s5436 = scalar_select %p5435, %s5434, 15
        %s5437 = smul.addr %s5436, 8
        %s5438 = scalar_lea.vmem %s11, %s5437
      $region76: #{_lambda_.1} parent=71 // pred_fallthru
        _
    $region72: #{_lambda_.1} parent=5 // pred_fallthru
      _
  $region6: #{_lambda_.1} parent=0 // loop_footer
    %s21 = sadd.s32 1, %s17
  $region7: #{_lambda_.1} parent=0 // loop_footer_branch
    %16 = sbr.rel target = $region3
  $region8: #{_lambda_.1} parent=0 // loop_exit
    _

</llo_original>
